<compile_context>
chip_gen: v5e
topology: v5e:2x2
jax: 0.10.0
libtpu: 0.0.40
codegen_flags: <defaults>
</compile_context>

<pallas_src>
import jax
import jax.numpy as jnp
from jax.experimental import pallas as pl
from jax.experimental.pallas import tpu as pltpu

# ------------------------- model configuration (small, synthetic) -----------
BATCH = 2
NR_BOXES = 4            # opt.num_boxes
NR_FRAMES = 8           # opt.num_frames   -> T2 = T/2 = 4
NR_ACTIONS = 10         # opt.num_classes
IMG_DIM = 256           # opt.img_feature_dim (the .view() hard-codes 256)
COORD_DIM = 64          # opt.coord_feature_dim
I3D_C = 2048            # conv input channels
FEAT_H = 7
FEAT_W = 7
T2 = NR_FRAMES // 2
JBLK = IMG_DIM // T2    # 64: channel block width induced by the view() scramble
TK = 512                # conv reduction chunk (K-gridded weight streaming)
assert IMG_DIM % T2 == 0 and I3D_C % TK == 0


# ------------------------------ Pallas kernel --------------------------------
def _fused_kernel(xg_ref, conv_w_ref, conv_b_ref, box_ref,
                  gfcw_ref, gfcsh_ref, c1w_ref, c1sh_ref, c2w_ref, c2sh_ref,
                  adj_ref, s1w_ref, s1sh_ref, s2w_ref, s2sh_ref,
                  tsel_ref, f1w_ref, f1sh_ref, f2w_ref, f2sh_ref,
                  k1w_ref, k1b_ref, k2w_ref, k2b_ref, k3w_ref, k3b_ref,
                  o_ref, acc_ref):
    """K-gridded 1x1x1 conv + fully fused post-conv network (one launch)."""
    k = pl.program_id(0)

    # ---- 1x1x1 Conv3d on HW-pooled features == channel matmul, accumulated
    #      over K chunks so the conv-weight DMA overlaps MXU work.
    @pl.when(k == 0)
    def _():
        acc_ref[...] = jnp.zeros_like(acc_ref)

    acc_ref[...] += jnp.dot(xg_ref[...], conv_w_ref[...],
                            preferred_element_type=jnp.float32)

    # ---- on the last K chunk, run the whole tail on VMEM-resident data ------
    @pl.when(k == pl.num_programs(0) - 1)
    def _():
        def lin_bn(x, w_ref, sh_ref, relu=True):
            # Linear(bias=False) + eval-mode BatchNorm1d (+ ReLU), bf16 MXU,
            # f32 accumulation and epilogue.
            sh = sh_ref[...]
            y = jnp.dot(x.astype(jnp.bfloat16), w_ref[...],
                        preferred_element_type=jnp.float32)
            y = y * sh[0:1, :] + sh[1:2, :]
            return jnp.maximum(y, 0.0) if relu else y

        def lin_bias(x, w_ref, b_ref, relu=True):
            y = jnp.dot(x.astype(jnp.bfloat16), w_ref[...],
                        preferred_element_type=jnp.float32) + b_ref[...]
            return jnp.maximum(y, 0.0) if relu else y

        # ---------------- global branch --------------------------------------
        # vf[b*T2 + t, c]: HW-pooled conv output, rows (b, t).
        vf = acc_ref[...] + conv_b_ref[...]                        # [B*T2, 256] f32
        # Rows of vf that share the same time index t (static row gather).
        vf_t = [jnp.concatenate([vf[b * T2 + t:b * T2 + t + 1, :]
                                 for b in range(BATCH)], axis=0)   # [B, 256]
                for t in range(T2)]
        # Reference's "[b,256,T2].view(b*T2,256)" scramble + global_new_fc +
        # mean over its T2 rows, with the scramble folded into a host-side row
        # permutation of the fc weight (gfcw_ref[t][m] == gfc_w[m*T2 + t]):
        #   z[b, j, :] = sum_t vf[b, t, j*64:(j+1)*64] @ gfcw_ref[t]
        #   gf[b, :]   = mean_j relu(BN(z[b, j, :]))
        gsh = gfcsh_ref[...]
        gf = jnp.zeros((BATCH, IMG_DIM), jnp.float32)
        for j in range(T2):
            z = jnp.zeros((BATCH, IMG_DIM), jnp.float32)
            for t in range(T2):
                blk = vf_t[t][:, j * JBLK:(j + 1) * JBLK].astype(jnp.bfloat16)
                z = z + jnp.dot(blk, gfcw_ref[t],
                                preferred_element_type=jnp.float32)
            gf = gf + jnp.maximum(z * gsh[0:1, :] + gsh[1:2, :], 0.0)
        gf = gf * (1.0 / T2)                                       # [B, 256]

        # ---------------- coordinate branch ----------------------------------
        h = lin_bn(box_ref[...], c1w_ref, c1sh_ref)                # [B*P*T2, D/2]
        h = lin_bn(h, c2w_ref, c2sh_ref)                           # [B*P*T2, D], rows (b,p,t)

        # spatial message: mean of the other boxes at the same (b, t):
        # host-precomputed 0/1 bf16 adjacency, f32 1/(P-1) epilogue scale.
        msg = jnp.dot(adj_ref[...], h.astype(jnp.bfloat16),
                      preferred_element_type=jnp.float32) * (1.0 / (NR_BOXES - 1))
        h = jnp.concatenate([h, msg], axis=1)                      # [B*P*T2, 2D]
        h = lin_bn(h, s1w_ref, s1sh_ref)                           # [B*P*T2, D]
        h = lin_bn(h, s2w_ref, s2sh_ref)                           # [B*P*T2, D]

        # temporal regroup: rows (b,p,t) -> rows (b,p), features concat over t,
        # via host-precomputed one-hot selection (exact w.r.t. the bf16 matmul
        # of f1, its sole consumer).
        h_bf = h.astype(jnp.bfloat16)
        parts = [jnp.dot(tsel_ref[t], h_bf, preferred_element_type=jnp.float32)
                 for t in range(T2)]
        h = jnp.concatenate(parts, axis=1)                         # [B*P, T2*D]

        h = lin_bn(h, f1w_ref, f1sh_ref)                           # [B*P, D]
        h = lin_bn(h, f2w_ref, f2sh_ref)                           # [B*P, D]
        coord_ft = jnp.concatenate(
            [jnp.mean(h[b * NR_BOXES:(b + 1) * NR_BOXES, :], axis=0, keepdims=True)
             for b in range(BATCH)], axis=0)                       # [B, D]

        # ---------------- fuse & classify ------------------------------------
        v = jnp.concatenate([gf, coord_ft], axis=1)                # [B, 256 + D]
        y = lin_bias(v, k1w_ref, k1b_ref)
        y = lin_bias(y, k2w_ref, k2b_ref)
        y = lin_bias(y, k3w_ref, k3b_ref, relu=False)              # [B, nr_actions]
        o_ref[...] = y.astype(o_ref.dtype)


def _full_spec(a):
    nd = a.ndim
    return pl.BlockSpec(a.shape, lambda k, _nd=nd: (0,) * _nd)


def fused_forward(xg, box_rows, p):
    inputs = [xg, p['conv_w'], p['conv_b'], box_rows,
              p['gfc_w_r'], p['gfc_sh'],
              p['c1_w'], p['c1_sh'], p['c2_w'], p['c2_sh'],
              p['adj'],
              p['s1_w'], p['s1_sh'], p['s2_w'], p['s2_sh'],
              p['tsel'],
              p['f1_w'], p['f1_sh'], p['f2_w'], p['f2_sh'],
              p['k1_w'], p['k1_b'], p['k2_w'], p['k2_b'], p['k3_w'], p['k3_b']]
    in_specs = [pl.BlockSpec((BATCH * T2, TK), lambda k: (0, k)),   # xg chunks
                pl.BlockSpec((TK, IMG_DIM), lambda k: (k, 0))]      # conv_w chunks
    in_specs += [_full_spec(a) for a in inputs[2:]]                 # fetched once
    return pl.pallas_call(
        _fused_kernel,
        out_shape=jax.ShapeDtypeStruct((BATCH, NR_ACTIONS), jnp.float32),
        grid=(I3D_C // TK,),
        in_specs=in_specs,
        out_specs=pl.BlockSpec((BATCH, NR_ACTIONS), lambda k: (0, 0)),
        scratch_shapes=[pltpu.VMEM((BATCH * T2, IMG_DIM), jnp.float32)],
        compiler_params=pltpu.CompilerParams(
            dimension_semantics=("arbitrary",)),
    )(*inputs)


# ------------------------------ parameters ----------------------------------
def init_params(key):
    keys = iter(jax.random.split(key, 64))
    p = {}

    def lin_w(d_in, d_out, s=0.05):
        # torch Linear weight is [out, in]; stored transposed (x @ W), bf16.
        w = s * jax.random.normal(next(keys), (d_in, d_out), jnp.float32)
        return w.astype(jnp.bfloat16)

    def bn_sh(d):
        # BatchNorm1d eval-mode folded into rows [scale; shift], f32.
        g = 1.0 + 0.1 * jax.random.normal(next(keys), (d,), jnp.float32)
        b = 0.1 * jax.random.normal(next(keys), (d,), jnp.float32)
        mu = 0.1 * jax.random.normal(next(keys), (d,), jnp.float32)
        var = jax.random.uniform(next(keys), (d,), jnp.float32, 0.5, 1.5)
        s = g / jnp.sqrt(var + 1e-5)
        return jnp.stack([s, b - mu * s], axis=0)                  # [2, d]

    def bias_row(d, s=0.02):
        return (s * jax.random.normal(next(keys), (d,), jnp.float32)).reshape(1, d)

    # Conv3d(2048, 256, kernel_size=1): weight [256,2048,1,1,1] -> [2048,256].
    p['conv_w'] = lin_w(I3D_C, IMG_DIM, s=0.02)
    p['conv_b'] = bias_row(IMG_DIM)

    # global_new_fc: Linear(256, 256, bias=False) + BN + ReLU.  The view()
    # scramble is folded into a row permutation: gfc_w_r[t, m] = gfc_w[m*T2+t].
    gfc_w = lin_w(IMG_DIM, IMG_DIM)
    p['gfc_w_r'] = jnp.transpose(gfc_w.reshape(JBLK, T2, IMG_DIM), (1, 0, 2))
    p['gfc_sh'] = bn_sh(IMG_DIM)

    # c_coord_to_feature
    p['c1_w'] = lin_w(4, COORD_DIM // 2);           p['c1_sh'] = bn_sh(COORD_DIM // 2)
    p['c2_w'] = lin_w(COORD_DIM // 2, COORD_DIM);   p['c2_sh'] = bn_sh(COORD_DIM)
    # c_spatial_node_fusion
    p['s1_w'] = lin_w(2 * COORD_DIM, COORD_DIM);    p['s1_sh'] = bn_sh(COORD_DIM)
    p['s2_w'] = lin_w(COORD_DIM, COORD_DIM);        p['s2_sh'] = bn_sh(COORD_DIM)
    # c_box_feature_fusion
    p['f1_w'] = lin_w(T2 * COORD_DIM, COORD_DIM);   p['f1_sh'] = bn_sh(COORD_DIM)
    p['f2_w'] = lin_w(COORD_DIM, COORD_DIM);        p['f2_sh'] = bn_sh(COORD_DIM)
    # classifier (biased Linears, no BN)
    p['k1_w'] = lin_w(COORD_DIM + IMG_DIM, COORD_DIM); p['k1_b'] = bias_row(COORD_DIM)
    p['k2_w'] = lin_w(COORD_DIM, 512);                 p['k2_b'] = bias_row(512)
    p['k3_w'] = lin_w(512, NR_ACTIONS);                p['k3_b'] = bias_row(NR_ACTIONS)

    # Host-precomputed 0/1 relayout constants (bf16, fed to bf16 matmuls).
    n = BATCH * NR_BOXES * T2
    idx = jnp.arange(n)
    ii, jj = idx[:, None], idx[None, :]
    same_bt = ((ii // (NR_BOXES * T2)) == (jj // (NR_BOXES * T2))) \
        & ((ii % T2) == (jj % T2)) & (ii != jj)
    p['adj'] = same_bt.astype(jnp.bfloat16)                        # [B*P*T2, B*P*T2]

    r = jnp.arange(BATCH * NR_BOXES)[:, None]
    c = jnp.arange(n)[None, :]
    p['tsel'] = jnp.stack([(c == r * T2 + t).astype(jnp.bfloat16)
                           for t in range(T2)], axis=0)            # [T2, B*P, B*P*T2]
    return p


# ------------------------------- forward -------------------------------------
@jax.jit
def forward(params, org_features, box_input):
    """org_features: [b, 2048, T/2, H, W] (i3D feature map, bf16)
       box_input:    [b, T/2, nr_boxes, 4] f32"""
    b = org_features.shape[0]
    # Spatial mean-pool BEFORE the 1x1x1 conv (exactly commutes with it):
    # the big feature map is read in bf16, the mean accumulates in f32.
    pooled = jnp.mean(org_features.astype(jnp.bfloat16), axis=(3, 4),
                      dtype=jnp.float32)                           # [b, 2048, T2]
    xg = jnp.transpose(pooled, (0, 2, 1)).reshape(b * T2, I3D_C)
    xg = xg.astype(jnp.bfloat16)                                   # rows (b, t)

    # box_input.transpose(2, 1).contiguous().view(b*P*T2, 4): rows (b, p, t)
    box_rows = jnp.transpose(box_input, (0, 2, 1, 3)).reshape(
        b * NR_BOXES * T2, 4)

    return fused_forward(xg, box_rows, params)                     # [b, nr_actions]


# --------------------------------- main ---------------------------------------
if __name__ == "__main__":
    key = jax.random.PRNGKey(0)
    k_param, k_feat, k_box = jax.random.split(key, 3)

    params = init_params(k_param)
    org_features = jax.random.normal(
        k_feat, (BATCH, I3D_C, T2, FEAT_H, FEAT_W), jnp.float32
    ).astype(jnp.bfloat16)
    box_input = jax.random.uniform(
        k_box, (BATCH, T2, NR_BOXES, 4), jnp.float32)

    cls_output = forward(params, org_features, box_input)
    cls_output = jax.block_until_ready(cls_output)

    assert cls_output.shape == (BATCH, NR_ACTIONS), cls_output.shape
    assert bool(jnp.all(jnp.isfinite(cls_output)))
    print("KERNEL_OK")
</pallas_src>

<mosaic_0001>
module attributes {stable_mosaic.version = 11 : i64} {
  func.func @_fused_kernel(%arg0: i32, %arg1: memref<8x512xbf16, #tpu.memory_space<vmem>>, %arg2: memref<512x256xbf16, #tpu.memory_space<vmem>>, %arg3: memref<1x256xf32, #tpu.memory_space<vmem>>, %arg4: memref<32x4xf32, #tpu.memory_space<vmem>>, %arg5: memref<4x64x256xbf16, #tpu.memory_space<vmem>>, %arg6: memref<2x256xf32, #tpu.memory_space<vmem>>, %arg7: memref<4x32xbf16, #tpu.memory_space<vmem>>, %arg8: memref<2x32xf32, #tpu.memory_space<vmem>>, %arg9: memref<32x64xbf16, #tpu.memory_space<vmem>>, %arg10: memref<2x64xf32, #tpu.memory_space<vmem>>, %arg11: memref<32x32xbf16, #tpu.memory_space<vmem>>, %arg12: memref<128x64xbf16, #tpu.memory_space<vmem>>, %arg13: memref<2x64xf32, #tpu.memory_space<vmem>>, %arg14: memref<64x64xbf16, #tpu.memory_space<vmem>>, %arg15: memref<2x64xf32, #tpu.memory_space<vmem>>, %arg16: memref<4x8x32xbf16, #tpu.memory_space<vmem>>, %arg17: memref<256x64xbf16, #tpu.memory_space<vmem>>, %arg18: memref<2x64xf32, #tpu.memory_space<vmem>>, %arg19: memref<64x64xbf16, #tpu.memory_space<vmem>>, %arg20: memref<2x64xf32, #tpu.memory_space<vmem>>, %arg21: memref<320x64xbf16, #tpu.memory_space<vmem>>, %arg22: memref<1x64xf32, #tpu.memory_space<vmem>>, %arg23: memref<64x512xbf16, #tpu.memory_space<vmem>>, %arg24: memref<1x512xf32, #tpu.memory_space<vmem>>, %arg25: memref<512x10xbf16, #tpu.memory_space<vmem>>, %arg26: memref<1x10xf32, #tpu.memory_space<vmem>>, %arg27: memref<2x10xf32, #tpu.memory_space<vmem>>, %arg28: memref<8x256xf32, #tpu.memory_space<vmem>>) attributes {dimension_semantics = [#tpu.dimension_semantics<arbitrary>], iteration_bounds = array<i64: 4>, scalar_prefetch = 0 : i64, scratch_operands = 1 : i64, tpu.core_type = #tpu.core_type<tc>, window_params = [{transform_indices = @transform_0, window_bounds = array<i64: 8, 512>}, {transform_indices = @transform_1, window_bounds = array<i64: 512, 256>}, {pipeline_mode = #tpu.pipeline_mode<synchronous>, transform_indices = @transform_2, window_bounds = array<i64: 1, 256>}, {pipeline_mode = #tpu.pipeline_mode<synchronous>, transform_indices = @transform_3, window_bounds = array<i64: 32, 4>}, {pipeline_mode = #tpu.pipeline_mode<synchronous>, transform_indices = @transform_4, window_bounds = array<i64: 4, 64, 256>}, {pipeline_mode = #tpu.pipeline_mode<synchronous>, transform_indices = @transform_5, window_bounds = array<i64: 2, 256>}, {pipeline_mode = #tpu.pipeline_mode<synchronous>, transform_indices = @transform_6, window_bounds = array<i64: 4, 32>}, {pipeline_mode = #tpu.pipeline_mode<synchronous>, transform_indices = @transform_7, window_bounds = array<i64: 2, 32>}, {pipeline_mode = #tpu.pipeline_mode<synchronous>, transform_indices = @transform_8, window_bounds = array<i64: 32, 64>}, {pipeline_mode = #tpu.pipeline_mode<synchronous>, transform_indices = @transform_9, window_bounds = array<i64: 2, 64>}, {pipeline_mode = #tpu.pipeline_mode<synchronous>, transform_indices = @transform_10, window_bounds = array<i64: 32, 32>}, {pipeline_mode = #tpu.pipeline_mode<synchronous>, transform_indices = @transform_11, window_bounds = array<i64: 128, 64>}, {pipeline_mode = #tpu.pipeline_mode<synchronous>, transform_indices = @transform_12, window_bounds = array<i64: 2, 64>}, {pipeline_mode = #tpu.pipeline_mode<synchronous>, transform_indices = @transform_13, window_bounds = array<i64: 64, 64>}, {pipeline_mode = #tpu.pipeline_mode<synchronous>, transform_indices = @transform_14, window_bounds = array<i64: 2, 64>}, {pipeline_mode = #tpu.pipeline_mode<synchronous>, transform_indices = @transform_15, window_bounds = array<i64: 4, 8, 32>}, {pipeline_mode = #tpu.pipeline_mode<synchronous>, transform_indices = @transform_16, window_bounds = array<i64: 256, 64>}, {pipeline_mode = #tpu.pipeline_mode<synchronous>, transform_indices = @transform_17, window_bounds = array<i64: 2, 64>}, {pipeline_mode = #tpu.pipeline_mode<synchronous>, transform_indices = @transform_18, window_bounds = array<i64: 64, 64>}, {pipeline_mode = #tpu.pipeline_mode<synchronous>, transform_indices = @transform_19, window_bounds = array<i64: 2, 64>}, {pipeline_mode = #tpu.pipeline_mode<synchronous>, transform_indices = @transform_20, window_bounds = array<i64: 320, 64>}, {pipeline_mode = #tpu.pipeline_mode<synchronous>, transform_indices = @transform_21, window_bounds = array<i64: 1, 64>}, {pipeline_mode = #tpu.pipeline_mode<synchronous>, transform_indices = @transform_22, window_bounds = array<i64: 64, 512>}, {pipeline_mode = #tpu.pipeline_mode<synchronous>, transform_indices = @transform_23, window_bounds = array<i64: 1, 512>}, {pipeline_mode = #tpu.pipeline_mode<synchronous>, transform_indices = @transform_24, window_bounds = array<i64: 512, 10>}, {pipeline_mode = #tpu.pipeline_mode<synchronous>, transform_indices = @transform_25, window_bounds = array<i64: 1, 10>}, {pipeline_mode = #tpu.pipeline_mode<synchronous>, transform_indices = @transform_26, window_bounds = array<i64: 2, 10>}]} {
    %c0_i32 = arith.constant 0 : i32
    %0 = arith.cmpi eq, %arg0, %c0_i32 : i32
    %1 = arith.extui %0 : i1 to i32
    %c0_i32_0 = arith.constant 0 : i32
    %2 = arith.cmpi ne, %1, %c0_i32_0 : i32
    scf.if %2 {
      %cst_9 = arith.constant 0.000000e+00 : f32
      %12 = vector.broadcast %cst_9 : f32 to vector<8x256xf32>
      %c0_10 = arith.constant 0 : index
      %c0_11 = arith.constant 0 : index
      %13 = vector.load %arg28[%c0_10, %c0_11] : memref<8x256xf32, #tpu.memory_space<vmem>>, vector<8x256xf32>
      tpu.vector_store %arg28[%c0_10, %c0_11], %12 {strides = array<i32>} : memref<8x256xf32, #tpu.memory_space<vmem>>, vector<8x256xf32>,
    } else {
    }
    %c0 = arith.constant 0 : index
    %c0_1 = arith.constant 0 : index
    %3 = vector.load %arg28[%c0, %c0_1] : memref<8x256xf32, #tpu.memory_space<vmem>>, vector<8x256xf32>
    %c0_2 = arith.constant 0 : index
    %c0_3 = arith.constant 0 : index
    %4 = vector.load %arg1[%c0_2, %c0_3] : memref<8x512xbf16, #tpu.memory_space<vmem>>, vector<8x512xbf16>
    %c0_4 = arith.constant 0 : index
    %c0_5 = arith.constant 0 : index
    %5 = vector.load %arg2[%c0_4, %c0_5] : memref<512x256xbf16, #tpu.memory_space<vmem>>, vector<512x256xbf16>
    %cst = arith.constant dense<0.000000e+00> : vector<8x256xf32>
    %6 = tpu.matmul %4, %5, %cst {dimension_numbers = #tpu.dot_dimension_numbers<[1], [0], [0], [1], [0, 0, 1, 1], [], []>} : vector<8x512xbf16>, vector<512x256xbf16>, vector<8x256xf32> -> vector<8x256xf32>
    %7 = arith.addf %3, %6 : vector<8x256xf32>
    %c0_6 = arith.constant 0 : index
    %c0_7 = arith.constant 0 : index
    %8 = vector.load %arg28[%c0_6, %c0_7] : memref<8x256xf32, #tpu.memory_space<vmem>>, vector<8x256xf32>
    tpu.vector_store %arg28[%c0_6, %c0_7], %7 {strides = array<i32>} : memref<8x256xf32, #tpu.memory_space<vmem>>, vector<8x256xf32>,
    %c3_i32 = arith.constant 3 : i32
    %9 = arith.cmpi eq, %arg0, %c3_i32 : i32
    %10 = arith.extui %9 : i1 to i32
    %c0_i32_8 = arith.constant 0 : i32
    %11 = arith.cmpi ne, %10, %c0_i32_8 : i32
    scf.if %11 {
      %c0_9 = arith.constant 0 : index
      %c0_10 = arith.constant 0 : index
      %12 = vector.load %arg28[%c0_9, %c0_10] : memref<8x256xf32, #tpu.memory_space<vmem>>, vector<8x256xf32>
      %c0_11 = arith.constant 0 : index
      %c0_12 = arith.constant 0 : index
      %13 = vector.load %arg3[%c0_11, %c0_12] : memref<1x256xf32, #tpu.memory_space<vmem>>, vector<1x256xf32>
      %14 = vector.broadcast %13 : vector<1x256xf32> to vector<8x256xf32>
      %15 = arith.addf %12, %14 : vector<8x256xf32>
      %16 = vector.extract_strided_slice %15 {offsets = [0, 0], sizes = [1, 256], strides = [1, 1]} : vector<8x256xf32> to vector<1x256xf32>
      %17 = vector.extract_strided_slice %15 {offsets = [4, 0], sizes = [1, 256], strides = [1, 1]} : vector<8x256xf32> to vector<1x256xf32>
      %18 = tpu.concatenate %16, %17 in 0 : vector<1x256xf32>, vector<1x256xf32> -> vector<2x256xf32>
      %19 = vector.extract_strided_slice %15 {offsets = [1, 0], sizes = [1, 256], strides = [1, 1]} : vector<8x256xf32> to vector<1x256xf32>
      %20 = vector.extract_strided_slice %15 {offsets = [5, 0], sizes = [1, 256], strides = [1, 1]} : vector<8x256xf32> to vector<1x256xf32>
      %21 = tpu.concatenate %19, %20 in 0 : vector<1x256xf32>, vector<1x256xf32> -> vector<2x256xf32>
      %22 = vector.extract_strided_slice %15 {offsets = [2, 0], sizes = [1, 256], strides = [1, 1]} : vector<8x256xf32> to vector<1x256xf32>
      %23 = vector.extract_strided_slice %15 {offsets = [6, 0], sizes = [1, 256], strides = [1, 1]} : vector<8x256xf32> to vector<1x256xf32>
      %24 = tpu.concatenate %22, %23 in 0 : vector<1x256xf32>, vector<1x256xf32> -> vector<2x256xf32>
      %25 = vector.extract_strided_slice %15 {offsets = [3, 0], sizes = [1, 256], strides = [1, 1]} : vector<8x256xf32> to vector<1x256xf32>
      %26 = vector.extract_strided_slice %15 {offsets = [7, 0], sizes = [1, 256], strides = [1, 1]} : vector<8x256xf32> to vector<1x256xf32>
      %27 = tpu.concatenate %25, %26 in 0 : vector<1x256xf32>, vector<1x256xf32> -> vector<2x256xf32>
      %c0_13 = arith.constant 0 : index
      %c0_14 = arith.constant 0 : index
      %28 = vector.load %arg6[%c0_13, %c0_14] : memref<2x256xf32, #tpu.memory_space<vmem>>, vector<2x256xf32>
      %cst_15 = arith.constant 0.000000e+00 : f32
      %29 = vector.broadcast %cst_15 : f32 to vector<2x256xf32>
      %cst_16 = arith.constant 0.000000e+00 : f32
      %30 = vector.broadcast %cst_16 : f32 to vector<2x256xf32>
      %31 = vector.extract_strided_slice %18 {offsets = [0, 0], sizes = [2, 64], strides = [1, 1]} : vector<2x256xf32> to vector<2x64xf32>
      %32 = arith.truncf %31 : vector<2x64xf32> to vector<2x64xbf16>
      %c0_17 = arith.constant 0 : index
      %c0_18 = arith.constant 0 : index
      %c0_19 = arith.constant 0 : index
      %33 = vector.load %arg5[%c0_17, %c0_18, %c0_19] : memref<4x64x256xbf16, #tpu.memory_space<vmem>>, vector<1x64x256xbf16>
      %34 = vector.shape_cast %33 : vector<1x64x256xbf16> to vector<64x256xbf16>
      %cst_20 = arith.constant dense<0.000000e+00> : vector<2x256xf32>
      %35 = tpu.matmul %32, %34, %cst_20 {dimension_numbers = #tpu.dot_dimension_numbers<[1], [0], [0], [1], [0, 0, 1, 1], [], []>} : vector<2x64xbf16>, vector<64x256xbf16>, vector<2x256xf32> -> vector<2x256xf32>
      %36 = arith.addf %30, %35 : vector<2x256xf32>
      %37 = vector.extract_strided_slice %21 {offsets = [0, 0], sizes = [2, 64], strides = [1, 1]} : vector<2x256xf32> to vector<2x64xf32>
      %38 = arith.truncf %37 : vector<2x64xf32> to vector<2x64xbf16>
      %c1 = arith.constant 1 : index
      %c0_21 = arith.constant 0 : index
      %c0_22 = arith.constant 0 : index
      %39 = vector.load %arg5[%c1, %c0_21, %c0_22] : memref<4x64x256xbf16, #tpu.memory_space<vmem>>, vector<1x64x256xbf16>
      %40 = vector.shape_cast %39 : vector<1x64x256xbf16> to vector<64x256xbf16>
      %cst_23 = arith.constant dense<0.000000e+00> : vector<2x256xf32>
      %41 = tpu.matmul %38, %40, %cst_23 {dimension_numbers = #tpu.dot_dimension_numbers<[1], [0], [0], [1], [0, 0, 1, 1], [], []>} : vector<2x64xbf16>, vector<64x256xbf16>, vector<2x256xf32> -> vector<2x256xf32>
      %42 = arith.addf %36, %41 : vector<2x256xf32>
      %43 = vector.extract_strided_slice %24 {offsets = [0, 0], sizes = [2, 64], strides = [1, 1]} : vector<2x256xf32> to vector<2x64xf32>
      %44 = arith.truncf %43 : vector<2x64xf32> to vector<2x64xbf16>
      %c2 = arith.constant 2 : index
      %c0_24 = arith.constant 0 : index
      %c0_25 = arith.constant 0 : index
      %45 = vector.load %arg5[%c2, %c0_24, %c0_25] : memref<4x64x256xbf16, #tpu.memory_space<vmem>>, vector<1x64x256xbf16>
      %46 = vector.shape_cast %45 : vector<1x64x256xbf16> to vector<64x256xbf16>
      %cst_26 = arith.constant dense<0.000000e+00> : vector<2x256xf32>
      %47 = tpu.matmul %44, %46, %cst_26 {dimension_numbers = #tpu.dot_dimension_numbers<[1], [0], [0], [1], [0, 0, 1, 1], [], []>} : vector<2x64xbf16>, vector<64x256xbf16>, vector<2x256xf32> -> vector<2x256xf32>
      %48 = arith.addf %42, %47 : vector<2x256xf32>
      %49 = vector.extract_strided_slice %27 {offsets = [0, 0], sizes = [2, 64], strides = [1, 1]} : vector<2x256xf32> to vector<2x64xf32>
      %50 = arith.truncf %49 : vector<2x64xf32> to vector<2x64xbf16>
      %c3 = arith.constant 3 : index
      %c0_27 = arith.constant 0 : index
      %c0_28 = arith.constant 0 : index
      %51 = vector.load %arg5[%c3, %c0_27, %c0_28] : memref<4x64x256xbf16, #tpu.memory_space<vmem>>, vector<1x64x256xbf16>
      %52 = vector.shape_cast %51 : vector<1x64x256xbf16> to vector<64x256xbf16>
      %cst_29 = arith.constant dense<0.000000e+00> : vector<2x256xf32>
      %53 = tpu.matmul %50, %52, %cst_29 {dimension_numbers = #tpu.dot_dimension_numbers<[1], [0], [0], [1], [0, 0, 1, 1], [], []>} : vector<2x64xbf16>, vector<64x256xbf16>, vector<2x256xf32> -> vector<2x256xf32>
      %54 = arith.addf %48, %53 : vector<2x256xf32>
      %55 = vector.extract_strided_slice %28 {offsets = [0, 0], sizes = [1, 256], strides = [1, 1]} : vector<2x256xf32> to vector<1x256xf32>
      %56 = vector.broadcast %55 : vector<1x256xf32> to vector<2x256xf32>
      %57 = arith.mulf %54, %56 : vector<2x256xf32>
      %58 = vector.extract_strided_slice %28 {offsets = [1, 0], sizes = [1, 256], strides = [1, 1]} : vector<2x256xf32> to vector<1x256xf32>
      %59 = vector.broadcast %58 : vector<1x256xf32> to vector<2x256xf32>
      %60 = arith.addf %57, %59 : vector<2x256xf32>
      %cst_30 = arith.constant 0.000000e+00 : f32
      %61 = vector.broadcast %cst_30 : f32 to vector<2x256xf32>
      %62 = arith.maximumf %60, %61 : vector<2x256xf32>
      %63 = arith.addf %29, %62 : vector<2x256xf32>
      %cst_31 = arith.constant 0.000000e+00 : f32
      %64 = vector.broadcast %cst_31 : f32 to vector<2x256xf32>
      %65 = vector.extract_strided_slice %18 {offsets = [0, 64], sizes = [2, 64], strides = [1, 1]} : vector<2x256xf32> to vector<2x64xf32>
      %66 = arith.truncf %65 : vector<2x64xf32> to vector<2x64xbf16>
      %c0_32 = arith.constant 0 : index
      %c0_33 = arith.constant 0 : index
      %c0_34 = arith.constant 0 : index
      %67 = vector.load %arg5[%c0_32, %c0_33, %c0_34] : memref<4x64x256xbf16, #tpu.memory_space<vmem>>, vector<1x64x256xbf16>
      %68 = vector.shape_cast %67 : vector<1x64x256xbf16> to vector<64x256xbf16>
      %cst_35 = arith.constant dense<0.000000e+00> : vector<2x256xf32>
      %69 = tpu.matmul %66, %68, %cst_35 {dimension_numbers = #tpu.dot_dimension_numbers<[1], [0], [0], [1], [0, 0, 1, 1], [], []>} : vector<2x64xbf16>, vector<64x256xbf16>, vector<2x256xf32> -> vector<2x256xf32>
      %70 = arith.addf %64, %69 : vector<2x256xf32>
      %71 = vector.extract_strided_slice %21 {offsets = [0, 64], sizes = [2, 64], strides = [1, 1]} : vector<2x256xf32> to vector<2x64xf32>
      %72 = arith.truncf %71 : vector<2x64xf32> to vector<2x64xbf16>
      %c1_36 = arith.constant 1 : index
      %c0_37 = arith.constant 0 : index
      %c0_38 = arith.constant 0 : index
      %73 = vector.load %arg5[%c1_36, %c0_37, %c0_38] : memref<4x64x256xbf16, #tpu.memory_space<vmem>>, vector<1x64x256xbf16>
      %74 = vector.shape_cast %73 : vector<1x64x256xbf16> to vector<64x256xbf16>
      %cst_39 = arith.constant dense<0.000000e+00> : vector<2x256xf32>
      %75 = tpu.matmul %72, %74, %cst_39 {dimension_numbers = #tpu.dot_dimension_numbers<[1], [0], [0], [1], [0, 0, 1, 1], [], []>} : vector<2x64xbf16>, vector<64x256xbf16>, vector<2x256xf32> -> vector<2x256xf32>
      %76 = arith.addf %70, %75 : vector<2x256xf32>
      %77 = vector.extract_strided_slice %24 {offsets = [0, 64], sizes = [2, 64], strides = [1, 1]} : vector<2x256xf32> to vector<2x64xf32>
      %78 = arith.truncf %77 : vector<2x64xf32> to vector<2x64xbf16>
      %c2_40 = arith.constant 2 : index
      %c0_41 = arith.constant 0 : index
      %c0_42 = arith.constant 0 : index
      %79 = vector.load %arg5[%c2_40, %c0_41, %c0_42] : memref<4x64x256xbf16, #tpu.memory_space<vmem>>, vector<1x64x256xbf16>
      %80 = vector.shape_cast %79 : vector<1x64x256xbf16> to vector<64x256xbf16>
      %cst_43 = arith.constant dense<0.000000e+00> : vector<2x256xf32>
      %81 = tpu.matmul %78, %80, %cst_43 {dimension_numbers = #tpu.dot_dimension_numbers<[1], [0], [0], [1], [0, 0, 1, 1], [], []>} : vector<2x64xbf16>, vector<64x256xbf16>, vector<2x256xf32> -> vector<2x256xf32>
      %82 = arith.addf %76, %81 : vector<2x256xf32>
      %83 = vector.extract_strided_slice %27 {offsets = [0, 64], sizes = [2, 64], strides = [1, 1]} : vector<2x256xf32> to vector<2x64xf32>
      %84 = arith.truncf %83 : vector<2x64xf32> to vector<2x64xbf16>
      %c3_44 = arith.constant 3 : index
      %c0_45 = arith.constant 0 : index
      %c0_46 = arith.constant 0 : index
      %85 = vector.load %arg5[%c3_44, %c0_45, %c0_46] : memref<4x64x256xbf16, #tpu.memory_space<vmem>>, vector<1x64x256xbf16>
      %86 = vector.shape_cast %85 : vector<1x64x256xbf16> to vector<64x256xbf16>
      %cst_47 = arith.constant dense<0.000000e+00> : vector<2x256xf32>
      %87 = tpu.matmul %84, %86, %cst_47 {dimension_numbers = #tpu.dot_dimension_numbers<[1], [0], [0], [1], [0, 0, 1, 1], [], []>} : vector<2x64xbf16>, vector<64x256xbf16>, vector<2x256xf32> -> vector<2x256xf32>
      %88 = arith.addf %82, %87 : vector<2x256xf32>
      %89 = vector.extract_strided_slice %28 {offsets = [0, 0], sizes = [1, 256], strides = [1, 1]} : vector<2x256xf32> to vector<1x256xf32>
      %90 = vector.broadcast %89 : vector<1x256xf32> to vector<2x256xf32>
      %91 = arith.mulf %88, %90 : vector<2x256xf32>
      %92 = vector.extract_strided_slice %28 {offsets = [1, 0], sizes = [1, 256], strides = [1, 1]} : vector<2x256xf32> to vector<1x256xf32>
      %93 = vector.broadcast %92 : vector<1x256xf32> to vector<2x256xf32>
      %94 = arith.addf %91, %93 : vector<2x256xf32>
      %cst_48 = arith.constant 0.000000e+00 : f32
      %95 = vector.broadcast %cst_48 : f32 to vector<2x256xf32>
      %96 = arith.maximumf %94, %95 : vector<2x256xf32>
      %97 = arith.addf %63, %96 : vector<2x256xf32>
      %cst_49 = arith.constant 0.000000e+00 : f32
      %98 = vector.broadcast %cst_49 : f32 to vector<2x256xf32>
      %99 = vector.extract_strided_slice %18 {offsets = [0, 128], sizes = [2, 64], strides = [1, 1]} : vector<2x256xf32> to vector<2x64xf32>
      %100 = arith.truncf %99 : vector<2x64xf32> to vector<2x64xbf16>
      %c0_50 = arith.constant 0 : index
      %c0_51 = arith.constant 0 : index
      %c0_52 = arith.constant 0 : index
      %101 = vector.load %arg5[%c0_50, %c0_51, %c0_52] : memref<4x64x256xbf16, #tpu.memory_space<vmem>>, vector<1x64x256xbf16>
      %102 = vector.shape_cast %101 : vector<1x64x256xbf16> to vector<64x256xbf16>
      %cst_53 = arith.constant dense<0.000000e+00> : vector<2x256xf32>
      %103 = tpu.matmul %100, %102, %cst_53 {dimension_numbers = #tpu.dot_dimension_numbers<[1], [0], [0], [1], [0, 0, 1, 1], [], []>} : vector<2x64xbf16>, vector<64x256xbf16>, vector<2x256xf32> -> vector<2x256xf32>
      %104 = arith.addf %98, %103 : vector<2x256xf32>
      %105 = vector.extract_strided_slice %21 {offsets = [0, 128], sizes = [2, 64], strides = [1, 1]} : vector<2x256xf32> to vector<2x64xf32>
      %106 = arith.truncf %105 : vector<2x64xf32> to vector<2x64xbf16>
      %c1_54 = arith.constant 1 : index
      %c0_55 = arith.constant 0 : index
      %c0_56 = arith.constant 0 : index
      %107 = vector.load %arg5[%c1_54, %c0_55, %c0_56] : memref<4x64x256xbf16, #tpu.memory_space<vmem>>, vector<1x64x256xbf16>
      %108 = vector.shape_cast %107 : vector<1x64x256xbf16> to vector<64x256xbf16>
      %cst_57 = arith.constant dense<0.000000e+00> : vector<2x256xf32>
      %109 = tpu.matmul %106, %108, %cst_57 {dimension_numbers = #tpu.dot_dimension_numbers<[1], [0], [0], [1], [0, 0, 1, 1], [], []>} : vector<2x64xbf16>, vector<64x256xbf16>, vector<2x256xf32> -> vector<2x256xf32>
      %110 = arith.addf %104, %109 : vector<2x256xf32>
      %111 = vector.extract_strided_slice %24 {offsets = [0, 128], sizes = [2, 64], strides = [1, 1]} : vector<2x256xf32> to vector<2x64xf32>
      %112 = arith.truncf %111 : vector<2x64xf32> to vector<2x64xbf16>
      %c2_58 = arith.constant 2 : index
      %c0_59 = arith.constant 0 : index
      %c0_60 = arith.constant 0 : index
      %113 = vector.load %arg5[%c2_58, %c0_59, %c0_60] : memref<4x64x256xbf16, #tpu.memory_space<vmem>>, vector<1x64x256xbf16>
      %114 = vector.shape_cast %113 : vector<1x64x256xbf16> to vector<64x256xbf16>
      %cst_61 = arith.constant dense<0.000000e+00> : vector<2x256xf32>
      %115 = tpu.matmul %112, %114, %cst_61 {dimension_numbers = #tpu.dot_dimension_numbers<[1], [0], [0], [1], [0, 0, 1, 1], [], []>} : vector<2x64xbf16>, vector<64x256xbf16>, vector<2x256xf32> -> vector<2x256xf32>
      %116 = arith.addf %110, %115 : vector<2x256xf32>
      %117 = vector.extract_strided_slice %27 {offsets = [0, 128], sizes = [2, 64], strides = [1, 1]} : vector<2x256xf32> to vector<2x64xf32>
      %118 = arith.truncf %117 : vector<2x64xf32> to vector<2x64xbf16>
      %c3_62 = arith.constant 3 : index
      %c0_63 = arith.constant 0 : index
      %c0_64 = arith.constant 0 : index
      %119 = vector.load %arg5[%c3_62, %c0_63, %c0_64] : memref<4x64x256xbf16, #tpu.memory_space<vmem>>, vector<1x64x256xbf16>
      %120 = vector.shape_cast %119 : vector<1x64x256xbf16> to vector<64x256xbf16>
      %cst_65 = arith.constant dense<0.000000e+00> : vector<2x256xf32>
      %121 = tpu.matmul %118, %120, %cst_65 {dimension_numbers = #tpu.dot_dimension_numbers<[1], [0], [0], [1], [0, 0, 1, 1], [], []>} : vector<2x64xbf16>, vector<64x256xbf16>, vector<2x256xf32> -> vector<2x256xf32>
      %122 = arith.addf %116, %121 : vector<2x256xf32>
      %123 = vector.extract_strided_slice %28 {offsets = [0, 0], sizes = [1, 256], strides = [1, 1]} : vector<2x256xf32> to vector<1x256xf32>
      %124 = vector.broadcast %123 : vector<1x256xf32> to vector<2x256xf32>
      %125 = arith.mulf %122, %124 : vector<2x256xf32>
      %126 = vector.extract_strided_slice %28 {offsets = [1, 0], sizes = [1, 256], strides = [1, 1]} : vector<2x256xf32> to vector<1x256xf32>
      %127 = vector.broadcast %126 : vector<1x256xf32> to vector<2x256xf32>
      %128 = arith.addf %125, %127 : vector<2x256xf32>
      %cst_66 = arith.constant 0.000000e+00 : f32
      %129 = vector.broadcast %cst_66 : f32 to vector<2x256xf32>
      %130 = arith.maximumf %128, %129 : vector<2x256xf32>
      %131 = arith.addf %97, %130 : vector<2x256xf32>
      %cst_67 = arith.constant 0.000000e+00 : f32
      %132 = vector.broadcast %cst_67 : f32 to vector<2x256xf32>
      %133 = vector.extract_strided_slice %18 {offsets = [0, 192], sizes = [2, 64], strides = [1, 1]} : vector<2x256xf32> to vector<2x64xf32>
      %134 = arith.truncf %133 : vector<2x64xf32> to vector<2x64xbf16>
      %c0_68 = arith.constant 0 : index
      %c0_69 = arith.constant 0 : index
      %c0_70 = arith.constant 0 : index
      %135 = vector.load %arg5[%c0_68, %c0_69, %c0_70] : memref<4x64x256xbf16, #tpu.memory_space<vmem>>, vector<1x64x256xbf16>
      %136 = vector.shape_cast %135 : vector<1x64x256xbf16> to vector<64x256xbf16>
      %cst_71 = arith.constant dense<0.000000e+00> : vector<2x256xf32>
      %137 = tpu.matmul %134, %136, %cst_71 {dimension_numbers = #tpu.dot_dimension_numbers<[1], [0], [0], [1], [0, 0, 1, 1], [], []>} : vector<2x64xbf16>, vector<64x256xbf16>, vector<2x256xf32> -> vector<2x256xf32>
      %138 = arith.addf %132, %137 : vector<2x256xf32>
      %139 = vector.extract_strided_slice %21 {offsets = [0, 192], sizes = [2, 64], strides = [1, 1]} : vector<2x256xf32> to vector<2x64xf32>
      %140 = arith.truncf %139 : vector<2x64xf32> to vector<2x64xbf16>
      %c1_72 = arith.constant 1 : index
      %c0_73 = arith.constant 0 : index
      %c0_74 = arith.constant 0 : index
      %141 = vector.load %arg5[%c1_72, %c0_73, %c0_74] : memref<4x64x256xbf16, #tpu.memory_space<vmem>>, vector<1x64x256xbf16>
      %142 = vector.shape_cast %141 : vector<1x64x256xbf16> to vector<64x256xbf16>
      %cst_75 = arith.constant dense<0.000000e+00> : vector<2x256xf32>
      %143 = tpu.matmul %140, %142, %cst_75 {dimension_numbers = #tpu.dot_dimension_numbers<[1], [0], [0], [1], [0, 0, 1, 1], [], []>} : vector<2x64xbf16>, vector<64x256xbf16>, vector<2x256xf32> -> vector<2x256xf32>
      %144 = arith.addf %138, %143 : vector<2x256xf32>
      %145 = vector.extract_strided_slice %24 {offsets = [0, 192], sizes = [2, 64], strides = [1, 1]} : vector<2x256xf32> to vector<2x64xf32>
      %146 = arith.truncf %145 : vector<2x64xf32> to vector<2x64xbf16>
      %c2_76 = arith.constant 2 : index
      %c0_77 = arith.constant 0 : index
      %c0_78 = arith.constant 0 : index
      %147 = vector.load %arg5[%c2_76, %c0_77, %c0_78] : memref<4x64x256xbf16, #tpu.memory_space<vmem>>, vector<1x64x256xbf16>
      %148 = vector.shape_cast %147 : vector<1x64x256xbf16> to vector<64x256xbf16>
      %cst_79 = arith.constant dense<0.000000e+00> : vector<2x256xf32>
      %149 = tpu.matmul %146, %148, %cst_79 {dimension_numbers = #tpu.dot_dimension_numbers<[1], [0], [0], [1], [0, 0, 1, 1], [], []>} : vector<2x64xbf16>, vector<64x256xbf16>, vector<2x256xf32> -> vector<2x256xf32>
      %150 = arith.addf %144, %149 : vector<2x256xf32>
      %151 = vector.extract_strided_slice %27 {offsets = [0, 192], sizes = [2, 64], strides = [1, 1]} : vector<2x256xf32> to vector<2x64xf32>
      %152 = arith.truncf %151 : vector<2x64xf32> to vector<2x64xbf16>
      %c3_80 = arith.constant 3 : index
      %c0_81 = arith.constant 0 : index
      %c0_82 = arith.constant 0 : index
      %153 = vector.load %arg5[%c3_80, %c0_81, %c0_82] : memref<4x64x256xbf16, #tpu.memory_space<vmem>>, vector<1x64x256xbf16>
      %154 = vector.shape_cast %153 : vector<1x64x256xbf16> to vector<64x256xbf16>
      %cst_83 = arith.constant dense<0.000000e+00> : vector<2x256xf32>
      %155 = tpu.matmul %152, %154, %cst_83 {dimension_numbers = #tpu.dot_dimension_numbers<[1], [0], [0], [1], [0, 0, 1, 1], [], []>} : vector<2x64xbf16>, vector<64x256xbf16>, vector<2x256xf32> -> vector<2x256xf32>
      %156 = arith.addf %150, %155 : vector<2x256xf32>
      %157 = vector.extract_strided_slice %28 {offsets = [0, 0], sizes = [1, 256], strides = [1, 1]} : vector<2x256xf32> to vector<1x256xf32>
      %158 = vector.broadcast %157 : vector<1x256xf32> to vector<2x256xf32>
      %159 = arith.mulf %156, %158 : vector<2x256xf32>
      %160 = vector.extract_strided_slice %28 {offsets = [1, 0], sizes = [1, 256], strides = [1, 1]} : vector<2x256xf32> to vector<1x256xf32>
      %161 = vector.broadcast %160 : vector<1x256xf32> to vector<2x256xf32>
      %162 = arith.addf %159, %161 : vector<2x256xf32>
      %cst_84 = arith.constant 0.000000e+00 : f32
      %163 = vector.broadcast %cst_84 : f32 to vector<2x256xf32>
      %164 = arith.maximumf %162, %163 : vector<2x256xf32>
      %165 = arith.addf %131, %164 : vector<2x256xf32>
      %cst_85 = arith.constant 2.500000e-01 : f32
      %166 = vector.broadcast %cst_85 : f32 to vector<2x256xf32>
      %167 = arith.mulf %165, %166 : vector<2x256xf32>
      %c0_86 = arith.constant 0 : index
      %c0_87 = arith.constant 0 : index
      %168 = vector.load %arg4[%c0_86, %c0_87] : memref<32x4xf32, #tpu.memory_space<vmem>>, vector<32x4xf32>
      %c0_88 = arith.constant 0 : index
      %c0_89 = arith.constant 0 : index
      %169 = vector.load %arg8[%c0_88, %c0_89] : memref<2x32xf32, #tpu.memory_space<vmem>>, vector<2x32xf32>
      %170 = arith.truncf %168 : vector<32x4xf32> to vector<32x4xbf16>
      %c0_90 = arith.constant 0 : index
      %c0_91 = arith.constant 0 : index
      %171 = vector.load %arg7[%c0_90, %c0_91] : memref<4x32xbf16, #tpu.memory_space<vmem>>, vector<4x32xbf16>
      %cst_92 = arith.constant dense<0.000000e+00> : vector<32x32xf32>
      %172 = tpu.matmul %170, %171, %cst_92 {dimension_numbers = #tpu.dot_dimension_numbers<[1], [0], [0], [1], [0, 0, 1, 1], [], []>} : vector<32x4xbf16>, vector<4x32xbf16>, vector<32x32xf32> -> vector<32x32xf32>
      %173 = vector.extract_strided_slice %169 {offsets = [0, 0], sizes = [1, 32], strides = [1, 1]} : vector<2x32xf32> to vector<1x32xf32>
      %174 = vector.broadcast %173 : vector<1x32xf32> to vector<32x32xf32>
      %175 = arith.mulf %172, %174 : vector<32x32xf32>
      %176 = vector.extract_strided_slice %169 {offsets = [1, 0], sizes = [1, 32], strides = [1, 1]} : vector<2x32xf32> to vector<1x32xf32>
      %177 = vector.broadcast %176 : vector<1x32xf32> to vector<32x32xf32>
      %178 = arith.addf %175, %177 : vector<32x32xf32>
      %cst_93 = arith.constant 0.000000e+00 : f32
      %179 = vector.broadcast %cst_93 : f32 to vector<32x32xf32>
      %180 = arith.maximumf %178, %179 : vector<32x32xf32>
      %c0_94 = arith.constant 0 : index
      %c0_95 = arith.constant 0 : index
      %181 = vector.load %arg10[%c0_94, %c0_95] : memref<2x64xf32, #tpu.memory_space<vmem>>, vector<2x64xf32>
      %182 = arith.truncf %180 : vector<32x32xf32> to vector<32x32xbf16>
      %c0_96 = arith.constant 0 : index
      %c0_97 = arith.constant 0 : index
      %183 = vector.load %arg9[%c0_96, %c0_97] : memref<32x64xbf16, #tpu.memory_space<vmem>>, vector<32x64xbf16>
      %cst_98 = arith.constant dense<0.000000e+00> : vector<32x64xf32>
      %184 = tpu.matmul %182, %183, %cst_98 {dimension_numbers = #tpu.dot_dimension_numbers<[1], [0], [0], [1], [0, 0, 1, 1], [], []>} : vector<32x32xbf16>, vector<32x64xbf16>, vector<32x64xf32> -> vector<32x64xf32>
      %185 = vector.extract_strided_slice %181 {offsets = [0, 0], sizes = [1, 64], strides = [1, 1]} : vector<2x64xf32> to vector<1x64xf32>
      %186 = vector.broadcast %185 : vector<1x64xf32> to vector<32x64xf32>
      %187 = arith.mulf %184, %186 : vector<32x64xf32>
      %188 = vector.extract_strided_slice %181 {offsets = [1, 0], sizes = [1, 64], strides = [1, 1]} : vector<2x64xf32> to vector<1x64xf32>
      %189 = vector.broadcast %188 : vector<1x64xf32> to vector<32x64xf32>
      %190 = arith.addf %187, %189 : vector<32x64xf32>
      %cst_99 = arith.constant 0.000000e+00 : f32
      %191 = vector.broadcast %cst_99 : f32 to vector<32x64xf32>
      %192 = arith.maximumf %190, %191 : vector<32x64xf32>
      %c0_100 = arith.constant 0 : index
      %c0_101 = arith.constant 0 : index
      %193 = vector.load %arg11[%c0_100, %c0_101] : memref<32x32xbf16, #tpu.memory_space<vmem>>, vector<32x32xbf16>
      %194 = arith.truncf %192 : vector<32x64xf32> to vector<32x64xbf16>
      %cst_102 = arith.constant dense<0.000000e+00> : vector<32x64xf32>
      %195 = tpu.matmul %193, %194, %cst_102 {dimension_numbers = #tpu.dot_dimension_numbers<[1], [0], [0], [1], [0, 0, 1, 1], [], []>} : vector<32x32xbf16>, vector<32x64xbf16>, vector<32x64xf32> -> vector<32x64xf32>
      %cst_103 = arith.constant 0.333333343 : f32
      %196 = vector.broadcast %cst_103 : f32 to vector<32x64xf32>
      %197 = arith.mulf %195, %196 : vector<32x64xf32>
      %198 = tpu.concatenate %192, %197 in 1 : vector<32x64xf32>, vector<32x64xf32> -> vector<32x128xf32>
      %c0_104 = arith.constant 0 : index
      %c0_105 = arith.constant 0 : index
      %199 = vector.load %arg13[%c0_104, %c0_105] : memref<2x64xf32, #tpu.memory_space<vmem>>, vector<2x64xf32>
      %200 = arith.truncf %198 : vector<32x128xf32> to vector<32x128xbf16>
      %c0_106 = arith.constant 0 : index
      %c0_107 = arith.constant 0 : index
      %201 = vector.load %arg12[%c0_106, %c0_107] : memref<128x64xbf16, #tpu.memory_space<vmem>>, vector<128x64xbf16>
      %cst_108 = arith.constant dense<0.000000e+00> : vector<32x64xf32>
      %202 = tpu.matmul %200, %201, %cst_108 {dimension_numbers = #tpu.dot_dimension_numbers<[1], [0], [0], [1], [0, 0, 1, 1], [], []>} : vector<32x128xbf16>, vector<128x64xbf16>, vector<32x64xf32> -> vector<32x64xf32>
      %203 = vector.extract_strided_slice %199 {offsets = [0, 0], sizes = [1, 64], strides = [1, 1]} : vector<2x64xf32> to vector<1x64xf32>
      %204 = vector.broadcast %203 : vector<1x64xf32> to vector<32x64xf32>
      %205 = arith.mulf %202, %204 : vector<32x64xf32>
      %206 = vector.extract_strided_slice %199 {offsets = [1, 0], sizes = [1, 64], strides = [1, 1]} : vector<2x64xf32> to vector<1x64xf32>
      %207 = vector.broadcast %206 : vector<1x64xf32> to vector<32x64xf32>
      %208 = arith.addf %205, %207 : vector<32x64xf32>
      %cst_109 = arith.constant 0.000000e+00 : f32
      %209 = vector.broadcast %cst_109 : f32 to vector<32x64xf32>
      %210 = arith.maximumf %208, %209 : vector<32x64xf32>
      %c0_110 = arith.constant 0 : index
      %c0_111 = arith.constant 0 : index
      %211 = vector.load %arg15[%c0_110, %c0_111] : memref<2x64xf32, #tpu.memory_space<vmem>>, vector<2x64xf32>
      %212 = arith.truncf %210 : vector<32x64xf32> to vector<32x64xbf16>
      %c0_112 = arith.constant 0 : index
      %c0_113 = arith.constant 0 : index
      %213 = vector.load %arg14[%c0_112, %c0_113] : memref<64x64xbf16, #tpu.memory_space<vmem>>, vector<64x64xbf16>
      %cst_114 = arith.constant dense<0.000000e+00> : vector<32x64xf32>
      %214 = tpu.matmul %212, %213, %cst_114 {dimension_numbers = #tpu.dot_dimension_numbers<[1], [0], [0], [1], [0, 0, 1, 1], [], []>} : vector<32x64xbf16>, vector<64x64xbf16>, vector<32x64xf32> -> vector<32x64xf32>
      %215 = vector.extract_strided_slice %211 {offsets = [0, 0], sizes = [1, 64], strides = [1, 1]} : vector<2x64xf32> to vector<1x64xf32>
      %216 = vector.broadcast %215 : vector<1x64xf32> to vector<32x64xf32>
      %217 = arith.mulf %214, %216 : vector<32x64xf32>
      %218 = vector.extract_strided_slice %211 {offsets = [1, 0], sizes = [1, 64], strides = [1, 1]} : vector<2x64xf32> to vector<1x64xf32>
      %219 = vector.broadcast %218 : vector<1x64xf32> to vector<32x64xf32>
      %220 = arith.addf %217, %219 : vector<32x64xf32>
      %cst_115 = arith.constant 0.000000e+00 : f32
      %221 = vector.broadcast %cst_115 : f32 to vector<32x64xf32>
      %222 = arith.maximumf %220, %221 : vector<32x64xf32>
      %223 = arith.truncf %222 : vector<32x64xf32> to vector<32x64xbf16>
      %c0_116 = arith.constant 0 : index
      %c0_117 = arith.constant 0 : index
      %c0_118 = arith.constant 0 : index
      %224 = vector.load %arg16[%c0_116, %c0_117, %c0_118] : memref<4x8x32xbf16, #tpu.memory_space<vmem>>, vector<1x8x32xbf16>
      %225 = vector.shape_cast %224 : vector<1x8x32xbf16> to vector<8x32xbf16>
      %cst_119 = arith.constant dense<0.000000e+00> : vector<8x64xf32>
      %226 = tpu.matmul %225, %223, %cst_119 {dimension_numbers = #tpu.dot_dimension_numbers<[1], [0], [0], [1], [0, 0, 1, 1], [], []>} : vector<8x32xbf16>, vector<32x64xbf16>, vector<8x64xf32> -> vector<8x64xf32>
      %c1_120 = arith.constant 1 : index
      %c0_121 = arith.constant 0 : index
      %c0_122 = arith.constant 0 : index
      %227 = vector.load %arg16[%c1_120, %c0_121, %c0_122] : memref<4x8x32xbf16, #tpu.memory_space<vmem>>, vector<1x8x32xbf16>
      %228 = vector.shape_cast %227 : vector<1x8x32xbf16> to vector<8x32xbf16>
      %cst_123 = arith.constant dense<0.000000e+00> : vector<8x64xf32>
      %229 = tpu.matmul %228, %223, %cst_123 {dimension_numbers = #tpu.dot_dimension_numbers<[1], [0], [0], [1], [0, 0, 1, 1], [], []>} : vector<8x32xbf16>, vector<32x64xbf16>, vector<8x64xf32> -> vector<8x64xf32>
      %c2_124 = arith.constant 2 : index
      %c0_125 = arith.constant 0 : index
      %c0_126 = arith.constant 0 : index
      %230 = vector.load %arg16[%c2_124, %c0_125, %c0_126] : memref<4x8x32xbf16, #tpu.memory_space<vmem>>, vector<1x8x32xbf16>
      %231 = vector.shape_cast %230 : vector<1x8x32xbf16> to vector<8x32xbf16>
      %cst_127 = arith.constant dense<0.000000e+00> : vector<8x64xf32>
      %232 = tpu.matmul %231, %223, %cst_127 {dimension_numbers = #tpu.dot_dimension_numbers<[1], [0], [0], [1], [0, 0, 1, 1], [], []>} : vector<8x32xbf16>, vector<32x64xbf16>, vector<8x64xf32> -> vector<8x64xf32>
      %c3_128 = arith.constant 3 : index
      %c0_129 = arith.constant 0 : index
      %c0_130 = arith.constant 0 : index
      %233 = vector.load %arg16[%c3_128, %c0_129, %c0_130] : memref<4x8x32xbf16, #tpu.memory_space<vmem>>, vector<1x8x32xbf16>
      %234 = vector.shape_cast %233 : vector<1x8x32xbf16> to vector<8x32xbf16>
      %cst_131 = arith.constant dense<0.000000e+00> : vector<8x64xf32>
      %235 = tpu.matmul %234, %223, %cst_131 {dimension_numbers = #tpu.dot_dimension_numbers<[1], [0], [0], [1], [0, 0, 1, 1], [], []>} : vector<8x32xbf16>, vector<32x64xbf16>, vector<8x64xf32> -> vector<8x64xf32>
      %236 = tpu.concatenate %226, %229, %232, %235 in 1 : vector<8x64xf32>, vector<8x64xf32>, vector<8x64xf32>, vector<8x64xf32> -> vector<8x256xf32>
      %c0_132 = arith.constant 0 : index
      %c0_133 = arith.constant 0 : index
      %237 = vector.load %arg18[%c0_132, %c0_133] : memref<2x64xf32, #tpu.memory_space<vmem>>, vector<2x64xf32>
      %238 = arith.truncf %236 : vector<8x256xf32> to vector<8x256xbf16>
      %c0_134 = arith.constant 0 : index
      %c0_135 = arith.constant 0 : index
      %239 = vector.load %arg17[%c0_134, %c0_135] : memref<256x64xbf16, #tpu.memory_space<vmem>>, vector<256x64xbf16>
      %cst_136 = arith.constant dense<0.000000e+00> : vector<8x64xf32>
      %240 = tpu.matmul %238, %239, %cst_136 {dimension_numbers = #tpu.dot_dimension_numbers<[1], [0], [0], [1], [0, 0, 1, 1], [], []>} : vector<8x256xbf16>, vector<256x64xbf16>, vector<8x64xf32> -> vector<8x64xf32>
      %241 = vector.extract_strided_slice %237 {offsets = [0, 0], sizes = [1, 64], strides = [1, 1]} : vector<2x64xf32> to vector<1x64xf32>
      %242 = vector.broadcast %241 : vector<1x64xf32> to vector<8x64xf32>
      %243 = arith.mulf %240, %242 : vector<8x64xf32>
      %244 = vector.extract_strided_slice %237 {offsets = [1, 0], sizes = [1, 64], strides = [1, 1]} : vector<2x64xf32> to vector<1x64xf32>
      %245 = vector.broadcast %244 : vector<1x64xf32> to vector<8x64xf32>
      %246 = arith.addf %243, %245 : vector<8x64xf32>
      %cst_137 = arith.constant 0.000000e+00 : f32
      %247 = vector.broadcast %cst_137 : f32 to vector<8x64xf32>
      %248 = arith.maximumf %246, %247 : vector<8x64xf32>
      %c0_138 = arith.constant 0 : index
      %c0_139 = arith.constant 0 : index
      %249 = vector.load %arg20[%c0_138, %c0_139] : memref<2x64xf32, #tpu.memory_space<vmem>>, vector<2x64xf32>
      %250 = arith.truncf %248 : vector<8x64xf32> to vector<8x64xbf16>
      %c0_140 = arith.constant 0 : index
      %c0_141 = arith.constant 0 : index
      %251 = vector.load %arg19[%c0_140, %c0_141] : memref<64x64xbf16, #tpu.memory_space<vmem>>, vector<64x64xbf16>
      %cst_142 = arith.constant dense<0.000000e+00> : vector<8x64xf32>
      %252 = tpu.matmul %250, %251, %cst_142 {dimension_numbers = #tpu.dot_dimension_numbers<[1], [0], [0], [1], [0, 0, 1, 1], [], []>} : vector<8x64xbf16>, vector<64x64xbf16>, vector<8x64xf32> -> vector<8x64xf32>
      %253 = vector.extract_strided_slice %249 {offsets = [0, 0], sizes = [1, 64], strides = [1, 1]} : vector<2x64xf32> to vector<1x64xf32>
      %254 = vector.broadcast %253 : vector<1x64xf32> to vector<8x64xf32>
      %255 = arith.mulf %252, %254 : vector<8x64xf32>
      %256 = vector.extract_strided_slice %249 {offsets = [1, 0], sizes = [1, 64], strides = [1, 1]} : vector<2x64xf32> to vector<1x64xf32>
      %257 = vector.broadcast %256 : vector<1x64xf32> to vector<8x64xf32>
      %258 = arith.addf %255, %257 : vector<8x64xf32>
      %cst_143 = arith.constant 0.000000e+00 : f32
      %259 = vector.broadcast %cst_143 : f32 to vector<8x64xf32>
      %260 = arith.maximumf %258, %259 : vector<8x64xf32>
      %261 = vector.extract_strided_slice %260 {offsets = [0, 0], sizes = [4, 64], strides = [1, 1]} : vector<8x64xf32> to vector<4x64xf32>
      %cst_144 = arith.constant dense<0.000000e+00> : vector<64xf32>
      %262 = vector.multi_reduction <add>, %261, %cst_144 [0] : vector<4x64xf32> to vector<64xf32>
      %263 = vector.shape_cast %262 : vector<64xf32> to vector<1x64xf32>
      %cst_145 = arith.constant 4.000000e+00 : f32
      %264 = vector.broadcast %cst_145 : f32 to vector<1x64xf32>
      %265 = arith.divf %263, %264 : vector<1x64xf32>
      %266 = vector.extract_strided_slice %260 {offsets = [4, 0], sizes = [4, 64], strides = [1, 1]} : vector<8x64xf32> to vector<4x64xf32>
      %cst_146 = arith.constant dense<0.000000e+00> : vector<64xf32>
      %267 = vector.multi_reduction <add>, %266, %cst_146 [0] : vector<4x64xf32> to vector<64xf32>
      %268 = vector.shape_cast %267 : vector<64xf32> to vector<1x64xf32>
      %cst_147 = arith.constant 4.000000e+00 : f32
      %269 = vector.broadcast %cst_147 : f32 to vector<1x64xf32>
      %270 = arith.divf %268, %269 : vector<1x64xf32>
      %271 = tpu.concatenate %265, %270 in 0 : vector<1x64xf32>, vector<1x64xf32> -> vector<2x64xf32>
      %272 = tpu.concatenate %167, %271 in 1 : vector<2x256xf32>, vector<2x64xf32> -> vector<2x320xf32>
      %273 = arith.truncf %272 : vector<2x320xf32> to vector<2x320xbf16>
      %c0_148 = arith.constant 0 : index
      %c0_149 = arith.constant 0 : index
      %274 = vector.load %arg21[%c0_148, %c0_149] : memref<320x64xbf16, #tpu.memory_space<vmem>>, vector<320x64xbf16>
      %cst_150 = arith.constant dense<0.000000e+00> : vector<2x64xf32>
      %275 = tpu.matmul %273, %274, %cst_150 {dimension_numbers = #tpu.dot_dimension_numbers<[1], [0], [0], [1], [0, 0, 1, 1], [], []>} : vector<2x320xbf16>, vector<320x64xbf16>, vector<2x64xf32> -> vector<2x64xf32>
      %c0_151 = arith.constant 0 : index
      %c0_152 = arith.constant 0 : index
      %276 = vector.load %arg22[%c0_151, %c0_152] : memref<1x64xf32, #tpu.memory_space<vmem>>, vector<1x64xf32>
      %277 = vector.broadcast %276 : vector<1x64xf32> to vector<2x64xf32>
      %278 = arith.addf %275, %277 : vector<2x64xf32>
      %cst_153 = arith.constant 0.000000e+00 : f32
      %279 = vector.broadcast %cst_153 : f32 to vector<2x64xf32>
      %280 = arith.maximumf %278, %279 : vector<2x64xf32>
      %281 = arith.truncf %280 : vector<2x64xf32> to vector<2x64xbf16>
      %c0_154 = arith.constant 0 : index
      %c0_155 = arith.constant 0 : index
      %282 = vector.load %arg23[%c0_154, %c0_155] : memref<64x512xbf16, #tpu.memory_space<vmem>>, vector<64x512xbf16>
      %cst_156 = arith.constant dense<0.000000e+00> : vector<2x512xf32>
      %283 = tpu.matmul %281, %282, %cst_156 {dimension_numbers = #tpu.dot_dimension_numbers<[1], [0], [0], [1], [0, 0, 1, 1], [], []>} : vector<2x64xbf16>, vector<64x512xbf16>, vector<2x512xf32> -> vector<2x512xf32>
      %c0_157 = arith.constant 0 : index
      %c0_158 = arith.constant 0 : index
      %284 = vector.load %arg24[%c0_157, %c0_158] : memref<1x512xf32, #tpu.memory_space<vmem>>, vector<1x512xf32>
      %285 = vector.broadcast %284 : vector<1x512xf32> to vector<2x512xf32>
      %286 = arith.addf %283, %285 : vector<2x512xf32>
      %cst_159 = arith.constant 0.000000e+00 : f32
      %287 = vector.broadcast %cst_159 : f32 to vector<2x512xf32>
      %288 = arith.maximumf %286, %287 : vector<2x512xf32>
      %289 = arith.truncf %288 : vector<2x512xf32> to vector<2x512xbf16>
      %c0_160 = arith.constant 0 : index
      %c0_161 = arith.constant 0 : index
      %290 = vector.load %arg25[%c0_160, %c0_161] : memref<512x10xbf16, #tpu.memory_space<vmem>>, vector<512x10xbf16>
      %cst_162 = arith.constant dense<0.000000e+00> : vector<2x10xf32>
      %291 = tpu.matmul %289, %290, %cst_162 {dimension_numbers = #tpu.dot_dimension_numbers<[1], [0], [0], [1], [0, 0, 1, 1], [], []>} : vector<2x512xbf16>, vector<512x10xbf16>, vector<2x10xf32> -> vector<2x10xf32>
      %c0_163 = arith.constant 0 : index
      %c0_164 = arith.constant 0 : index
      %292 = vector.load %arg26[%c0_163, %c0_164] : memref<1x10xf32, #tpu.memory_space<vmem>>, vector<1x10xf32>
      %293 = vector.broadcast %292 : vector<1x10xf32> to vector<2x10xf32>
      %294 = arith.addf %291, %293 : vector<2x10xf32>
      %c0_165 = arith.constant 0 : index
      %c0_166 = arith.constant 0 : index
      %295 = vector.load %arg27[%c0_165, %c0_166] : memref<2x10xf32, #tpu.memory_space<vmem>>, vector<2x10xf32>
      tpu.vector_store %arg27[%c0_165, %c0_166], %294 {strides = array<i32>} : memref<2x10xf32, #tpu.memory_space<vmem>>, vector<2x10xf32>,
    } else {
    }
    return
  }
  func.func @transform_0(%arg0: i32) -> (i32, i32) {
    %c0_i32 = arith.constant 0 : i32
    %c0_i32_0 = arith.constant 0 : i32
    return %c0_i32, %arg0 : i32, i32
  }
  func.func @transform_1(%arg0: i32) -> (i32, i32) {
    %c0_i32 = arith.constant 0 : i32
    %c0_i32_0 = arith.constant 0 : i32
    return %arg0, %c0_i32 : i32, i32
  }
  func.func @transform_2(%arg0: i32) -> (i32, i32) {
    %c0_i32 = arith.constant 0 : i32
    %c0_i32_0 = arith.constant 0 : i32
    %c0_i32_1 = arith.constant 0 : i32
    return %c0_i32, %c0_i32_0 : i32, i32
  }
  func.func @transform_3(%arg0: i32) -> (i32, i32) {
    %c0_i32 = arith.constant 0 : i32
    %c0_i32_0 = arith.constant 0 : i32
    %c0_i32_1 = arith.constant 0 : i32
    return %c0_i32, %c0_i32_0 : i32, i32
  }
  func.func @transform_4(%arg0: i32) -> (i32, i32, i32) {
    %c0_i32 = arith.constant 0 : i32
    %c0_i32_0 = arith.constant 0 : i32
    %c0_i32_1 = arith.constant 0 : i32
    %c0_i32_2 = arith.constant 0 : i32
    return %c0_i32, %c0_i32_0, %c0_i32_1 : i32, i32, i32
  }
  func.func @transform_5(%arg0: i32) -> (i32, i32) {
    %c0_i32 = arith.constant 0 : i32
    %c0_i32_0 = arith.constant 0 : i32
    %c0_i32_1 = arith.constant 0 : i32
    return %c0_i32, %c0_i32_0 : i32, i32
  }
  func.func @transform_6(%arg0: i32) -> (i32, i32) {
    %c0_i32 = arith.constant 0 : i32
    %c0_i32_0 = arith.constant 0 : i32
    %c0_i32_1 = arith.constant 0 : i32
    return %c0_i32, %c0_i32_0 : i32, i32
  }
  func.func @transform_7(%arg0: i32) -> (i32, i32) {
    %c0_i32 = arith.constant 0 : i32
    %c0_i32_0 = arith.constant 0 : i32
    %c0_i32_1 = arith.constant 0 : i32
    return %c0_i32, %c0_i32_0 : i32, i32
  }
  func.func @transform_8(%arg0: i32) -> (i32, i32) {
    %c0_i32 = arith.constant 0 : i32
    %c0_i32_0 = arith.constant 0 : i32
    %c0_i32_1 = arith.constant 0 : i32
    return %c0_i32, %c0_i32_0 : i32, i32
  }
  func.func @transform_9(%arg0: i32) -> (i32, i32) {
    %c0_i32 = arith.constant 0 : i32
    %c0_i32_0 = arith.constant 0 : i32
    %c0_i32_1 = arith.constant 0 : i32
    return %c0_i32, %c0_i32_0 : i32, i32
  }
  func.func @transform_10(%arg0: i32) -> (i32, i32) {
    %c0_i32 = arith.constant 0 : i32
    %c0_i32_0 = arith.constant 0 : i32
    %c0_i32_1 = arith.constant 0 : i32
    return %c0_i32, %c0_i32_0 : i32, i32
  }
  func.func @transform_11(%arg0: i32) -> (i32, i32) {
    %c0_i32 = arith.constant 0 : i32
    %c0_i32_0 = arith.constant 0 : i32
    %c0_i32_1 = arith.constant 0 : i32
    return %c0_i32, %c0_i32_0 : i32, i32
  }
  func.func @transform_12(%arg0: i32) -> (i32, i32) {
    %c0_i32 = arith.constant 0 : i32
    %c0_i32_0 = arith.constant 0 : i32
    %c0_i32_1 = arith.constant 0 : i32
    return %c0_i32, %c0_i32_0 : i32, i32
  }
  func.func @transform_13(%arg0: i32) -> (i32, i32) {
    %c0_i32 = arith.constant 0 : i32
    %c0_i32_0 = arith.constant 0 : i32
    %c0_i32_1 = arith.constant 0 : i32
    return %c0_i32, %c0_i32_0 : i32, i32
  }
  func.func @transform_14(%arg0: i32) -> (i32, i32) {
    %c0_i32 = arith.constant 0 : i32
    %c0_i32_0 = arith.constant 0 : i32
    %c0_i32_1 = arith.constant 0 : i32
    return %c0_i32, %c0_i32_0 : i32, i32
  }
  func.func @transform_15(%arg0: i32) -> (i32, i32, i32) {
    %c0_i32 = arith.constant 0 : i32
    %c0_i32_0 = arith.constant 0 : i32
    %c0_i32_1 = arith.constant 0 : i32
    %c0_i32_2 = arith.constant 0 : i32
    return %c0_i32, %c0_i32_0, %c0_i32_1 : i32, i32, i32
  }
  func.func @transform_16(%arg0: i32) -> (i32, i32) {
    %c0_i32 = arith.constant 0 : i32
    %c0_i32_0 = arith.constant 0 : i32
    %c0_i32_1 = arith.constant 0 : i32
    return %c0_i32, %c0_i32_0 : i32, i32
  }
  func.func @transform_17(%arg0: i32) -> (i32, i32) {
    %c0_i32 = arith.constant 0 : i32
    %c0_i32_0 = arith.constant 0 : i32
    %c0_i32_1 = arith.constant 0 : i32
    return %c0_i32, %c0_i32_0 : i32, i32
  }
  func.func @transform_18(%arg0: i32) -> (i32, i32) {
    %c0_i32 = arith.constant 0 : i32
    %c0_i32_0 = arith.constant 0 : i32
    %c0_i32_1 = arith.constant 0 : i32
    return %c0_i32, %c0_i32_0 : i32, i32
  }
  func.func @transform_19(%arg0: i32) -> (i32, i32) {
    %c0_i32 = arith.constant 0 : i32
    %c0_i32_0 = arith.constant 0 : i32
    %c0_i32_1 = arith.constant 0 : i32
    return %c0_i32, %c0_i32_0 : i32, i32
  }
  func.func @transform_20(%arg0: i32) -> (i32, i32) {
    %c0_i32 = arith.constant 0 : i32
    %c0_i32_0 = arith.constant 0 : i32
    %c0_i32_1 = arith.constant 0 : i32
    return %c0_i32, %c0_i32_0 : i32, i32
  }
  func.func @transform_21(%arg0: i32) -> (i32, i32) {
    %c0_i32 = arith.constant 0 : i32
    %c0_i32_0 = arith.constant 0 : i32
    %c0_i32_1 = arith.constant 0 : i32
    return %c0_i32, %c0_i32_0 : i32, i32
  }
  func.func @transform_22(%arg0: i32) -> (i32, i32) {
    %c0_i32 = arith.constant 0 : i32
    %c0_i32_0 = arith.constant 0 : i32
    %c0_i32_1 = arith.constant 0 : i32
    return %c0_i32, %c0_i32_0 : i32, i32
  }
  func.func @transform_23(%arg0: i32) -> (i32, i32) {
    %c0_i32 = arith.constant 0 : i32
    %c0_i32_0 = arith.constant 0 : i32
    %c0_i32_1 = arith.constant 0 : i32
    return %c0_i32, %c0_i32_0 : i32, i32
  }
  func.func @transform_24(%arg0: i32) -> (i32, i32) {
    %c0_i32 = arith.constant 0 : i32
    %c0_i32_0 = arith.constant 0 : i32
    %c0_i32_1 = arith.constant 0 : i32
    return %c0_i32, %c0_i32_0 : i32, i32
  }
  func.func @transform_25(%arg0: i32) -> (i32, i32) {
    %c0_i32 = arith.constant 0 : i32
    %c0_i32_0 = arith.constant 0 : i32
    %c0_i32_1 = arith.constant 0 : i32
    return %c0_i32, %c0_i32_0 : i32, i32
  }
  func.func @transform_26(%arg0: i32) -> (i32, i32) {
    %c0_i32 = arith.constant 0 : i32
    %c0_i32_0 = arith.constant 0 : i32
    %c0_i32_1 = arith.constant 0 : i32
    return %c0_i32, %c0_i32_0 : i32, i32
  }
}

</mosaic_0001>

<llo_original>
// kernel: forward.1
$region0: #{forward.1}
  #allocation0 [shape = 'u32[]', space=smem, size = 0x4, offset = 0x4, fixed_abs, tag = 'smem constant byte address 0x4 - core index']
  #allocation1 [shape = 'u32[72,128]{1,0:T(1,128)}', space=vmem, size = 0x9000, scoped, tag = 'internal scratch']
  #allocation2 [shape = 'f32[8,256]{1,0:T(8,128)}', space=vmem, size = 0x2000, scoped, tag = 'scratch operand']
  %s0 = inlined_call_operand.vmem [shape: bf16[8,2048], index: 0, kind: input, shape index: {}]
  %s1 = inlined_call_operand.vmem [shape: bf16[2048,256], index: 1, kind: input, shape index: {}]
  %s2 = inlined_call_operand.vmem [shape: f32[1,256], index: 2, kind: input, shape index: {}]
  %s3 = inlined_call_operand.vmem [shape: f32[32,4], index: 3, kind: input, shape index: {}]
  %s4 = inlined_call_operand.vmem [shape: bf16[4,64,256], index: 4, kind: input, shape index: {}]
  %s5 = inlined_call_operand.vmem [shape: f32[2,256], index: 5, kind: input, shape index: {}]
  %s6 = inlined_call_operand.vmem [shape: bf16[4,32], index: 6, kind: input, shape index: {}]
  %s7 = inlined_call_operand.vmem [shape: f32[2,32], index: 7, kind: input, shape index: {}]
  %s8 = inlined_call_operand.vmem [shape: bf16[32,64], index: 8, kind: input, shape index: {}]
  %s9 = inlined_call_operand.vmem [shape: f32[2,64], index: 9, kind: input, shape index: {}]
  %s10 = inlined_call_operand.vmem [shape: bf16[32,32], index: 10, kind: input, shape index: {}]
  %s11 = inlined_call_operand.vmem [shape: bf16[128,64], index: 11, kind: input, shape index: {}]
  %s12 = inlined_call_operand.vmem [shape: f32[2,64], index: 12, kind: input, shape index: {}]
  %s13 = inlined_call_operand.vmem [shape: bf16[64,64], index: 13, kind: input, shape index: {}]
  %s14 = inlined_call_operand.vmem [shape: f32[2,64], index: 14, kind: input, shape index: {}]
  %s15 = inlined_call_operand.vmem [shape: bf16[4,8,32], index: 15, kind: input, shape index: {}]
  %s16 = inlined_call_operand.vmem [shape: bf16[256,64], index: 16, kind: input, shape index: {}]
  %s17 = inlined_call_operand.vmem [shape: f32[2,64], index: 17, kind: input, shape index: {}]
  %s18 = inlined_call_operand.vmem [shape: bf16[64,64], index: 18, kind: input, shape index: {}]
  %s19 = inlined_call_operand.vmem [shape: f32[2,64], index: 19, kind: input, shape index: {}]
  %s20 = inlined_call_operand.vmem [shape: bf16[320,64], index: 20, kind: input, shape index: {}]
  %s21 = inlined_call_operand.vmem [shape: f32[1,64], index: 21, kind: input, shape index: {}]
  %s22 = inlined_call_operand.vmem [shape: bf16[64,512], index: 22, kind: input, shape index: {}]
  %s23 = inlined_call_operand.vmem [shape: f32[1,512], index: 23, kind: input, shape index: {}]
  %s24 = inlined_call_operand.vmem [shape: bf16[512,10], index: 24, kind: input, shape index: {}]
  %s25 = inlined_call_operand.vmem [shape: f32[1,10], index: 25, kind: input, shape index: {}]
  %s26 = inlined_call_operand.hbm [shape: f32[2,10], index: 26, kind: output, shape index: {}]
  %s27 = sld [smem:[#allocation0]]
  $region145: #{forward.1} parent=0
    _
  %s29 = ssub.s32 1, %s27
  %s30 = scalar_select 0, %s29, %s27
  $region1: #{forward.1} parent=0
    #allocation3 [shape = 'u8[1024]{0}', space=vmem, size = 0x400, scoped, tag = 'output window, operand 0, single buffered']
    #allocation4 [shape = 's32[2]{0}', space=sflag, size = 0x8, scoped, tag = 'scoped memory for forward.1']
    %31 = vsyncpa [#allocation4], 0
    loop: start=0, step=1, limit=6
    $region2: #{forward.1} parent=1 // loop_pre_header
      _
    $region3: #{forward.1} parent=1 // loop_header
      %s33 = sphi 0, %s37
      %p34 = scmp.ge.s32.totalorder %s33, 6
      %s43 = sphi 0, %s45
      %s46 = sphi 0, %s43
      %s47 = sphi 0, %s46
      %s63 = sphi 0, %s47
      %s69 = sphi 0, %s71
      %s72 = sphi 0, %s69
      %s73 = sphi 0, %s72
      %s89 = sphi 0, %s73
      %s93 = sphi 0, %s93
      %s95 = sphi 0, %s93
      %s96 = sphi 0, %s95
      %s110 = sphi 0, %s96
      %s114 = sphi 0, %s114
      %s116 = sphi 0, %s114
      %s117 = sphi 0, %s116
      %s131 = sphi 0, %s117
      %s135 = sphi 0, %s135
      %s137 = sphi 0, %s135
      %s138 = sphi 0, %s137
      %s152 = sphi 0, %s138
      %s156 = sphi 0, %s156
      %s158 = sphi 0, %s156
      %s159 = sphi 0, %s158
      %s173 = sphi 0, %s159
      %s177 = sphi 0, %s177
      %s179 = sphi 0, %s177
      %s180 = sphi 0, %s179
      %s194 = sphi 0, %s180
      %s198 = sphi 0, %s198
      %s200 = sphi 0, %s198
      %s201 = sphi 0, %s200
      %s215 = sphi 0, %s201
      %s219 = sphi 0, %s219
      %s221 = sphi 0, %s219
      %s222 = sphi 0, %s221
      %s236 = sphi 0, %s222
      %s240 = sphi 0, %s240
      %s242 = sphi 0, %s240
      %s243 = sphi 0, %s242
      %s257 = sphi 0, %s243
      %s261 = sphi 0, %s261
      %s263 = sphi 0, %s261
      %s264 = sphi 0, %s263
      %s278 = sphi 0, %s264
      %s282 = sphi 0, %s282
      %s284 = sphi 0, %s282
      %s285 = sphi 0, %s284
      %s299 = sphi 0, %s285
      %s303 = sphi 0, %s303
      %s305 = sphi 0, %s303
      %s306 = sphi 0, %s305
      %s320 = sphi 0, %s306
      %s324 = sphi 0, %s324
      %s326 = sphi 0, %s324
      %s327 = sphi 0, %s326
      %s341 = sphi 0, %s327
      %s345 = sphi 0, %s345
      %s347 = sphi 0, %s345
      %s348 = sphi 0, %s347
      %s362 = sphi 0, %s348
      %s366 = sphi 0, %s366
      %s368 = sphi 0, %s366
      %s369 = sphi 0, %s368
      %s383 = sphi 0, %s369
      %s387 = sphi 0, %s387
      %s389 = sphi 0, %s387
      %s390 = sphi 0, %s389
      %s404 = sphi 0, %s390
      %s408 = sphi 0, %s408
      %s410 = sphi 0, %s408
      %s411 = sphi 0, %s410
      %s425 = sphi 0, %s411
      %s429 = sphi 0, %s429
      %s431 = sphi 0, %s429
      %s432 = sphi 0, %s431
      %s446 = sphi 0, %s432
      %s450 = sphi 0, %s450
      %s452 = sphi 0, %s450
      %s453 = sphi 0, %s452
      %s467 = sphi 0, %s453
      %s471 = sphi 0, %s471
      %s473 = sphi 0, %s471
      %s474 = sphi 0, %s473
      %s488 = sphi 0, %s474
      %s492 = sphi 0, %s492
      %s494 = sphi 0, %s492
      %s495 = sphi 0, %s494
      %s509 = sphi 0, %s495
      %s513 = sphi 0, %s513
      %s515 = sphi 0, %s513
      %s516 = sphi 0, %s515
      %s530 = sphi 0, %s516
      %s534 = sphi 0, %s534
      %s536 = sphi 0, %s534
      %s537 = sphi 0, %s536
      %s551 = sphi 0, %s537
      %s555 = sphi 0, %s555
      %s557 = sphi 0, %s555
      %s558 = sphi 0, %s557
      %s572 = sphi 0, %s558
      %s576 = sphi 0, %s576
      %s578 = sphi 0, %s576
      %s579 = sphi 0, %s578
      %s593 = sphi 0, %s579
      %s597 = sphi 0, %s597
      %s599 = sphi 0, %s597
      %s600 = sphi 0, %s599
      %s614 = sphi 0, %s600
    $region4: #{forward.1} parent=1 // loop_header_branch
      %36 = sbr.rel (%p34) target = $region8
    $region5: #{forward.1} parent=1 // loop_body
      %s38 = ssub.s32 %s33, 1
      %s39 = ssub.s32 %s33, 2
      %s40 = sadd.s32 %s33, 1
      %s41 = ssub.s32 %s33, %s40
      %p42 = scmp.eq.s32.totalorder %s41, 0
      %s44 = sadd.s32 %s43, 1
      %s45 = scalar_select %p42, %s43, %s44
      %p48 = pneg %p42
      %p49 = scmp.eq.s32.totalorder %s33, 3
      %p50 = por %p48, %p49
      %p51 = scmp.ne.s32.totalorder %s43, %s46
      %p52 = scmp.eq.s32.totalorder %s33, 0
      %p53 = por %p51, %p52
      %p54 = scmp.ne.s32.totalorder %s43, %s46
      %p55 = scmp.eq.s32.totalorder %s38, 3
      %p56 = por %p54, %p55
      %p57 = scmp.ne.s32.totalorder %s46, %s47
      %p58 = scmp.eq.s32.totalorder %s38, 0
      %p59 = por %p57, %p58
      %p60 = scmp.ne.s32.totalorder %s46, %s47
      %p61 = scmp.eq.s32.totalorder %s39, 3
      %p62 = por %p60, %p61
      %p64 = scmp.ne.s32.totalorder %s47, %s63
      %p65 = scmp.eq.s32.totalorder %s39, 0
      %p66 = por %p64, %p65
      %s67 = ssub.s32 %s33, %s40
      %p68 = scmp.eq.s32.totalorder %s67, 0
      %s70 = sadd.s32 %s69, 1
      %s71 = scalar_select %p68, %s69, %s70
      %p74 = pneg %p68
      %p75 = scmp.eq.s32.totalorder %s33, 3
      %p76 = por %p74, %p75
      %p77 = scmp.ne.s32.totalorder %s69, %s72
      %p78 = scmp.eq.s32.totalorder %s33, 0
      %p79 = por %p77, %p78
      %p80 = scmp.ne.s32.totalorder %s69, %s72
      %p81 = scmp.eq.s32.totalorder %s38, 3
      %p82 = por %p80, %p81
      %p83 = scmp.ne.s32.totalorder %s72, %s73
      %p84 = scmp.eq.s32.totalorder %s38, 0
      %p85 = por %p83, %p84
      %p86 = scmp.ne.s32.totalorder %s72, %s73
      %p87 = scmp.eq.s32.totalorder %s39, 3
      %p88 = por %p86, %p87
      %p90 = scmp.ne.s32.totalorder %s73, %s89
      %p91 = scmp.eq.s32.totalorder %s39, 0
      %p92 = por %p90, %p91
      %s94 = sadd.s32 %s93, 1
      %p97 = scmp.eq.s32.totalorder %s33, 3
      %p98 = scmp.ne.s32.totalorder %s93, %s95
      %p99 = scmp.eq.s32.totalorder %s33, 0
      %p100 = por %p98, %p99
      %p101 = scmp.ne.s32.totalorder %s93, %s95
      %p102 = scmp.eq.s32.totalorder %s38, 3
      %p103 = por %p101, %p102
      %p104 = scmp.ne.s32.totalorder %s95, %s96
      %p105 = scmp.eq.s32.totalorder %s38, 0
      %p106 = por %p104, %p105
      %p107 = scmp.ne.s32.totalorder %s95, %s96
      %p108 = scmp.eq.s32.totalorder %s39, 3
      %p109 = por %p107, %p108
      %p111 = scmp.ne.s32.totalorder %s96, %s110
      %p112 = scmp.eq.s32.totalorder %s39, 0
      %p113 = por %p111, %p112
      %s115 = sadd.s32 %s114, 1
      %p118 = scmp.eq.s32.totalorder %s33, 3
      %p119 = scmp.ne.s32.totalorder %s114, %s116
      %p120 = scmp.eq.s32.totalorder %s33, 0
      %p121 = por %p119, %p120
      %p122 = scmp.ne.s32.totalorder %s114, %s116
      %p123 = scmp.eq.s32.totalorder %s38, 3
      %p124 = por %p122, %p123
      %p125 = scmp.ne.s32.totalorder %s116, %s117
      %p126 = scmp.eq.s32.totalorder %s38, 0
      %p127 = por %p125, %p126
      %p128 = scmp.ne.s32.totalorder %s116, %s117
      %p129 = scmp.eq.s32.totalorder %s39, 3
      %p130 = por %p128, %p129
      %p132 = scmp.ne.s32.totalorder %s117, %s131
      %p133 = scmp.eq.s32.totalorder %s39, 0
      %p134 = por %p132, %p133
      %s136 = sadd.s32 %s135, 1
      %p139 = scmp.eq.s32.totalorder %s33, 3
      %p140 = scmp.ne.s32.totalorder %s135, %s137
      %p141 = scmp.eq.s32.totalorder %s33, 0
      %p142 = por %p140, %p141
      %p143 = scmp.ne.s32.totalorder %s135, %s137
      %p144 = scmp.eq.s32.totalorder %s38, 3
      %p145 = por %p143, %p144
      %p146 = scmp.ne.s32.totalorder %s137, %s138
      %p147 = scmp.eq.s32.totalorder %s38, 0
      %p148 = por %p146, %p147
      %p149 = scmp.ne.s32.totalorder %s137, %s138
      %p150 = scmp.eq.s32.totalorder %s39, 3
      %p151 = por %p149, %p150
      %p153 = scmp.ne.s32.totalorder %s138, %s152
      %p154 = scmp.eq.s32.totalorder %s39, 0
      %p155 = por %p153, %p154
      %s157 = sadd.s32 %s156, 1
      %p160 = scmp.eq.s32.totalorder %s33, 3
      %p161 = scmp.ne.s32.totalorder %s156, %s158
      %p162 = scmp.eq.s32.totalorder %s33, 0
      %p163 = por %p161, %p162
      %p164 = scmp.ne.s32.totalorder %s156, %s158
      %p165 = scmp.eq.s32.totalorder %s38, 3
      %p166 = por %p164, %p165
      %p167 = scmp.ne.s32.totalorder %s158, %s159
      %p168 = scmp.eq.s32.totalorder %s38, 0
      %p169 = por %p167, %p168
      %p170 = scmp.ne.s32.totalorder %s158, %s159
      %p171 = scmp.eq.s32.totalorder %s39, 3
      %p172 = por %p170, %p171
      %p174 = scmp.ne.s32.totalorder %s159, %s173
      %p175 = scmp.eq.s32.totalorder %s39, 0
      %p176 = por %p174, %p175
      %s178 = sadd.s32 %s177, 1
      %p181 = scmp.eq.s32.totalorder %s33, 3
      %p182 = scmp.ne.s32.totalorder %s177, %s179
      %p183 = scmp.eq.s32.totalorder %s33, 0
      %p184 = por %p182, %p183
      %p185 = scmp.ne.s32.totalorder %s177, %s179
      %p186 = scmp.eq.s32.totalorder %s38, 3
      %p187 = por %p185, %p186
      %p188 = scmp.ne.s32.totalorder %s179, %s180
      %p189 = scmp.eq.s32.totalorder %s38, 0
      %p190 = por %p188, %p189
      %p191 = scmp.ne.s32.totalorder %s179, %s180
      %p192 = scmp.eq.s32.totalorder %s39, 3
      %p193 = por %p191, %p192
      %p195 = scmp.ne.s32.totalorder %s180, %s194
      %p196 = scmp.eq.s32.totalorder %s39, 0
      %p197 = por %p195, %p196
      %s199 = sadd.s32 %s198, 1
      %p202 = scmp.eq.s32.totalorder %s33, 3
      %p203 = scmp.ne.s32.totalorder %s198, %s200
      %p204 = scmp.eq.s32.totalorder %s33, 0
      %p205 = por %p203, %p204
      %p206 = scmp.ne.s32.totalorder %s198, %s200
      %p207 = scmp.eq.s32.totalorder %s38, 3
      %p208 = por %p206, %p207
      %p209 = scmp.ne.s32.totalorder %s200, %s201
      %p210 = scmp.eq.s32.totalorder %s38, 0
      %p211 = por %p209, %p210
      %p212 = scmp.ne.s32.totalorder %s200, %s201
      %p213 = scmp.eq.s32.totalorder %s39, 3
      %p214 = por %p212, %p213
      %p216 = scmp.ne.s32.totalorder %s201, %s215
      %p217 = scmp.eq.s32.totalorder %s39, 0
      %p218 = por %p216, %p217
      %s220 = sadd.s32 %s219, 1
      %p223 = scmp.eq.s32.totalorder %s33, 3
      %p224 = scmp.ne.s32.totalorder %s219, %s221
      %p225 = scmp.eq.s32.totalorder %s33, 0
      %p226 = por %p224, %p225
      %p227 = scmp.ne.s32.totalorder %s219, %s221
      %p228 = scmp.eq.s32.totalorder %s38, 3
      %p229 = por %p227, %p228
      %p230 = scmp.ne.s32.totalorder %s221, %s222
      %p231 = scmp.eq.s32.totalorder %s38, 0
      %p232 = por %p230, %p231
      %p233 = scmp.ne.s32.totalorder %s221, %s222
      %p234 = scmp.eq.s32.totalorder %s39, 3
      %p235 = por %p233, %p234
      %p237 = scmp.ne.s32.totalorder %s222, %s236
      %p238 = scmp.eq.s32.totalorder %s39, 0
      %p239 = por %p237, %p238
      %s241 = sadd.s32 %s240, 1
      %p244 = scmp.eq.s32.totalorder %s33, 3
      %p245 = scmp.ne.s32.totalorder %s240, %s242
      %p246 = scmp.eq.s32.totalorder %s33, 0
      %p247 = por %p245, %p246
      %p248 = scmp.ne.s32.totalorder %s240, %s242
      %p249 = scmp.eq.s32.totalorder %s38, 3
      %p250 = por %p248, %p249
      %p251 = scmp.ne.s32.totalorder %s242, %s243
      %p252 = scmp.eq.s32.totalorder %s38, 0
      %p253 = por %p251, %p252
      %p254 = scmp.ne.s32.totalorder %s242, %s243
      %p255 = scmp.eq.s32.totalorder %s39, 3
      %p256 = por %p254, %p255
      %p258 = scmp.ne.s32.totalorder %s243, %s257
      %p259 = scmp.eq.s32.totalorder %s39, 0
      %p260 = por %p258, %p259
      %s262 = sadd.s32 %s261, 1
      %p265 = scmp.eq.s32.totalorder %s33, 3
      %p266 = scmp.ne.s32.totalorder %s261, %s263
      %p267 = scmp.eq.s32.totalorder %s33, 0
      %p268 = por %p266, %p267
      %p269 = scmp.ne.s32.totalorder %s261, %s263
      %p270 = scmp.eq.s32.totalorder %s38, 3
      %p271 = por %p269, %p270
      %p272 = scmp.ne.s32.totalorder %s263, %s264
      %p273 = scmp.eq.s32.totalorder %s38, 0
      %p274 = por %p272, %p273
      %p275 = scmp.ne.s32.totalorder %s263, %s264
      %p276 = scmp.eq.s32.totalorder %s39, 3
      %p277 = por %p275, %p276
      %p279 = scmp.ne.s32.totalorder %s264, %s278
      %p280 = scmp.eq.s32.totalorder %s39, 0
      %p281 = por %p279, %p280
      %s283 = sadd.s32 %s282, 1
      %p286 = scmp.eq.s32.totalorder %s33, 3
      %p287 = scmp.ne.s32.totalorder %s282, %s284
      %p288 = scmp.eq.s32.totalorder %s33, 0
      %p289 = por %p287, %p288
      %p290 = scmp.ne.s32.totalorder %s282, %s284
      %p291 = scmp.eq.s32.totalorder %s38, 3
      %p292 = por %p290, %p291
      %p293 = scmp.ne.s32.totalorder %s284, %s285
      %p294 = scmp.eq.s32.totalorder %s38, 0
      %p295 = por %p293, %p294
      %p296 = scmp.ne.s32.totalorder %s284, %s285
      %p297 = scmp.eq.s32.totalorder %s39, 3
      %p298 = por %p296, %p297
      %p300 = scmp.ne.s32.totalorder %s285, %s299
      %p301 = scmp.eq.s32.totalorder %s39, 0
      %p302 = por %p300, %p301
      %s304 = sadd.s32 %s303, 1
      %p307 = scmp.eq.s32.totalorder %s33, 3
      %p308 = scmp.ne.s32.totalorder %s303, %s305
      %p309 = scmp.eq.s32.totalorder %s33, 0
      %p310 = por %p308, %p309
      %p311 = scmp.ne.s32.totalorder %s303, %s305
      %p312 = scmp.eq.s32.totalorder %s38, 3
      %p313 = por %p311, %p312
      %p314 = scmp.ne.s32.totalorder %s305, %s306
      %p315 = scmp.eq.s32.totalorder %s38, 0
      %p316 = por %p314, %p315
      %p317 = scmp.ne.s32.totalorder %s305, %s306
      %p318 = scmp.eq.s32.totalorder %s39, 3
      %p319 = por %p317, %p318
      %p321 = scmp.ne.s32.totalorder %s306, %s320
      %p322 = scmp.eq.s32.totalorder %s39, 0
      %p323 = por %p321, %p322
      %s325 = sadd.s32 %s324, 1
      %p328 = scmp.eq.s32.totalorder %s33, 3
      %p329 = scmp.ne.s32.totalorder %s324, %s326
      %p330 = scmp.eq.s32.totalorder %s33, 0
      %p331 = por %p329, %p330
      %p332 = scmp.ne.s32.totalorder %s324, %s326
      %p333 = scmp.eq.s32.totalorder %s38, 3
      %p334 = por %p332, %p333
      %p335 = scmp.ne.s32.totalorder %s326, %s327
      %p336 = scmp.eq.s32.totalorder %s38, 0
      %p337 = por %p335, %p336
      %p338 = scmp.ne.s32.totalorder %s326, %s327
      %p339 = scmp.eq.s32.totalorder %s39, 3
      %p340 = por %p338, %p339
      %p342 = scmp.ne.s32.totalorder %s327, %s341
      %p343 = scmp.eq.s32.totalorder %s39, 0
      %p344 = por %p342, %p343
      %s346 = sadd.s32 %s345, 1
      %p349 = scmp.eq.s32.totalorder %s33, 3
      %p350 = scmp.ne.s32.totalorder %s345, %s347
      %p351 = scmp.eq.s32.totalorder %s33, 0
      %p352 = por %p350, %p351
      %p353 = scmp.ne.s32.totalorder %s345, %s347
      %p354 = scmp.eq.s32.totalorder %s38, 3
      %p355 = por %p353, %p354
      %p356 = scmp.ne.s32.totalorder %s347, %s348
      %p357 = scmp.eq.s32.totalorder %s38, 0
      %p358 = por %p356, %p357
      %p359 = scmp.ne.s32.totalorder %s347, %s348
      %p360 = scmp.eq.s32.totalorder %s39, 3
      %p361 = por %p359, %p360
      %p363 = scmp.ne.s32.totalorder %s348, %s362
      %p364 = scmp.eq.s32.totalorder %s39, 0
      %p365 = por %p363, %p364
      %s367 = sadd.s32 %s366, 1
      %p370 = scmp.eq.s32.totalorder %s33, 3
      %p371 = scmp.ne.s32.totalorder %s366, %s368
      %p372 = scmp.eq.s32.totalorder %s33, 0
      %p373 = por %p371, %p372
      %p374 = scmp.ne.s32.totalorder %s366, %s368
      %p375 = scmp.eq.s32.totalorder %s38, 3
      %p376 = por %p374, %p375
      %p377 = scmp.ne.s32.totalorder %s368, %s369
      %p378 = scmp.eq.s32.totalorder %s38, 0
      %p379 = por %p377, %p378
      %p380 = scmp.ne.s32.totalorder %s368, %s369
      %p381 = scmp.eq.s32.totalorder %s39, 3
      %p382 = por %p380, %p381
      %p384 = scmp.ne.s32.totalorder %s369, %s383
      %p385 = scmp.eq.s32.totalorder %s39, 0
      %p386 = por %p384, %p385
      %s388 = sadd.s32 %s387, 1
      %p391 = scmp.eq.s32.totalorder %s33, 3
      %p392 = scmp.ne.s32.totalorder %s387, %s389
      %p393 = scmp.eq.s32.totalorder %s33, 0
      %p394 = por %p392, %p393
      %p395 = scmp.ne.s32.totalorder %s387, %s389
      %p396 = scmp.eq.s32.totalorder %s38, 3
      %p397 = por %p395, %p396
      %p398 = scmp.ne.s32.totalorder %s389, %s390
      %p399 = scmp.eq.s32.totalorder %s38, 0
      %p400 = por %p398, %p399
      %p401 = scmp.ne.s32.totalorder %s389, %s390
      %p402 = scmp.eq.s32.totalorder %s39, 3
      %p403 = por %p401, %p402
      %p405 = scmp.ne.s32.totalorder %s390, %s404
      %p406 = scmp.eq.s32.totalorder %s39, 0
      %p407 = por %p405, %p406
      %s409 = sadd.s32 %s408, 1
      %p412 = scmp.eq.s32.totalorder %s33, 3
      %p413 = scmp.ne.s32.totalorder %s408, %s410
      %p414 = scmp.eq.s32.totalorder %s33, 0
      %p415 = por %p413, %p414
      %p416 = scmp.ne.s32.totalorder %s408, %s410
      %p417 = scmp.eq.s32.totalorder %s38, 3
      %p418 = por %p416, %p417
      %p419 = scmp.ne.s32.totalorder %s410, %s411
      %p420 = scmp.eq.s32.totalorder %s38, 0
      %p421 = por %p419, %p420
      %p422 = scmp.ne.s32.totalorder %s410, %s411
      %p423 = scmp.eq.s32.totalorder %s39, 3
      %p424 = por %p422, %p423
      %p426 = scmp.ne.s32.totalorder %s411, %s425
      %p427 = scmp.eq.s32.totalorder %s39, 0
      %p428 = por %p426, %p427
      %s430 = sadd.s32 %s429, 1
      %p433 = scmp.eq.s32.totalorder %s33, 3
      %p434 = scmp.ne.s32.totalorder %s429, %s431
      %p435 = scmp.eq.s32.totalorder %s33, 0
      %p436 = por %p434, %p435
      %p437 = scmp.ne.s32.totalorder %s429, %s431
      %p438 = scmp.eq.s32.totalorder %s38, 3
      %p439 = por %p437, %p438
      %p440 = scmp.ne.s32.totalorder %s431, %s432
      %p441 = scmp.eq.s32.totalorder %s38, 0
      %p442 = por %p440, %p441
      %p443 = scmp.ne.s32.totalorder %s431, %s432
      %p444 = scmp.eq.s32.totalorder %s39, 3
      %p445 = por %p443, %p444
      %p447 = scmp.ne.s32.totalorder %s432, %s446
      %p448 = scmp.eq.s32.totalorder %s39, 0
      %p449 = por %p447, %p448
      %s451 = sadd.s32 %s450, 1
      %p454 = scmp.eq.s32.totalorder %s33, 3
      %p455 = scmp.ne.s32.totalorder %s450, %s452
      %p456 = scmp.eq.s32.totalorder %s33, 0
      %p457 = por %p455, %p456
      %p458 = scmp.ne.s32.totalorder %s450, %s452
      %p459 = scmp.eq.s32.totalorder %s38, 3
      %p460 = por %p458, %p459
      %p461 = scmp.ne.s32.totalorder %s452, %s453
      %p462 = scmp.eq.s32.totalorder %s38, 0
      %p463 = por %p461, %p462
      %p464 = scmp.ne.s32.totalorder %s452, %s453
      %p465 = scmp.eq.s32.totalorder %s39, 3
      %p466 = por %p464, %p465
      %p468 = scmp.ne.s32.totalorder %s453, %s467
      %p469 = scmp.eq.s32.totalorder %s39, 0
      %p470 = por %p468, %p469
      %s472 = sadd.s32 %s471, 1
      %p475 = scmp.eq.s32.totalorder %s33, 3
      %p476 = scmp.ne.s32.totalorder %s471, %s473
      %p477 = scmp.eq.s32.totalorder %s33, 0
      %p478 = por %p476, %p477
      %p479 = scmp.ne.s32.totalorder %s471, %s473
      %p480 = scmp.eq.s32.totalorder %s38, 3
      %p481 = por %p479, %p480
      %p482 = scmp.ne.s32.totalorder %s473, %s474
      %p483 = scmp.eq.s32.totalorder %s38, 0
      %p484 = por %p482, %p483
      %p485 = scmp.ne.s32.totalorder %s473, %s474
      %p486 = scmp.eq.s32.totalorder %s39, 3
      %p487 = por %p485, %p486
      %p489 = scmp.ne.s32.totalorder %s474, %s488
      %p490 = scmp.eq.s32.totalorder %s39, 0
      %p491 = por %p489, %p490
      %s493 = sadd.s32 %s492, 1
      %p496 = scmp.eq.s32.totalorder %s33, 3
      %p497 = scmp.ne.s32.totalorder %s492, %s494
      %p498 = scmp.eq.s32.totalorder %s33, 0
      %p499 = por %p497, %p498
      %p500 = scmp.ne.s32.totalorder %s492, %s494
      %p501 = scmp.eq.s32.totalorder %s38, 3
      %p502 = por %p500, %p501
      %p503 = scmp.ne.s32.totalorder %s494, %s495
      %p504 = scmp.eq.s32.totalorder %s38, 0
      %p505 = por %p503, %p504
      %p506 = scmp.ne.s32.totalorder %s494, %s495
      %p507 = scmp.eq.s32.totalorder %s39, 3
      %p508 = por %p506, %p507
      %p510 = scmp.ne.s32.totalorder %s495, %s509
      %p511 = scmp.eq.s32.totalorder %s39, 0
      %p512 = por %p510, %p511
      %s514 = sadd.s32 %s513, 1
      %p517 = scmp.eq.s32.totalorder %s33, 3
      %p518 = scmp.ne.s32.totalorder %s513, %s515
      %p519 = scmp.eq.s32.totalorder %s33, 0
      %p520 = por %p518, %p519
      %p521 = scmp.ne.s32.totalorder %s513, %s515
      %p522 = scmp.eq.s32.totalorder %s38, 3
      %p523 = por %p521, %p522
      %p524 = scmp.ne.s32.totalorder %s515, %s516
      %p525 = scmp.eq.s32.totalorder %s38, 0
      %p526 = por %p524, %p525
      %p527 = scmp.ne.s32.totalorder %s515, %s516
      %p528 = scmp.eq.s32.totalorder %s39, 3
      %p529 = por %p527, %p528
      %p531 = scmp.ne.s32.totalorder %s516, %s530
      %p532 = scmp.eq.s32.totalorder %s39, 0
      %p533 = por %p531, %p532
      %s535 = sadd.s32 %s534, 1
      %p538 = scmp.eq.s32.totalorder %s33, 3
      %p539 = scmp.ne.s32.totalorder %s534, %s536
      %p540 = scmp.eq.s32.totalorder %s33, 0
      %p541 = por %p539, %p540
      %p542 = scmp.ne.s32.totalorder %s534, %s536
      %p543 = scmp.eq.s32.totalorder %s38, 3
      %p544 = por %p542, %p543
      %p545 = scmp.ne.s32.totalorder %s536, %s537
      %p546 = scmp.eq.s32.totalorder %s38, 0
      %p547 = por %p545, %p546
      %p548 = scmp.ne.s32.totalorder %s536, %s537
      %p549 = scmp.eq.s32.totalorder %s39, 3
      %p550 = por %p548, %p549
      %p552 = scmp.ne.s32.totalorder %s537, %s551
      %p553 = scmp.eq.s32.totalorder %s39, 0
      %p554 = por %p552, %p553
      %s556 = sadd.s32 %s555, 1
      %p559 = scmp.eq.s32.totalorder %s33, 3
      %p560 = scmp.ne.s32.totalorder %s555, %s557
      %p561 = scmp.eq.s32.totalorder %s33, 0
      %p562 = por %p560, %p561
      %p563 = scmp.ne.s32.totalorder %s555, %s557
      %p564 = scmp.eq.s32.totalorder %s38, 3
      %p565 = por %p563, %p564
      %p566 = scmp.ne.s32.totalorder %s557, %s558
      %p567 = scmp.eq.s32.totalorder %s38, 0
      %p568 = por %p566, %p567
      %p569 = scmp.ne.s32.totalorder %s557, %s558
      %p570 = scmp.eq.s32.totalorder %s39, 3
      %p571 = por %p569, %p570
      %p573 = scmp.ne.s32.totalorder %s558, %s572
      %p574 = scmp.eq.s32.totalorder %s39, 0
      %p575 = por %p573, %p574
      %s577 = sadd.s32 %s576, 1
      %p580 = scmp.eq.s32.totalorder %s33, 3
      %p581 = scmp.ne.s32.totalorder %s576, %s578
      %p582 = scmp.eq.s32.totalorder %s33, 0
      %p583 = por %p581, %p582
      %p584 = scmp.ne.s32.totalorder %s576, %s578
      %p585 = scmp.eq.s32.totalorder %s38, 3
      %p586 = por %p584, %p585
      %p587 = scmp.ne.s32.totalorder %s578, %s579
      %p588 = scmp.eq.s32.totalorder %s38, 0
      %p589 = por %p587, %p588
      %p590 = scmp.ne.s32.totalorder %s578, %s579
      %p591 = scmp.eq.s32.totalorder %s39, 3
      %p592 = por %p590, %p591
      %p594 = scmp.ne.s32.totalorder %s579, %s593
      %p595 = scmp.eq.s32.totalorder %s39, 0
      %p596 = por %p594, %p595
      %s598 = sadd.s32 %s597, 1
      %p601 = scmp.eq.s32.totalorder %s33, 3
      %p602 = scmp.ne.s32.totalorder %s597, %s599
      %p603 = scmp.eq.s32.totalorder %s33, 0
      %p604 = por %p602, %p603
      %p605 = scmp.ne.s32.totalorder %s597, %s599
      %p606 = scmp.eq.s32.totalorder %s38, 3
      %p607 = por %p605, %p606
      %p608 = scmp.ne.s32.totalorder %s599, %s600
      %p609 = scmp.eq.s32.totalorder %s38, 0
      %p610 = por %p608, %p609
      %p611 = scmp.ne.s32.totalorder %s599, %s600
      %p612 = scmp.eq.s32.totalorder %s39, 3
      %p613 = por %p611, %p612
      %p615 = scmp.ne.s32.totalorder %s600, %s614
      %p616 = scmp.eq.s32.totalorder %s39, 0
      %p617 = por %p615, %p616
      %p618 = scmp.le.s32.totalorder 1, %s33
      %p619 = scmp.lt.s32.totalorder %s33, 5
      %p620 = pnand %p618, %p619
      %p621 = pneg %p620
      // Predicated region
      $region9: #{forward.1} parent=5 // pred_check
        _
      $region10: #{forward.1} parent=5 // pred_check_branch
        %623 = sbr.rel (%p620) target = $region12
      $region11: #{forward.1} parent=5 // pred_region
        %s624 = ssub.s32 %s33, 1
        // Predicated region
        $region13: #{forward.1} parent=11 // pred_check
          %p625 = pneg %p106
        $region14: #{forward.1} parent=11 // pred_check_branch
          %627 = sbr.rel (%p625) target = $region16
        $region15: #{forward.1} parent=11 // pred_region
          _
        $region16: #{forward.1} parent=11 // pred_fallthru
          _
        // Predicated region
        $region17: #{forward.1} parent=11 // pred_check
          %p628 = pneg %p127
        $region18: #{forward.1} parent=11 // pred_check_branch
          %630 = sbr.rel (%p628) target = $region20
        $region19: #{forward.1} parent=11 // pred_region
          _
        $region20: #{forward.1} parent=11 // pred_fallthru
          _
        // Predicated region
        $region21: #{forward.1} parent=11 // pred_check
          %p631 = pneg %p148
        $region22: #{forward.1} parent=11 // pred_check_branch
          %633 = sbr.rel (%p631) target = $region24
        $region23: #{forward.1} parent=11 // pred_region
          _
        $region24: #{forward.1} parent=11 // pred_fallthru
          _
        // Predicated region
        $region25: #{forward.1} parent=11 // pred_check
          %p634 = pneg %p169
        $region26: #{forward.1} parent=11 // pred_check_branch
          %636 = sbr.rel (%p634) target = $region28
        $region27: #{forward.1} parent=11 // pred_region
          _
        $region28: #{forward.1} parent=11 // pred_fallthru
          _
        // Predicated region
        $region29: #{forward.1} parent=11 // pred_check
          %p637 = pneg %p190
        $region30: #{forward.1} parent=11 // pred_check_branch
          %639 = sbr.rel (%p637) target = $region32
        $region31: #{forward.1} parent=11 // pred_region
          _
        $region32: #{forward.1} parent=11 // pred_fallthru
          _
        // Predicated region
        $region33: #{forward.1} parent=11 // pred_check
          %p640 = pneg %p211
        $region34: #{forward.1} parent=11 // pred_check_branch
          %642 = sbr.rel (%p640) target = $region36
        $region35: #{forward.1} parent=11 // pred_region
          _
        $region36: #{forward.1} parent=11 // pred_fallthru
          _
        // Predicated region
        $region37: #{forward.1} parent=11 // pred_check
          %p643 = pneg %p232
        $region38: #{forward.1} parent=11 // pred_check_branch
          %645 = sbr.rel (%p643) target = $region40
        $region39: #{forward.1} parent=11 // pred_region
          _
        $region40: #{forward.1} parent=11 // pred_fallthru
          _
        // Predicated region
        $region41: #{forward.1} parent=11 // pred_check
          %p646 = pneg %p253
        $region42: #{forward.1} parent=11 // pred_check_branch
          %648 = sbr.rel (%p646) target = $region44
        $region43: #{forward.1} parent=11 // pred_region
          _
        $region44: #{forward.1} parent=11 // pred_fallthru
          _
        // Predicated region
        $region45: #{forward.1} parent=11 // pred_check
          %p649 = pneg %p274
        $region46: #{forward.1} parent=11 // pred_check_branch
          %651 = sbr.rel (%p649) target = $region48
        $region47: #{forward.1} parent=11 // pred_region
          _
        $region48: #{forward.1} parent=11 // pred_fallthru
          _
        // Predicated region
        $region49: #{forward.1} parent=11 // pred_check
          %p652 = pneg %p295
        $region50: #{forward.1} parent=11 // pred_check_branch
          %654 = sbr.rel (%p652) target = $region52
        $region51: #{forward.1} parent=11 // pred_region
          _
        $region52: #{forward.1} parent=11 // pred_fallthru
          _
        // Predicated region
        $region53: #{forward.1} parent=11 // pred_check
          %p655 = pneg %p316
        $region54: #{forward.1} parent=11 // pred_check_branch
          %657 = sbr.rel (%p655) target = $region56
        $region55: #{forward.1} parent=11 // pred_region
          _
        $region56: #{forward.1} parent=11 // pred_fallthru
          _
        // Predicated region
        $region57: #{forward.1} parent=11 // pred_check
          %p658 = pneg %p337
        $region58: #{forward.1} parent=11 // pred_check_branch
          %660 = sbr.rel (%p658) target = $region60
        $region59: #{forward.1} parent=11 // pred_region
          _
        $region60: #{forward.1} parent=11 // pred_fallthru
          _
        // Predicated region
        $region61: #{forward.1} parent=11 // pred_check
          %p661 = pneg %p358
        $region62: #{forward.1} parent=11 // pred_check_branch
          %663 = sbr.rel (%p661) target = $region64
        $region63: #{forward.1} parent=11 // pred_region
          _
        $region64: #{forward.1} parent=11 // pred_fallthru
          _
        // Predicated region
        $region65: #{forward.1} parent=11 // pred_check
          %p664 = pneg %p379
        $region66: #{forward.1} parent=11 // pred_check_branch
          %666 = sbr.rel (%p664) target = $region68
        $region67: #{forward.1} parent=11 // pred_region
          _
        $region68: #{forward.1} parent=11 // pred_fallthru
          _
        // Predicated region
        $region69: #{forward.1} parent=11 // pred_check
          %p667 = pneg %p400
        $region70: #{forward.1} parent=11 // pred_check_branch
          %669 = sbr.rel (%p667) target = $region72
        $region71: #{forward.1} parent=11 // pred_region
          _
        $region72: #{forward.1} parent=11 // pred_fallthru
          _
        // Predicated region
        $region73: #{forward.1} parent=11 // pred_check
          %p670 = pneg %p421
        $region74: #{forward.1} parent=11 // pred_check_branch
          %672 = sbr.rel (%p670) target = $region76
        $region75: #{forward.1} parent=11 // pred_region
          _
        $region76: #{forward.1} parent=11 // pred_fallthru
          _
        // Predicated region
        $region77: #{forward.1} parent=11 // pred_check
          %p673 = pneg %p442
        $region78: #{forward.1} parent=11 // pred_check_branch
          %675 = sbr.rel (%p673) target = $region80
        $region79: #{forward.1} parent=11 // pred_region
          _
        $region80: #{forward.1} parent=11 // pred_fallthru
          _
        // Predicated region
        $region81: #{forward.1} parent=11 // pred_check
          %p676 = pneg %p463
        $region82: #{forward.1} parent=11 // pred_check_branch
          %678 = sbr.rel (%p676) target = $region84
        $region83: #{forward.1} parent=11 // pred_region
          _
        $region84: #{forward.1} parent=11 // pred_fallthru
          _
        // Predicated region
        $region85: #{forward.1} parent=11 // pred_check
          %p679 = pneg %p484
        $region86: #{forward.1} parent=11 // pred_check_branch
          %681 = sbr.rel (%p679) target = $region88
        $region87: #{forward.1} parent=11 // pred_region
          _
        $region88: #{forward.1} parent=11 // pred_fallthru
          _
        // Predicated region
        $region89: #{forward.1} parent=11 // pred_check
          %p682 = pneg %p505
        $region90: #{forward.1} parent=11 // pred_check_branch
          %684 = sbr.rel (%p682) target = $region92
        $region91: #{forward.1} parent=11 // pred_region
          _
        $region92: #{forward.1} parent=11 // pred_fallthru
          _
        // Predicated region
        $region93: #{forward.1} parent=11 // pred_check
          %p685 = pneg %p526
        $region94: #{forward.1} parent=11 // pred_check_branch
          %687 = sbr.rel (%p685) target = $region96
        $region95: #{forward.1} parent=11 // pred_region
          _
        $region96: #{forward.1} parent=11 // pred_fallthru
          _
        // Predicated region
        $region97: #{forward.1} parent=11 // pred_check
          %p688 = pneg %p547
        $region98: #{forward.1} parent=11 // pred_check_branch
          %690 = sbr.rel (%p688) target = $region100
        $region99: #{forward.1} parent=11 // pred_region
          _
        $region100: #{forward.1} parent=11 // pred_fallthru
          _
        // Predicated region
        $region101: #{forward.1} parent=11 // pred_check
          %p691 = pneg %p568
        $region102: #{forward.1} parent=11 // pred_check_branch
          %693 = sbr.rel (%p691) target = $region104
        $region103: #{forward.1} parent=11 // pred_region
          _
        $region104: #{forward.1} parent=11 // pred_fallthru
          _
        // Predicated region
        $region105: #{forward.1} parent=11 // pred_check
          %p694 = pneg %p589
        $region106: #{forward.1} parent=11 // pred_check_branch
          %696 = sbr.rel (%p694) target = $region108
        $region107: #{forward.1} parent=11 // pred_region
          _
        $region108: #{forward.1} parent=11 // pred_fallthru
          _
      $region12: #{forward.1} parent=5 // pred_fallthru
        _
      %p697 = scmp.lt.s32.totalorder %s33, 4
      // Predicated region
      $region109: #{forward.1} parent=5 // pred_check
        %p698 = pneg %p697
      $region110: #{forward.1} parent=5 // pred_check_branch
        %700 = sbr.rel (%p698) target = $region112
      $region111: #{forward.1} parent=5 // pred_region
        // Predicated region
        $region113: #{forward.1} parent=111 // pred_check
          %p701 = pneg %p53
        $region114: #{forward.1} parent=111 // pred_check_branch
          %703 = sbr.rel (%p701) target = $region116
        $region115: #{forward.1} parent=111 // pred_region
          %s704 = smul.u32 4, %s33
          %p705 = scmp.lt.s32.totalorder %s704, 15
          %s706 = scalar_select %p705, %s704, 15
          %s707 = smul.addr %s706, 4
          %s708 = scalar_lea.vmem %s0, %s707
          %s709 = smul.u32 4, %s33
        $region116: #{forward.1} parent=111 // pred_fallthru
          _
        // Predicated region
        $region117: #{forward.1} parent=111 // pred_check
          %p710 = pneg %p79
        $region118: #{forward.1} parent=111 // pred_check_branch
          %712 = sbr.rel (%p710) target = $region120
        $region119: #{forward.1} parent=111 // pred_region
          %s713 = smul.u32 64, %s33
          %p714 = scmp.lt.s32.totalorder %s713, 255
          %s715 = scalar_select %p714, %s713, 255
          %s716 = smul.addr %s715, 2
          %s717 = smul.addr %s716, 4
          %s718 = scalar_lea.vmem %s1, %s717
          %s719 = smul.u32 64, %s33
        $region120: #{forward.1} parent=111 // pred_fallthru
          _
      $region112: #{forward.1} parent=5 // pred_fallthru
        _
      %p720 = scmp.le.s32.totalorder 1, %s33
      %p721 = scmp.lt.s32.totalorder %s33, 5
      %p722 = pnand %p720, %p721
      %p723 = pneg %p722
      // Predicated region
      $region121: #{forward.1} parent=5 // pred_check
        _
      $region122: #{forward.1} parent=5 // pred_check_branch
        %725 = sbr.rel (%p722) target = $region124
      $region123: #{forward.1} parent=5 // pred_region
        %s726 = ssub.s32 %s33, 1
        %s727 = smul.u32 4, %s38
        %p728 = scmp.lt.s32.totalorder %s727, 15
        %s729 = scalar_select %p728, %s727, 15
        %s730 = smul.addr %s729, 4
        %s731 = scalar_lea.vmem %s0, %s730
        %p732 = pneg %p59
        %p733 = pneg %p56
        %s734 = smul.u32 64, %s38
        %p735 = scmp.lt.s32.totalorder %s734, 255
        %s736 = scalar_select %p735, %s734, 255
        %s737 = smul.addr %s736, 2
        %s738 = smul.addr %s737, 4
        %s739 = scalar_lea.vmem %s1, %s738
        %p740 = pneg %p85
        %p741 = pneg %p82
        %p742 = pneg %p106
        %p743 = pneg %p103
        %p744 = pneg %p127
        %p745 = pneg %p124
        %p746 = pneg %p148
        %p747 = pneg %p145
        %p748 = pneg %p169
        %p749 = pneg %p166
        %p750 = pneg %p190
        %p751 = pneg %p187
        %p752 = pneg %p211
        %p753 = pneg %p208
        %p754 = pneg %p232
        %p755 = pneg %p229
        %p756 = pneg %p253
        %p757 = pneg %p250
        %p758 = pneg %p274
        %p759 = pneg %p271
        %p760 = pneg %p295
        %p761 = pneg %p292
        %p762 = pneg %p316
        %p763 = pneg %p313
        %p764 = pneg %p337
        %p765 = pneg %p334
        %p766 = pneg %p358
        %p767 = pneg %p355
        %p768 = pneg %p379
        %p769 = pneg %p376
        %p770 = pneg %p400
        %p771 = pneg %p397
        %p772 = pneg %p421
        %p773 = pneg %p418
        %p774 = pneg %p442
        %p775 = pneg %p439
        %p776 = pneg %p463
        %p777 = pneg %p460
        %p778 = pneg %p484
        %p779 = pneg %p481
        %p780 = pneg %p505
        %p781 = pneg %p502
        %p782 = pneg %p526
        %p783 = pneg %p523
        %p784 = pneg %p547
        %p785 = pneg %p544
        %p786 = pneg %p568
        %p787 = pneg %p565
        %p788 = pneg %p589
        %p789 = pneg %p586
        %p790 = pneg %p610
        %p791 = pneg %p607
        %s792 = smul.u32 4, %s38
        %p793 = scmp.lt.s32.totalorder %s792, 15
        %s794 = scalar_select %p793, %s792, 15
        %s795 = smul.addr %s794, 4
        %s796 = scalar_lea.vmem %s0, %s795
        %s797 = smul.u32 4, %s38
        %s798 = smul.u32 64, %s38
        %p799 = scmp.lt.s32.totalorder %s798, 255
        %s800 = scalar_select %p799, %s798, 255
        %s801 = smul.addr %s800, 2
        %s802 = smul.addr %s801, 4
        %s803 = scalar_lea.vmem %s1, %s802
        %s804 = smul.u32 64, %s38
        %p806 = scmp.eq.s32.totalorder %s38, 0
        // Predicated region
        $region125: #{forward.1} parent=123 // pred_check
          %p807 = pneg %p806
        $region126: #{forward.1} parent=123 // pred_check_branch
          %809 = sbr.rel (%p807) target = $region128
        $region127: #{forward.1} parent=123 // pred_region
          %810 = vst [vmem:[#allocation2] sm:$0xff] 0.0
          %811 = vst [vmem:[#allocation2 + $0x8] sm:$0xff] 0.0
        $region128: #{forward.1} parent=123 // pred_fallthru
          _
        %v812 = vld [vmem:[#allocation2] sm:$0xff]
        %v813 = vld [vmem:[#allocation2 + $0x8] sm:$0xff]
        %v814 = vld [vmem:[%s796] sm:$0xff]
        %v815 = vld [vmem:[%s796 + $0x8] sm:$0xff]
        %v816 = vld [vmem:[%s803] sm:$0xff]
        %v817 = vld [vmem:[%s803 + $0x8] sm:$0xff]
        %v818 = vld [vmem:[%s803 + $0x10] sm:$0xff]
        %v819 = vld [vmem:[%s803 + $0x18] sm:$0xff]
        %v820 = vld [vmem:[%s803 + $0x20] sm:$0xff]
        %v821 = vld [vmem:[%s803 + $0x28] sm:$0xff]
        %v822 = vld [vmem:[%s803 + $0x30] sm:$0xff]
        %v823 = vld [vmem:[%s803 + $0x38] sm:$0xff]
        %v824 = vld [vmem:[%s803 + $0x40] sm:$0xff]
        %v825 = vld [vmem:[%s803 + $0x48] sm:$0xff]
        %v826 = vld [vmem:[%s803 + $0x50] sm:$0xff]
        %v827 = vld [vmem:[%s803 + $0x58] sm:$0xff]
        %v828 = vld [vmem:[%s803 + $0x60] sm:$0xff]
        %v829 = vld [vmem:[%s803 + $0x68] sm:$0xff]
        %v830 = vld [vmem:[%s803 + $0x70] sm:$0xff]
        %v831 = vld [vmem:[%s803 + $0x78] sm:$0xff]
        %v832 = vld [vmem:[%s803 + $0x80] sm:$0xff]
        %v833 = vld [vmem:[%s803 + $0x88] sm:$0xff]
        %v834 = vld [vmem:[%s803 + $0x90] sm:$0xff]
        %v835 = vld [vmem:[%s803 + $0x98] sm:$0xff]
        %v836 = vld [vmem:[%s803 + $0xa0] sm:$0xff]
        %v837 = vld [vmem:[%s803 + $0xa8] sm:$0xff]
        %v838 = vld [vmem:[%s803 + $0xb0] sm:$0xff]
        %v839 = vld [vmem:[%s803 + $0xb8] sm:$0xff]
        %v840 = vld [vmem:[%s803 + $0xc0] sm:$0xff]
        %v841 = vld [vmem:[%s803 + $0xc8] sm:$0xff]
        %v842 = vld [vmem:[%s803 + $0xd0] sm:$0xff]
        %v843 = vld [vmem:[%s803 + $0xd8] sm:$0xff]
        %v844 = vld [vmem:[%s803 + $0xe0] sm:$0xff]
        %v845 = vld [vmem:[%s803 + $0xe8] sm:$0xff]
        %v846 = vld [vmem:[%s803 + $0xf0] sm:$0xff]
        %v847 = vld [vmem:[%s803 + $0xf8] sm:$0xff]
        %v848 = vld [vmem:[%s803 + $0x100] sm:$0xff]
        %v849 = vld [vmem:[%s803 + $0x108] sm:$0xff]
        %v850 = vld [vmem:[%s803 + $0x110] sm:$0xff]
        %v851 = vld [vmem:[%s803 + $0x118] sm:$0xff]
        %v852 = vld [vmem:[%s803 + $0x120] sm:$0xff]
        %v853 = vld [vmem:[%s803 + $0x128] sm:$0xff]
        %v854 = vld [vmem:[%s803 + $0x130] sm:$0xff]
        %v855 = vld [vmem:[%s803 + $0x138] sm:$0xff]
        %v856 = vld [vmem:[%s803 + $0x140] sm:$0xff]
        %v857 = vld [vmem:[%s803 + $0x148] sm:$0xff]
        %v858 = vld [vmem:[%s803 + $0x150] sm:$0xff]
        %v859 = vld [vmem:[%s803 + $0x158] sm:$0xff]
        %v860 = vld [vmem:[%s803 + $0x160] sm:$0xff]
        %v861 = vld [vmem:[%s803 + $0x168] sm:$0xff]
        %v862 = vld [vmem:[%s803 + $0x170] sm:$0xff]
        %v863 = vld [vmem:[%s803 + $0x178] sm:$0xff]
        %v864 = vld [vmem:[%s803 + $0x180] sm:$0xff]
        %v865 = vld [vmem:[%s803 + $0x188] sm:$0xff]
        %v866 = vld [vmem:[%s803 + $0x190] sm:$0xff]
        %v867 = vld [vmem:[%s803 + $0x198] sm:$0xff]
        %v868 = vld [vmem:[%s803 + $0x1a0] sm:$0xff]
        %v869 = vld [vmem:[%s803 + $0x1a8] sm:$0xff]
        %v870 = vld [vmem:[%s803 + $0x1b0] sm:$0xff]
        %v871 = vld [vmem:[%s803 + $0x1b8] sm:$0xff]
        %v872 = vld [vmem:[%s803 + $0x1c0] sm:$0xff]
        %v873 = vld [vmem:[%s803 + $0x1c8] sm:$0xff]
        %v874 = vld [vmem:[%s803 + $0x1d0] sm:$0xff]
        %v875 = vld [vmem:[%s803 + $0x1d8] sm:$0xff]
        %v876 = vld [vmem:[%s803 + $0x1e0] sm:$0xff]
        %v877 = vld [vmem:[%s803 + $0x1e8] sm:$0xff]
        %v878 = vld [vmem:[%s803 + $0x1f0] sm:$0xff]
        %v879 = vld [vmem:[%s803 + $0x1f8] sm:$0xff]
        %v882 = vunpack.c.l.b16 %v814
        %v883 = vunpack.c.h.b16 %v814
        %v884 = vunpack.c.l.b16 %v815
        %v885 = vunpack.c.h.b16 %v815
        %v886 = vpack.c.b16 %v882, %v882
        %v887 = vpack.c.b16 %v883, %v883
        %v888 = vpack.c.b16 %v884, %v884
        %v889 = vpack.c.b16 %v885, %v885
        %v958 = vunpack.c.l.b16 %v816
        %v959 = vunpack.c.h.b16 %v816
        %v960 = vunpack.c.l.b16 %v817
        %v961 = vunpack.c.h.b16 %v817
        %v962 = vunpack.c.l.b16 %v818
        %v963 = vunpack.c.h.b16 %v818
        %v964 = vunpack.c.l.b16 %v819
        %v965 = vunpack.c.h.b16 %v819
        %v966 = vunpack.c.l.b16 %v820
        %v967 = vunpack.c.h.b16 %v820
        %v968 = vunpack.c.l.b16 %v821
        %v969 = vunpack.c.h.b16 %v821
        %v970 = vunpack.c.l.b16 %v822
        %v971 = vunpack.c.h.b16 %v822
        %v972 = vunpack.c.l.b16 %v823
        %v973 = vunpack.c.h.b16 %v823
        %v974 = vunpack.c.l.b16 %v824
        %v975 = vunpack.c.h.b16 %v824
        %v976 = vunpack.c.l.b16 %v825
        %v977 = vunpack.c.h.b16 %v825
        %v978 = vunpack.c.l.b16 %v826
        %v979 = vunpack.c.h.b16 %v826
        %v980 = vunpack.c.l.b16 %v827
        %v981 = vunpack.c.h.b16 %v827
        %v982 = vunpack.c.l.b16 %v828
        %v983 = vunpack.c.h.b16 %v828
        %v984 = vunpack.c.l.b16 %v829
        %v985 = vunpack.c.h.b16 %v829
        %v986 = vunpack.c.l.b16 %v830
        %v987 = vunpack.c.h.b16 %v830
        %v988 = vunpack.c.l.b16 %v831
        %v989 = vunpack.c.h.b16 %v831
        %v990 = vunpack.c.l.b16 %v832
        %v991 = vunpack.c.h.b16 %v832
        %v992 = vunpack.c.l.b16 %v833
        %v993 = vunpack.c.h.b16 %v833
        %v994 = vunpack.c.l.b16 %v834
        %v995 = vunpack.c.h.b16 %v834
        %v996 = vunpack.c.l.b16 %v835
        %v997 = vunpack.c.h.b16 %v835
        %v998 = vunpack.c.l.b16 %v836
        %v999 = vunpack.c.h.b16 %v836
        %v1000 = vunpack.c.l.b16 %v837
        %v1001 = vunpack.c.h.b16 %v837
        %v1002 = vunpack.c.l.b16 %v838
        %v1003 = vunpack.c.h.b16 %v838
        %v1004 = vunpack.c.l.b16 %v839
        %v1005 = vunpack.c.h.b16 %v839
        %v1006 = vunpack.c.l.b16 %v840
        %v1007 = vunpack.c.h.b16 %v840
        %v1008 = vunpack.c.l.b16 %v841
        %v1009 = vunpack.c.h.b16 %v841
        %v1010 = vunpack.c.l.b16 %v842
        %v1011 = vunpack.c.h.b16 %v842
        %v1012 = vunpack.c.l.b16 %v843
        %v1013 = vunpack.c.h.b16 %v843
        %v1014 = vunpack.c.l.b16 %v844
        %v1015 = vunpack.c.h.b16 %v844
        %v1016 = vunpack.c.l.b16 %v845
        %v1017 = vunpack.c.h.b16 %v845
        %v1018 = vunpack.c.l.b16 %v846
        %v1019 = vunpack.c.h.b16 %v846
        %v1020 = vunpack.c.l.b16 %v847
        %v1021 = vunpack.c.h.b16 %v847
        %v1022 = vunpack.c.l.b16 %v848
        %v1023 = vunpack.c.h.b16 %v848
        %v1024 = vunpack.c.l.b16 %v849
        %v1025 = vunpack.c.h.b16 %v849
        %v1026 = vunpack.c.l.b16 %v850
        %v1027 = vunpack.c.h.b16 %v850
        %v1028 = vunpack.c.l.b16 %v851
        %v1029 = vunpack.c.h.b16 %v851
        %v1030 = vunpack.c.l.b16 %v852
        %v1031 = vunpack.c.h.b16 %v852
        %v1032 = vunpack.c.l.b16 %v853
        %v1033 = vunpack.c.h.b16 %v853
        %v1034 = vunpack.c.l.b16 %v854
        %v1035 = vunpack.c.h.b16 %v854
        %v1036 = vunpack.c.l.b16 %v855
        %v1037 = vunpack.c.h.b16 %v855
        %v1038 = vunpack.c.l.b16 %v856
        %v1039 = vunpack.c.h.b16 %v856
        %v1040 = vunpack.c.l.b16 %v857
        %v1041 = vunpack.c.h.b16 %v857
        %v1042 = vunpack.c.l.b16 %v858
        %v1043 = vunpack.c.h.b16 %v858
        %v1044 = vunpack.c.l.b16 %v859
        %v1045 = vunpack.c.h.b16 %v859
        %v1046 = vunpack.c.l.b16 %v860
        %v1047 = vunpack.c.h.b16 %v860
        %v1048 = vunpack.c.l.b16 %v861
        %v1049 = vunpack.c.h.b16 %v861
        %v1050 = vunpack.c.l.b16 %v862
        %v1051 = vunpack.c.h.b16 %v862
        %v1052 = vunpack.c.l.b16 %v863
        %v1053 = vunpack.c.h.b16 %v863
        %v1054 = vunpack.c.l.b16 %v864
        %v1055 = vunpack.c.h.b16 %v864
        %v1056 = vunpack.c.l.b16 %v865
        %v1057 = vunpack.c.h.b16 %v865
        %v1058 = vunpack.c.l.b16 %v866
        %v1059 = vunpack.c.h.b16 %v866
        %v1060 = vunpack.c.l.b16 %v867
        %v1061 = vunpack.c.h.b16 %v867
        %v1062 = vunpack.c.l.b16 %v868
        %v1063 = vunpack.c.h.b16 %v868
        %v1064 = vunpack.c.l.b16 %v869
        %v1065 = vunpack.c.h.b16 %v869
        %v1066 = vunpack.c.l.b16 %v870
        %v1067 = vunpack.c.h.b16 %v870
        %v1068 = vunpack.c.l.b16 %v871
        %v1069 = vunpack.c.h.b16 %v871
        %v1070 = vunpack.c.l.b16 %v872
        %v1071 = vunpack.c.h.b16 %v872
        %v1072 = vunpack.c.l.b16 %v873
        %v1073 = vunpack.c.h.b16 %v873
        %v1074 = vunpack.c.l.b16 %v874
        %v1075 = vunpack.c.h.b16 %v874
        %v1076 = vunpack.c.l.b16 %v875
        %v1077 = vunpack.c.h.b16 %v875
        %v1078 = vunpack.c.l.b16 %v876
        %v1079 = vunpack.c.h.b16 %v876
        %v1080 = vunpack.c.l.b16 %v877
        %v1081 = vunpack.c.h.b16 %v877
        %v1082 = vunpack.c.l.b16 %v878
        %v1083 = vunpack.c.h.b16 %v878
        %v1084 = vunpack.c.l.b16 %v879
        %v1085 = vunpack.c.h.b16 %v879
        %v1086 = vpack.c.b16 %v960, %v958
        %v1087 = vpack.c.b16 %v961, %v959
        %v1088 = vpack.c.b16 %v964, %v962
        %v1089 = vpack.c.b16 %v965, %v963
        %v1090 = vpack.c.b16 %v968, %v966
        %v1091 = vpack.c.b16 %v969, %v967
        %v1092 = vpack.c.b16 %v972, %v970
        %v1093 = vpack.c.b16 %v973, %v971
        %v1094 = vpack.c.b16 %v976, %v974
        %v1095 = vpack.c.b16 %v977, %v975
        %v1096 = vpack.c.b16 %v980, %v978
        %v1097 = vpack.c.b16 %v981, %v979
        %v1098 = vpack.c.b16 %v984, %v982
        %v1099 = vpack.c.b16 %v985, %v983
        %v1100 = vpack.c.b16 %v988, %v986
        %v1101 = vpack.c.b16 %v989, %v987
        %v1102 = vpack.c.b16 %v992, %v990
        %v1103 = vpack.c.b16 %v993, %v991
        %v1104 = vpack.c.b16 %v996, %v994
        %v1105 = vpack.c.b16 %v997, %v995
        %v1106 = vpack.c.b16 %v1000, %v998
        %v1107 = vpack.c.b16 %v1001, %v999
        %v1108 = vpack.c.b16 %v1004, %v1002
        %v1109 = vpack.c.b16 %v1005, %v1003
        %v1110 = vpack.c.b16 %v1008, %v1006
        %v1111 = vpack.c.b16 %v1009, %v1007
        %v1112 = vpack.c.b16 %v1012, %v1010
        %v1113 = vpack.c.b16 %v1013, %v1011
        %v1114 = vpack.c.b16 %v1016, %v1014
        %v1115 = vpack.c.b16 %v1017, %v1015
        %v1116 = vpack.c.b16 %v1020, %v1018
        %v1117 = vpack.c.b16 %v1021, %v1019
        %v1118 = vpack.c.b16 %v1024, %v1022
        %v1119 = vpack.c.b16 %v1025, %v1023
        %v1120 = vpack.c.b16 %v1028, %v1026
        %v1121 = vpack.c.b16 %v1029, %v1027
        %v1122 = vpack.c.b16 %v1032, %v1030
        %v1123 = vpack.c.b16 %v1033, %v1031
        %v1124 = vpack.c.b16 %v1036, %v1034
        %v1125 = vpack.c.b16 %v1037, %v1035
        %v1126 = vpack.c.b16 %v1040, %v1038
        %v1127 = vpack.c.b16 %v1041, %v1039
        %v1128 = vpack.c.b16 %v1044, %v1042
        %v1129 = vpack.c.b16 %v1045, %v1043
        %v1130 = vpack.c.b16 %v1048, %v1046
        %v1131 = vpack.c.b16 %v1049, %v1047
        %v1132 = vpack.c.b16 %v1052, %v1050
        %v1133 = vpack.c.b16 %v1053, %v1051
        %v1134 = vpack.c.b16 %v1056, %v1054
        %v1135 = vpack.c.b16 %v1057, %v1055
        %v1136 = vpack.c.b16 %v1060, %v1058
        %v1137 = vpack.c.b16 %v1061, %v1059
        %v1138 = vpack.c.b16 %v1064, %v1062
        %v1139 = vpack.c.b16 %v1065, %v1063
        %v1140 = vpack.c.b16 %v1068, %v1066
        %v1141 = vpack.c.b16 %v1069, %v1067
        %v1142 = vpack.c.b16 %v1072, %v1070
        %v1143 = vpack.c.b16 %v1073, %v1071
        %v1144 = vpack.c.b16 %v1076, %v1074
        %v1145 = vpack.c.b16 %v1077, %v1075
        %v1146 = vpack.c.b16 %v1080, %v1078
        %v1147 = vpack.c.b16 %v1081, %v1079
        %v1148 = vpack.c.b16 %v1084, %v1082
        %v1149 = vpack.c.b16 %v1085, %v1083
        %1214 = vmatpush.bf16.msra.mxu0 %v1100
        %1215 = vmatpush.bf16.msra.mxu0 %v1098
        %1216 = vmatpush.bf16.msra.mxu0 %v1096
        %1217 = vmatpush.bf16.msra.mxu0 %v1094
        %1218 = vmatpush.bf16.msra.mxu0 %v1092
        %1219 = vmatpush.bf16.msra.mxu0 %v1090
        %1220 = vmatpush.bf16.msra.mxu0 %v1088
        %1221 = vmatpush.bf16.msra.mxu0 %v1086
        %1222 = vmatmul.bf16.gmra.mxu0 %v886
        %v1223 = vpop.f32.mrf.mxu0
        %v1224 = vadd.f32 0.0, %v1223
        %v1225 = vpop.f32.mrf.mxu0
        %1226 = vdwg.mxu0
        %1227 = vmatpush.bf16.msra.mxu0 %v1116
        %1228 = vmatpush.bf16.msra.mxu0 %v1114
        %1229 = vmatpush.bf16.msra.mxu0 %v1112
        %1230 = vmatpush.bf16.msra.mxu0 %v1110
        %1231 = vmatpush.bf16.msra.mxu0 %v1108
        %1232 = vmatpush.bf16.msra.mxu0 %v1106
        %1233 = vmatpush.bf16.msra.mxu0 %v1104
        %1234 = vmatpush.bf16.msra.mxu0 %v1102
        %1235 = vmatmul.bf16.gmra.mxu0 %v887
        %v1236 = vpop.f32.mrf.mxu0
        %v1237 = vadd.f32 %v1224, %v1236
        %v1238 = vpop.f32.mrf.mxu0
        %1239 = vdwg.mxu0
        %1240 = vmatpush.bf16.msra.mxu0 %v1132
        %1241 = vmatpush.bf16.msra.mxu0 %v1130
        %1242 = vmatpush.bf16.msra.mxu0 %v1128
        %1243 = vmatpush.bf16.msra.mxu0 %v1126
        %1244 = vmatpush.bf16.msra.mxu0 %v1124
        %1245 = vmatpush.bf16.msra.mxu0 %v1122
        %1246 = vmatpush.bf16.msra.mxu0 %v1120
        %1247 = vmatpush.bf16.msra.mxu0 %v1118
        %1248 = vmatmul.bf16.gmra.mxu0 %v888
        %v1249 = vpop.f32.mrf.mxu0
        %v1250 = vadd.f32 %v1237, %v1249
        %v1251 = vpop.f32.mrf.mxu0
        %1252 = vdwg.mxu0
        %1253 = vmatpush.bf16.msra.mxu0 %v1148
        %1254 = vmatpush.bf16.msra.mxu0 %v1146
        %1255 = vmatpush.bf16.msra.mxu0 %v1144
        %1256 = vmatpush.bf16.msra.mxu0 %v1142
        %1257 = vmatpush.bf16.msra.mxu0 %v1140
        %1258 = vmatpush.bf16.msra.mxu0 %v1138
        %1259 = vmatpush.bf16.msra.mxu0 %v1136
        %1260 = vmatpush.bf16.msra.mxu0 %v1134
        %1261 = vmatmul.bf16.gmra.mxu0 %v889
        %v1262 = vpop.f32.mrf.mxu0
        %v1263 = vadd.f32 %v1250, %v1262
        %v1264 = vpop.f32.mrf.mxu0
        %1265 = vdwg.mxu0
        %1266 = vmatpush.bf16.msra.mxu0 %v1101
        %1267 = vmatpush.bf16.msra.mxu0 %v1099
        %1268 = vmatpush.bf16.msra.mxu0 %v1097
        %1269 = vmatpush.bf16.msra.mxu0 %v1095
        %1270 = vmatpush.bf16.msra.mxu0 %v1093
        %1271 = vmatpush.bf16.msra.mxu0 %v1091
        %1272 = vmatpush.bf16.msra.mxu0 %v1089
        %1273 = vmatpush.bf16.msra.mxu0 %v1087
        %1274 = vmatmul.bf16.gmra.mxu0 %v886
        %v1275 = vpop.f32.mrf.mxu0
        %v1276 = vadd.f32 0.0, %v1275
        %v1277 = vpop.f32.mrf.mxu0
        %1278 = vdwg.mxu0
        %1279 = vmatpush.bf16.msra.mxu0 %v1117
        %1280 = vmatpush.bf16.msra.mxu0 %v1115
        %1281 = vmatpush.bf16.msra.mxu0 %v1113
        %1282 = vmatpush.bf16.msra.mxu0 %v1111
        %1283 = vmatpush.bf16.msra.mxu0 %v1109
        %1284 = vmatpush.bf16.msra.mxu0 %v1107
        %1285 = vmatpush.bf16.msra.mxu0 %v1105
        %1286 = vmatpush.bf16.msra.mxu0 %v1103
        %1287 = vmatmul.bf16.gmra.mxu0 %v887
        %v1288 = vpop.f32.mrf.mxu0
        %v1289 = vadd.f32 %v1276, %v1288
        %v1290 = vpop.f32.mrf.mxu0
        %1291 = vdwg.mxu0
        %1292 = vmatpush.bf16.msra.mxu0 %v1133
        %1293 = vmatpush.bf16.msra.mxu0 %v1131
        %1294 = vmatpush.bf16.msra.mxu0 %v1129
        %1295 = vmatpush.bf16.msra.mxu0 %v1127
        %1296 = vmatpush.bf16.msra.mxu0 %v1125
        %1297 = vmatpush.bf16.msra.mxu0 %v1123
        %1298 = vmatpush.bf16.msra.mxu0 %v1121
        %1299 = vmatpush.bf16.msra.mxu0 %v1119
        %1300 = vmatmul.bf16.gmra.mxu0 %v888
        %v1301 = vpop.f32.mrf.mxu0
        %v1302 = vadd.f32 %v1289, %v1301
        %v1303 = vpop.f32.mrf.mxu0
        %1304 = vdwg.mxu0
        %1305 = vmatpush.bf16.msra.mxu0 %v1149
        %1306 = vmatpush.bf16.msra.mxu0 %v1147
        %1307 = vmatpush.bf16.msra.mxu0 %v1145
        %1308 = vmatpush.bf16.msra.mxu0 %v1143
        %1309 = vmatpush.bf16.msra.mxu0 %v1141
        %1310 = vmatpush.bf16.msra.mxu0 %v1139
        %1311 = vmatpush.bf16.msra.mxu0 %v1137
        %1312 = vmatpush.bf16.msra.mxu0 %v1135
        %1313 = vmatmul.bf16.gmra.mxu0 %v889
        %v1314 = vpop.f32.mrf.mxu0
        %v1315 = vadd.f32 %v1302, %v1314
        %v1316 = vpop.f32.mrf.mxu0
        %1317 = vdwg.mxu0
        %v1318 = vadd.f32 %v812, %v1263
        %v1319 = vadd.f32 %v813, %v1315
        %1320 = vst [vmem:[#allocation2] sm:$0xff] %v1318
        %1321 = vst [vmem:[#allocation2 + $0x8] sm:$0xff] %v1319
        %p1322 = scmp.eq.s32.totalorder %s38, 3
        // Predicated region
        $region129: #{forward.1} parent=123 // pred_check
          %p1323 = pneg %p1322
        $region130: #{forward.1} parent=123 // pred_check_branch
          %1325 = sbr.rel (%p1323) target = $region132
        $region131: #{forward.1} parent=123 // pred_region
          %v1326 = vld [vmem:[#allocation2] sm:$0xff]
          %v1327 = vld [vmem:[#allocation2 + $0x8] sm:$0xff]
          %v1328 = vld [vmem:[%s2] sm:$0x3]
          %v1330 = vperm.slane %v1328, 0
          %v1331 = vperm.slane %v1328, 1
          %v1334 = vadd.f32 %v1326, %v1330
          %v1335 = vadd.f32 %v1327, %v1331
          %v1338 = vrot.slane %v1334, 3
          %v1339 = vrot.slane %v1335, 3
          %vm1342 = vcmask 1040384
          %v1343 = vsel %vm1342, %v1334, %v1338
          %v1344 = vsel %vm1342, %v1335, %v1339
          %v1345 = vrot.slane %v1334, 1
          %v1346 = vrot.slane %v1335, 1
          %v1349 = vrot.slane %v1334, 4
          %v1350 = vrot.slane %v1335, 4
          %v1353 = vsel %vm1342, %v1345, %v1349
          %v1354 = vsel %vm1342, %v1346, %v1350
          %v1355 = vrot.slane %v1334, 2
          %v1356 = vrot.slane %v1335, 2
          %v1359 = vrot.slane %v1334, 5
          %v1360 = vrot.slane %v1335, 5
          %v1363 = vsel %vm1342, %v1355, %v1359
          %v1364 = vsel %vm1342, %v1356, %v1360
          %v1365 = vrot.slane %v1334, 6
          %v1366 = vrot.slane %v1335, 6
          %v1369 = vsel %vm1342, %v1338, %v1365
          %v1370 = vsel %vm1342, %v1339, %v1366
          %v1371 = vld [vmem:[%s5] sm:$0xf]
          %v1372 = vpack.c.bf16 %v1343, %v1343
          %v1373 = vld [vmem:[%s4] sm:$0xff]
          %v1374 = vld [vmem:[%s4 + $0x8] sm:$0xff]
          %v1375 = vld [vmem:[%s4 + $0x10] sm:$0xff]
          %v1376 = vld [vmem:[%s4 + $0x18] sm:$0xff]
          %v1377 = vld [vmem:[%s4 + $0x20] sm:$0xff]
          %v1378 = vld [vmem:[%s4 + $0x28] sm:$0xff]
          %v1379 = vld [vmem:[%s4 + $0x30] sm:$0xff]
          %v1380 = vld [vmem:[%s4 + $0x38] sm:$0xff]
          %v1381 = vpack.c.bf16 %v1353, %v1353
          %s1382 = scalar_lea.vmem %s4, 64
          %v1383 = vld [vmem:[%s1382] sm:$0xff]
          %v1384 = vld [vmem:[%s1382 + $0x8] sm:$0xff]
          %v1385 = vld [vmem:[%s1382 + $0x10] sm:$0xff]
          %v1386 = vld [vmem:[%s1382 + $0x18] sm:$0xff]
          %v1387 = vld [vmem:[%s1382 + $0x20] sm:$0xff]
          %v1388 = vld [vmem:[%s1382 + $0x28] sm:$0xff]
          %v1389 = vld [vmem:[%s1382 + $0x30] sm:$0xff]
          %v1390 = vld [vmem:[%s1382 + $0x38] sm:$0xff]
          %v1399 = vunpack.c.l.b16 %v1383
          %v1400 = vunpack.c.h.b16 %v1383
          %v1401 = vunpack.c.l.b16 %v1384
          %v1402 = vunpack.c.h.b16 %v1384
          %v1403 = vunpack.c.l.b16 %v1385
          %v1404 = vunpack.c.h.b16 %v1385
          %v1405 = vunpack.c.l.b16 %v1386
          %v1406 = vunpack.c.h.b16 %v1386
          %v1407 = vunpack.c.l.b16 %v1387
          %v1408 = vunpack.c.h.b16 %v1387
          %v1409 = vunpack.c.l.b16 %v1388
          %v1410 = vunpack.c.h.b16 %v1388
          %v1411 = vunpack.c.l.b16 %v1389
          %v1412 = vunpack.c.h.b16 %v1389
          %v1413 = vunpack.c.l.b16 %v1390
          %v1414 = vunpack.c.h.b16 %v1390
          %v1415 = vpack.c.b16 %v1401, %v1399
          %v1416 = vpack.c.b16 %v1402, %v1400
          %v1417 = vpack.c.b16 %v1405, %v1403
          %v1418 = vpack.c.b16 %v1406, %v1404
          %v1419 = vpack.c.b16 %v1409, %v1407
          %v1420 = vpack.c.b16 %v1410, %v1408
          %v1421 = vpack.c.b16 %v1413, %v1411
          %v1422 = vpack.c.b16 %v1414, %v1412
          %vm1431 = vcmask 523264
          %v1433 = vsel %vm1431, %v1381, 0
          %1435 = vmatpush.bf16.msra.mxu0 0
          %1436 = vmatpush.bf16.msra.mxu0 0
          %1437 = vmatpush.bf16.msra.mxu0 0
          %1438 = vmatpush.bf16.msra.mxu0 0
          %1439 = vmatpush.bf16.msra.mxu0 %v1421
          %1440 = vmatpush.bf16.msra.mxu0 %v1419
          %1441 = vmatpush.bf16.msra.mxu0 %v1417
          %1442 = vmatpush.bf16.msra.mxu0 %v1415
          %1443 = vmatmul.bf16.gmra.mxu0 %v1433
          %v1444 = vpop.f32.mrf.mxu0
          %v1445 = vadd.f32 0.0, %v1444
          %v1446 = vpop.f32.mrf.mxu0
          %1447 = vdwg.mxu0
          %1448 = vmatpush.bf16.msra.mxu0 0
          %1449 = vmatpush.bf16.msra.mxu0 0
          %1450 = vmatpush.bf16.msra.mxu0 0
          %1451 = vmatpush.bf16.msra.mxu0 0
          %1452 = vmatpush.bf16.msra.mxu0 %v1422
          %1453 = vmatpush.bf16.msra.mxu0 %v1420
          %1454 = vmatpush.bf16.msra.mxu0 %v1418
          %1455 = vmatpush.bf16.msra.mxu0 %v1416
          %1456 = vmatmul.bf16.gmra.mxu0 %v1433
          %v1457 = vpop.f32.mrf.mxu0
          %v1458 = vadd.f32 0.0, %v1457
          %v1459 = vpop.f32.mrf.mxu0
          %1460 = vdwg.mxu0
          %v1469 = vunpack.c.l.b16 %v1373
          %v1470 = vunpack.c.h.b16 %v1373
          %v1471 = vunpack.c.l.b16 %v1374
          %v1472 = vunpack.c.h.b16 %v1374
          %v1473 = vunpack.c.l.b16 %v1375
          %v1474 = vunpack.c.h.b16 %v1375
          %v1475 = vunpack.c.l.b16 %v1376
          %v1476 = vunpack.c.h.b16 %v1376
          %v1477 = vunpack.c.l.b16 %v1377
          %v1478 = vunpack.c.h.b16 %v1377
          %v1479 = vunpack.c.l.b16 %v1378
          %v1480 = vunpack.c.h.b16 %v1378
          %v1481 = vunpack.c.l.b16 %v1379
          %v1482 = vunpack.c.h.b16 %v1379
          %v1483 = vunpack.c.l.b16 %v1380
          %v1484 = vunpack.c.h.b16 %v1380
          %v1485 = vpack.c.b16 %v1471, %v1469
          %v1486 = vpack.c.b16 %v1472, %v1470
          %v1487 = vpack.c.b16 %v1475, %v1473
          %v1488 = vpack.c.b16 %v1476, %v1474
          %v1489 = vpack.c.b16 %v1479, %v1477
          %v1490 = vpack.c.b16 %v1480, %v1478
          %v1491 = vpack.c.b16 %v1483, %v1481
          %v1492 = vpack.c.b16 %v1484, %v1482
          %v1502 = vsel %vm1431, %v1372, 0
          %1504 = vmatpush.bf16.msra.mxu0 0
          %1505 = vmatpush.bf16.msra.mxu0 0
          %1506 = vmatpush.bf16.msra.mxu0 0
          %1507 = vmatpush.bf16.msra.mxu0 0
          %1508 = vmatpush.bf16.msra.mxu0 %v1491
          %1509 = vmatpush.bf16.msra.mxu0 %v1489
          %1510 = vmatpush.bf16.msra.mxu0 %v1487
          %1511 = vmatpush.bf16.msra.mxu0 %v1485
          %1512 = vmatmul.bf16.gmra.mxu0 %v1502
          %v1513 = vpop.f32.mrf.mxu0
          %v1514 = vadd.f32 %v1445, %v1513
          %v1515 = vpop.f32.mrf.mxu0
          %1516 = vdwg.mxu0
          %1517 = vmatpush.bf16.msra.mxu0 0
          %1518 = vmatpush.bf16.msra.mxu0 0
          %1519 = vmatpush.bf16.msra.mxu0 0
          %1520 = vmatpush.bf16.msra.mxu0 0
          %1521 = vmatpush.bf16.msra.mxu0 %v1492
          %1522 = vmatpush.bf16.msra.mxu0 %v1490
          %1523 = vmatpush.bf16.msra.mxu0 %v1488
          %1524 = vmatpush.bf16.msra.mxu0 %v1486
          %1525 = vmatmul.bf16.gmra.mxu0 %v1502
          %v1526 = vpop.f32.mrf.mxu0
          %v1527 = vadd.f32 %v1458, %v1526
          %v1528 = vpop.f32.mrf.mxu0
          %1529 = vdwg.mxu0
          %v1530 = vpack.c.bf16 %v1363, %v1363
          %s1531 = scalar_lea.vmem %s4, 128
          %v1532 = vld [vmem:[%s1531] sm:$0xff]
          %v1533 = vld [vmem:[%s1531 + $0x8] sm:$0xff]
          %v1534 = vld [vmem:[%s1531 + $0x10] sm:$0xff]
          %v1535 = vld [vmem:[%s1531 + $0x18] sm:$0xff]
          %v1536 = vld [vmem:[%s1531 + $0x20] sm:$0xff]
          %v1537 = vld [vmem:[%s1531 + $0x28] sm:$0xff]
          %v1538 = vld [vmem:[%s1531 + $0x30] sm:$0xff]
          %v1539 = vld [vmem:[%s1531 + $0x38] sm:$0xff]
          %v1548 = vunpack.c.l.b16 %v1532
          %v1549 = vunpack.c.h.b16 %v1532
          %v1550 = vunpack.c.l.b16 %v1533
          %v1551 = vunpack.c.h.b16 %v1533
          %v1552 = vunpack.c.l.b16 %v1534
          %v1553 = vunpack.c.h.b16 %v1534
          %v1554 = vunpack.c.l.b16 %v1535
          %v1555 = vunpack.c.h.b16 %v1535
          %v1556 = vunpack.c.l.b16 %v1536
          %v1557 = vunpack.c.h.b16 %v1536
          %v1558 = vunpack.c.l.b16 %v1537
          %v1559 = vunpack.c.h.b16 %v1537
          %v1560 = vunpack.c.l.b16 %v1538
          %v1561 = vunpack.c.h.b16 %v1538
          %v1562 = vunpack.c.l.b16 %v1539
          %v1563 = vunpack.c.h.b16 %v1539
          %v1564 = vpack.c.b16 %v1550, %v1548
          %v1565 = vpack.c.b16 %v1551, %v1549
          %v1566 = vpack.c.b16 %v1554, %v1552
          %v1567 = vpack.c.b16 %v1555, %v1553
          %v1568 = vpack.c.b16 %v1558, %v1556
          %v1569 = vpack.c.b16 %v1559, %v1557
          %v1570 = vpack.c.b16 %v1562, %v1560
          %v1571 = vpack.c.b16 %v1563, %v1561
          %v1581 = vsel %vm1431, %v1530, 0
          %1583 = vmatpush.bf16.msra.mxu0 0
          %1584 = vmatpush.bf16.msra.mxu0 0
          %1585 = vmatpush.bf16.msra.mxu0 0
          %1586 = vmatpush.bf16.msra.mxu0 0
          %1587 = vmatpush.bf16.msra.mxu0 %v1570
          %1588 = vmatpush.bf16.msra.mxu0 %v1568
          %1589 = vmatpush.bf16.msra.mxu0 %v1566
          %1590 = vmatpush.bf16.msra.mxu0 %v1564
          %1591 = vmatmul.bf16.gmra.mxu0 %v1581
          %v1592 = vpop.f32.mrf.mxu0
          %v1593 = vadd.f32 0.0, %v1592
          %v1594 = vpop.f32.mrf.mxu0
          %1595 = vdwg.mxu0
          %1596 = vmatpush.bf16.msra.mxu0 0
          %1597 = vmatpush.bf16.msra.mxu0 0
          %1598 = vmatpush.bf16.msra.mxu0 0
          %1599 = vmatpush.bf16.msra.mxu0 0
          %1600 = vmatpush.bf16.msra.mxu0 %v1571
          %1601 = vmatpush.bf16.msra.mxu0 %v1569
          %1602 = vmatpush.bf16.msra.mxu0 %v1567
          %1603 = vmatpush.bf16.msra.mxu0 %v1565
          %1604 = vmatmul.bf16.gmra.mxu0 %v1581
          %v1605 = vpop.f32.mrf.mxu0
          %v1606 = vadd.f32 0.0, %v1605
          %v1607 = vpop.f32.mrf.mxu0
          %1608 = vdwg.mxu0
          %v1609 = vadd.f32 %v1514, %v1593
          %v1610 = vadd.f32 %v1527, %v1606
          %v1611 = vpack.c.bf16 %v1369, %v1369
          %s1612 = scalar_lea.vmem %s4, 192
          %v1613 = vld [vmem:[%s1612] sm:$0xff]
          %v1614 = vld [vmem:[%s1612 + $0x8] sm:$0xff]
          %v1615 = vld [vmem:[%s1612 + $0x10] sm:$0xff]
          %v1616 = vld [vmem:[%s1612 + $0x18] sm:$0xff]
          %v1617 = vld [vmem:[%s1612 + $0x20] sm:$0xff]
          %v1618 = vld [vmem:[%s1612 + $0x28] sm:$0xff]
          %v1619 = vld [vmem:[%s1612 + $0x30] sm:$0xff]
          %v1620 = vld [vmem:[%s1612 + $0x38] sm:$0xff]
          %v1629 = vunpack.c.l.b16 %v1613
          %v1630 = vunpack.c.h.b16 %v1613
          %v1631 = vunpack.c.l.b16 %v1614
          %v1632 = vunpack.c.h.b16 %v1614
          %v1633 = vunpack.c.l.b16 %v1615
          %v1634 = vunpack.c.h.b16 %v1615
          %v1635 = vunpack.c.l.b16 %v1616
          %v1636 = vunpack.c.h.b16 %v1616
          %v1637 = vunpack.c.l.b16 %v1617
          %v1638 = vunpack.c.h.b16 %v1617
          %v1639 = vunpack.c.l.b16 %v1618
          %v1640 = vunpack.c.h.b16 %v1618
          %v1641 = vunpack.c.l.b16 %v1619
          %v1642 = vunpack.c.h.b16 %v1619
          %v1643 = vunpack.c.l.b16 %v1620
          %v1644 = vunpack.c.h.b16 %v1620
          %v1645 = vpack.c.b16 %v1631, %v1629
          %v1646 = vpack.c.b16 %v1632, %v1630
          %v1647 = vpack.c.b16 %v1635, %v1633
          %v1648 = vpack.c.b16 %v1636, %v1634
          %v1649 = vpack.c.b16 %v1639, %v1637
          %v1650 = vpack.c.b16 %v1640, %v1638
          %v1651 = vpack.c.b16 %v1643, %v1641
          %v1652 = vpack.c.b16 %v1644, %v1642
          %v1662 = vsel %vm1431, %v1611, 0
          %1664 = vmatpush.bf16.msra.mxu0 0
          %1665 = vmatpush.bf16.msra.mxu0 0
          %1666 = vmatpush.bf16.msra.mxu0 0
          %1667 = vmatpush.bf16.msra.mxu0 0
          %1668 = vmatpush.bf16.msra.mxu0 %v1651
          %1669 = vmatpush.bf16.msra.mxu0 %v1649
          %1670 = vmatpush.bf16.msra.mxu0 %v1647
          %1671 = vmatpush.bf16.msra.mxu0 %v1645
          %1672 = vmatmul.bf16.gmra.mxu0 %v1662
          %v1673 = vpop.f32.mrf.mxu0
          %v1674 = vadd.f32 0.0, %v1673
          %v1675 = vpop.f32.mrf.mxu0
          %1676 = vdwg.mxu0
          %1677 = vmatpush.bf16.msra.mxu0 0
          %1678 = vmatpush.bf16.msra.mxu0 0
          %1679 = vmatpush.bf16.msra.mxu0 0
          %1680 = vmatpush.bf16.msra.mxu0 0
          %1681 = vmatpush.bf16.msra.mxu0 %v1652
          %1682 = vmatpush.bf16.msra.mxu0 %v1650
          %1683 = vmatpush.bf16.msra.mxu0 %v1648
          %1684 = vmatpush.bf16.msra.mxu0 %v1646
          %1685 = vmatmul.bf16.gmra.mxu0 %v1662
          %v1686 = vpop.f32.mrf.mxu0
          %v1687 = vadd.f32 0.0, %v1686
          %v1688 = vpop.f32.mrf.mxu0
          %1689 = vdwg.mxu0
          %v1690 = vadd.f32 %v1609, %v1674
          %v1691 = vadd.f32 %v1610, %v1687
          %v1693 = vperm.slane %v1371, 0
          %v1694 = vperm.slane %v1371, 2
          %v1697 = vperm.slane %v1693, 0
          %v1698 = vperm.slane %v1694, 0
          %v1699 = vmul.f32 %v1690, %v1697
          %v1700 = vmul.f32 %v1691, %v1698
          %v1701 = vperm.slane %v1371, 1
          %v1702 = vperm.slane %v1371, 3
          %v1705 = vperm.slane %v1701, 1
          %v1706 = vperm.slane %v1702, 1
          %v1707 = vadd.f32 %v1699, %v1705
          %v1708 = vadd.f32 %v1700, %v1706
          %v1709 = vmax.f32 %v1707, 0.0
          %v1710 = vmax.f32 %v1708, 0.0
          %v1711 = vadd.f32 %v1709, 0.0
          %v1712 = vadd.f32 %v1710, 0.0
          %1714 = vrot.lane.b32.xlu0 %v1381, 64
          %v1715 = vpop.permute.xlu0 %1714
          %v1717 = vsel %vm1431, %v1715, 0
          %1719 = vmatpush.bf16.msra.mxu0 0
          %1720 = vmatpush.bf16.msra.mxu0 0
          %1721 = vmatpush.bf16.msra.mxu0 0
          %1722 = vmatpush.bf16.msra.mxu0 0
          %1723 = vmatpush.bf16.msra.mxu0 %v1421
          %1724 = vmatpush.bf16.msra.mxu0 %v1419
          %1725 = vmatpush.bf16.msra.mxu0 %v1417
          %1726 = vmatpush.bf16.msra.mxu0 %v1415
          %1727 = vmatmul.bf16.gmra.mxu0 %v1717
          %v1728 = vpop.f32.mrf.mxu0
          %v1729 = vadd.f32 0.0, %v1728
          %v1730 = vpop.f32.mrf.mxu0
          %1731 = vdwg.mxu0
          %1732 = vmatpush.bf16.msra.mxu0 0
          %1733 = vmatpush.bf16.msra.mxu0 0
          %1734 = vmatpush.bf16.msra.mxu0 0
          %1735 = vmatpush.bf16.msra.mxu0 0
          %1736 = vmatpush.bf16.msra.mxu0 %v1422
          %1737 = vmatpush.bf16.msra.mxu0 %v1420
          %1738 = vmatpush.bf16.msra.mxu0 %v1418
          %1739 = vmatpush.bf16.msra.mxu0 %v1416
          %1740 = vmatmul.bf16.gmra.mxu0 %v1717
          %v1741 = vpop.f32.mrf.mxu0
          %v1742 = vadd.f32 0.0, %v1741
          %v1743 = vpop.f32.mrf.mxu0
          %1744 = vdwg.mxu0
          %1746 = vrot.lane.b32.xlu0 %v1372, 64
          %v1747 = vpop.permute.xlu0 %1746
          %v1749 = vsel %vm1431, %v1747, 0
          %1751 = vmatpush.bf16.msra.mxu0 0
          %1752 = vmatpush.bf16.msra.mxu0 0
          %1753 = vmatpush.bf16.msra.mxu0 0
          %1754 = vmatpush.bf16.msra.mxu0 0
          %1755 = vmatpush.bf16.msra.mxu0 %v1491
          %1756 = vmatpush.bf16.msra.mxu0 %v1489
          %1757 = vmatpush.bf16.msra.mxu0 %v1487
          %1758 = vmatpush.bf16.msra.mxu0 %v1485
          %1759 = vmatmul.bf16.gmra.mxu0 %v1749
          %v1760 = vpop.f32.mrf.mxu0
          %v1761 = vadd.f32 %v1729, %v1760
          %v1762 = vpop.f32.mrf.mxu0
          %1763 = vdwg.mxu0
          %1764 = vmatpush.bf16.msra.mxu0 0
          %1765 = vmatpush.bf16.msra.mxu0 0
          %1766 = vmatpush.bf16.msra.mxu0 0
          %1767 = vmatpush.bf16.msra.mxu0 0
          %1768 = vmatpush.bf16.msra.mxu0 %v1492
          %1769 = vmatpush.bf16.msra.mxu0 %v1490
          %1770 = vmatpush.bf16.msra.mxu0 %v1488
          %1771 = vmatpush.bf16.msra.mxu0 %v1486
          %1772 = vmatmul.bf16.gmra.mxu0 %v1749
          %v1773 = vpop.f32.mrf.mxu0
          %v1774 = vadd.f32 %v1742, %v1773
          %v1775 = vpop.f32.mrf.mxu0
          %1776 = vdwg.mxu0
          %1778 = vrot.lane.b32.xlu0 %v1530, 64
          %v1779 = vpop.permute.xlu0 %1778
          %v1781 = vsel %vm1431, %v1779, 0
          %1783 = vmatpush.bf16.msra.mxu0 0
          %1784 = vmatpush.bf16.msra.mxu0 0
          %1785 = vmatpush.bf16.msra.mxu0 0
          %1786 = vmatpush.bf16.msra.mxu0 0
          %1787 = vmatpush.bf16.msra.mxu0 %v1570
          %1788 = vmatpush.bf16.msra.mxu0 %v1568
          %1789 = vmatpush.bf16.msra.mxu0 %v1566
          %1790 = vmatpush.bf16.msra.mxu0 %v1564
          %1791 = vmatmul.bf16.gmra.mxu0 %v1781
          %v1792 = vpop.f32.mrf.mxu0
          %v1793 = vadd.f32 0.0, %v1792
          %v1794 = vpop.f32.mrf.mxu0
          %1795 = vdwg.mxu0
          %1796 = vmatpush.bf16.msra.mxu0 0
          %1797 = vmatpush.bf16.msra.mxu0 0
          %1798 = vmatpush.bf16.msra.mxu0 0
          %1799 = vmatpush.bf16.msra.mxu0 0
          %1800 = vmatpush.bf16.msra.mxu0 %v1571
          %1801 = vmatpush.bf16.msra.mxu0 %v1569
          %1802 = vmatpush.bf16.msra.mxu0 %v1567
          %1803 = vmatpush.bf16.msra.mxu0 %v1565
          %1804 = vmatmul.bf16.gmra.mxu0 %v1781
          %v1805 = vpop.f32.mrf.mxu0
          %v1806 = vadd.f32 0.0, %v1805
          %v1807 = vpop.f32.mrf.mxu0
          %1808 = vdwg.mxu0
          %v1809 = vadd.f32 %v1761, %v1793
          %v1810 = vadd.f32 %v1774, %v1806
          %1812 = vrot.lane.b32.xlu0 %v1611, 64
          %v1813 = vpop.permute.xlu0 %1812
          %v1815 = vsel %vm1431, %v1813, 0
          %1817 = vmatpush.bf16.msra.mxu0 0
          %1818 = vmatpush.bf16.msra.mxu0 0
          %1819 = vmatpush.bf16.msra.mxu0 0
          %1820 = vmatpush.bf16.msra.mxu0 0
          %1821 = vmatpush.bf16.msra.mxu0 %v1651
          %1822 = vmatpush.bf16.msra.mxu0 %v1649
          %1823 = vmatpush.bf16.msra.mxu0 %v1647
          %1824 = vmatpush.bf16.msra.mxu0 %v1645
          %1825 = vmatmul.bf16.gmra.mxu0 %v1815
          %v1826 = vpop.f32.mrf.mxu0
          %v1827 = vadd.f32 0.0, %v1826
          %v1828 = vpop.f32.mrf.mxu0
          %1829 = vdwg.mxu0
          %1830 = vmatpush.bf16.msra.mxu0 0
          %1831 = vmatpush.bf16.msra.mxu0 0
          %1832 = vmatpush.bf16.msra.mxu0 0
          %1833 = vmatpush.bf16.msra.mxu0 0
          %1834 = vmatpush.bf16.msra.mxu0 %v1652
          %1835 = vmatpush.bf16.msra.mxu0 %v1650
          %1836 = vmatpush.bf16.msra.mxu0 %v1648
          %1837 = vmatpush.bf16.msra.mxu0 %v1646
          %1838 = vmatmul.bf16.gmra.mxu0 %v1815
          %v1839 = vpop.f32.mrf.mxu0
          %v1840 = vadd.f32 0.0, %v1839
          %v1841 = vpop.f32.mrf.mxu0
          %1842 = vdwg.mxu0
          %v1843 = vadd.f32 %v1809, %v1827
          %v1844 = vadd.f32 %v1810, %v1840
          %v1845 = vmul.f32 %v1843, %v1697
          %v1846 = vmul.f32 %v1844, %v1698
          %v1847 = vadd.f32 %v1845, %v1705
          %v1848 = vadd.f32 %v1846, %v1706
          %v1849 = vmax.f32 %v1847, 0.0
          %v1850 = vmax.f32 %v1848, 0.0
          %v1851 = vadd.f32 %v1711, %v1849
          %v1852 = vadd.f32 %v1712, %v1850
          %v1853 = vpack.c.bf16 %v1344, %v1344
          %v1854 = vpack.c.bf16 %v1354, %v1354
          %v1856 = vsel %vm1431, %v1854, 0
          %1858 = vmatpush.bf16.msra.mxu0 0
          %1859 = vmatpush.bf16.msra.mxu0 0
          %1860 = vmatpush.bf16.msra.mxu0 0
          %1861 = vmatpush.bf16.msra.mxu0 0
          %1862 = vmatpush.bf16.msra.mxu0 %v1421
          %1863 = vmatpush.bf16.msra.mxu0 %v1419
          %1864 = vmatpush.bf16.msra.mxu0 %v1417
          %1865 = vmatpush.bf16.msra.mxu0 %v1415
          %1866 = vmatmul.bf16.gmra.mxu0 %v1856
          %v1867 = vpop.f32.mrf.mxu0
          %v1868 = vadd.f32 0.0, %v1867
          %v1869 = vpop.f32.mrf.mxu0
          %1870 = vdwg.mxu0
          %1871 = vmatpush.bf16.msra.mxu0 0
          %1872 = vmatpush.bf16.msra.mxu0 0
          %1873 = vmatpush.bf16.msra.mxu0 0
          %1874 = vmatpush.bf16.msra.mxu0 0
          %1875 = vmatpush.bf16.msra.mxu0 %v1422
          %1876 = vmatpush.bf16.msra.mxu0 %v1420
          %1877 = vmatpush.bf16.msra.mxu0 %v1418
          %1878 = vmatpush.bf16.msra.mxu0 %v1416
          %1879 = vmatmul.bf16.gmra.mxu0 %v1856
          %v1880 = vpop.f32.mrf.mxu0
          %v1881 = vadd.f32 0.0, %v1880
          %v1882 = vpop.f32.mrf.mxu0
          %1883 = vdwg.mxu0
          %v1885 = vsel %vm1431, %v1853, 0
          %1887 = vmatpush.bf16.msra.mxu0 0
          %1888 = vmatpush.bf16.msra.mxu0 0
          %1889 = vmatpush.bf16.msra.mxu0 0
          %1890 = vmatpush.bf16.msra.mxu0 0
          %1891 = vmatpush.bf16.msra.mxu0 %v1491
          %1892 = vmatpush.bf16.msra.mxu0 %v1489
          %1893 = vmatpush.bf16.msra.mxu0 %v1487
          %1894 = vmatpush.bf16.msra.mxu0 %v1485
          %1895 = vmatmul.bf16.gmra.mxu0 %v1885
          %v1896 = vpop.f32.mrf.mxu0
          %v1897 = vadd.f32 %v1868, %v1896
          %v1898 = vpop.f32.mrf.mxu0
          %1899 = vdwg.mxu0
          %1900 = vmatpush.bf16.msra.mxu0 0
          %1901 = vmatpush.bf16.msra.mxu0 0
          %1902 = vmatpush.bf16.msra.mxu0 0
          %1903 = vmatpush.bf16.msra.mxu0 0
          %1904 = vmatpush.bf16.msra.mxu0 %v1492
          %1905 = vmatpush.bf16.msra.mxu0 %v1490
          %1906 = vmatpush.bf16.msra.mxu0 %v1488
          %1907 = vmatpush.bf16.msra.mxu0 %v1486
          %1908 = vmatmul.bf16.gmra.mxu0 %v1885
          %v1909 = vpop.f32.mrf.mxu0
          %v1910 = vadd.f32 %v1881, %v1909
          %v1911 = vpop.f32.mrf.mxu0
          %1912 = vdwg.mxu0
          %v1913 = vpack.c.bf16 %v1364, %v1364
          %v1915 = vsel %vm1431, %v1913, 0
          %1917 = vmatpush.bf16.msra.mxu0 0
          %1918 = vmatpush.bf16.msra.mxu0 0
          %1919 = vmatpush.bf16.msra.mxu0 0
          %1920 = vmatpush.bf16.msra.mxu0 0
          %1921 = vmatpush.bf16.msra.mxu0 %v1570
          %1922 = vmatpush.bf16.msra.mxu0 %v1568
          %1923 = vmatpush.bf16.msra.mxu0 %v1566
          %1924 = vmatpush.bf16.msra.mxu0 %v1564
          %1925 = vmatmul.bf16.gmra.mxu0 %v1915
          %v1926 = vpop.f32.mrf.mxu0
          %v1927 = vadd.f32 0.0, %v1926
          %v1928 = vpop.f32.mrf.mxu0
          %1929 = vdwg.mxu0
          %1930 = vmatpush.bf16.msra.mxu0 0
          %1931 = vmatpush.bf16.msra.mxu0 0
          %1932 = vmatpush.bf16.msra.mxu0 0
          %1933 = vmatpush.bf16.msra.mxu0 0
          %1934 = vmatpush.bf16.msra.mxu0 %v1571
          %1935 = vmatpush.bf16.msra.mxu0 %v1569
          %1936 = vmatpush.bf16.msra.mxu0 %v1567
          %1937 = vmatpush.bf16.msra.mxu0 %v1565
          %1938 = vmatmul.bf16.gmra.mxu0 %v1915
          %v1939 = vpop.f32.mrf.mxu0
          %v1940 = vadd.f32 0.0, %v1939
          %v1941 = vpop.f32.mrf.mxu0
          %1942 = vdwg.mxu0
          %v1943 = vadd.f32 %v1897, %v1927
          %v1944 = vadd.f32 %v1910, %v1940
          %v1945 = vpack.c.bf16 %v1370, %v1370
          %v1947 = vsel %vm1431, %v1945, 0
          %1949 = vmatpush.bf16.msra.mxu0 0
          %1950 = vmatpush.bf16.msra.mxu0 0
          %1951 = vmatpush.bf16.msra.mxu0 0
          %1952 = vmatpush.bf16.msra.mxu0 0
          %1953 = vmatpush.bf16.msra.mxu0 %v1651
          %1954 = vmatpush.bf16.msra.mxu0 %v1649
          %1955 = vmatpush.bf16.msra.mxu0 %v1647
          %1956 = vmatpush.bf16.msra.mxu0 %v1645
          %1957 = vmatmul.bf16.gmra.mxu0 %v1947
          %v1958 = vpop.f32.mrf.mxu0
          %v1959 = vadd.f32 0.0, %v1958
          %v1960 = vpop.f32.mrf.mxu0
          %1961 = vdwg.mxu0
          %1962 = vmatpush.bf16.msra.mxu0 0
          %1963 = vmatpush.bf16.msra.mxu0 0
          %1964 = vmatpush.bf16.msra.mxu0 0
          %1965 = vmatpush.bf16.msra.mxu0 0
          %1966 = vmatpush.bf16.msra.mxu0 %v1652
          %1967 = vmatpush.bf16.msra.mxu0 %v1650
          %1968 = vmatpush.bf16.msra.mxu0 %v1648
          %1969 = vmatpush.bf16.msra.mxu0 %v1646
          %1970 = vmatmul.bf16.gmra.mxu0 %v1947
          %v1971 = vpop.f32.mrf.mxu0
          %v1972 = vadd.f32 0.0, %v1971
          %v1973 = vpop.f32.mrf.mxu0
          %1974 = vdwg.mxu0
          %v1975 = vadd.f32 %v1943, %v1959
          %v1976 = vadd.f32 %v1944, %v1972
          %v1977 = vmul.f32 %v1975, %v1697
          %v1978 = vmul.f32 %v1976, %v1698
          %v1979 = vadd.f32 %v1977, %v1705
          %v1980 = vadd.f32 %v1978, %v1706
          %v1981 = vmax.f32 %v1979, 0.0
          %v1982 = vmax.f32 %v1980, 0.0
          %v1983 = vadd.f32 %v1851, %v1981
          %v1984 = vadd.f32 %v1852, %v1982
          %1986 = vrot.lane.b32.xlu0 %v1854, 64
          %v1987 = vpop.permute.xlu0 %1986
          %v1989 = vsel %vm1431, %v1987, 0
          %1991 = vmatpush.bf16.msra.mxu0 0
          %1992 = vmatpush.bf16.msra.mxu0 0
          %1993 = vmatpush.bf16.msra.mxu0 0
          %1994 = vmatpush.bf16.msra.mxu0 0
          %1995 = vmatpush.bf16.msra.mxu0 %v1421
          %1996 = vmatpush.bf16.msra.mxu0 %v1419
          %1997 = vmatpush.bf16.msra.mxu0 %v1417
          %1998 = vmatpush.bf16.msra.mxu0 %v1415
          %1999 = vmatmul.bf16.gmra.mxu0 %v1989
          %v2000 = vpop.f32.mrf.mxu0
          %v2001 = vadd.f32 0.0, %v2000
          %v2002 = vpop.f32.mrf.mxu0
          %2003 = vdwg.mxu0
          %2004 = vmatpush.bf16.msra.mxu0 0
          %2005 = vmatpush.bf16.msra.mxu0 0
          %2006 = vmatpush.bf16.msra.mxu0 0
          %2007 = vmatpush.bf16.msra.mxu0 0
          %2008 = vmatpush.bf16.msra.mxu0 %v1422
          %2009 = vmatpush.bf16.msra.mxu0 %v1420
          %2010 = vmatpush.bf16.msra.mxu0 %v1418
          %2011 = vmatpush.bf16.msra.mxu0 %v1416
          %2012 = vmatmul.bf16.gmra.mxu0 %v1989
          %v2013 = vpop.f32.mrf.mxu0
          %v2014 = vadd.f32 0.0, %v2013
          %v2015 = vpop.f32.mrf.mxu0
          %2016 = vdwg.mxu0
          %2018 = vrot.lane.b32.xlu0 %v1853, 64
          %v2019 = vpop.permute.xlu0 %2018
          %v2021 = vsel %vm1431, %v2019, 0
          %2023 = vmatpush.bf16.msra.mxu0 0
          %2024 = vmatpush.bf16.msra.mxu0 0
          %2025 = vmatpush.bf16.msra.mxu0 0
          %2026 = vmatpush.bf16.msra.mxu0 0
          %2027 = vmatpush.bf16.msra.mxu0 %v1491
          %2028 = vmatpush.bf16.msra.mxu0 %v1489
          %2029 = vmatpush.bf16.msra.mxu0 %v1487
          %2030 = vmatpush.bf16.msra.mxu0 %v1485
          %2031 = vmatmul.bf16.gmra.mxu0 %v2021
          %v2032 = vpop.f32.mrf.mxu0
          %v2033 = vadd.f32 %v2001, %v2032
          %v2034 = vpop.f32.mrf.mxu0
          %2035 = vdwg.mxu0
          %2036 = vmatpush.bf16.msra.mxu0 0
          %2037 = vmatpush.bf16.msra.mxu0 0
          %2038 = vmatpush.bf16.msra.mxu0 0
          %2039 = vmatpush.bf16.msra.mxu0 0
          %2040 = vmatpush.bf16.msra.mxu0 %v1492
          %2041 = vmatpush.bf16.msra.mxu0 %v1490
          %2042 = vmatpush.bf16.msra.mxu0 %v1488
          %2043 = vmatpush.bf16.msra.mxu0 %v1486
          %2044 = vmatmul.bf16.gmra.mxu0 %v2021
          %v2045 = vpop.f32.mrf.mxu0
          %v2046 = vadd.f32 %v2014, %v2045
          %v2047 = vpop.f32.mrf.mxu0
          %2048 = vdwg.mxu0
          %2050 = vrot.lane.b32.xlu0 %v1913, 64
          %v2051 = vpop.permute.xlu0 %2050
          %v2053 = vsel %vm1431, %v2051, 0
          %2055 = vmatpush.bf16.msra.mxu0 0
          %2056 = vmatpush.bf16.msra.mxu0 0
          %2057 = vmatpush.bf16.msra.mxu0 0
          %2058 = vmatpush.bf16.msra.mxu0 0
          %2059 = vmatpush.bf16.msra.mxu0 %v1570
          %2060 = vmatpush.bf16.msra.mxu0 %v1568
          %2061 = vmatpush.bf16.msra.mxu0 %v1566
          %2062 = vmatpush.bf16.msra.mxu0 %v1564
          %2063 = vmatmul.bf16.gmra.mxu0 %v2053
          %v2064 = vpop.f32.mrf.mxu0
          %v2065 = vadd.f32 0.0, %v2064
          %v2066 = vpop.f32.mrf.mxu0
          %2067 = vdwg.mxu0
          %2068 = vmatpush.bf16.msra.mxu0 0
          %2069 = vmatpush.bf16.msra.mxu0 0
          %2070 = vmatpush.bf16.msra.mxu0 0
          %2071 = vmatpush.bf16.msra.mxu0 0
          %2072 = vmatpush.bf16.msra.mxu0 %v1571
          %2073 = vmatpush.bf16.msra.mxu0 %v1569
          %2074 = vmatpush.bf16.msra.mxu0 %v1567
          %2075 = vmatpush.bf16.msra.mxu0 %v1565
          %2076 = vmatmul.bf16.gmra.mxu0 %v2053
          %v2077 = vpop.f32.mrf.mxu0
          %v2078 = vadd.f32 0.0, %v2077
          %v2079 = vpop.f32.mrf.mxu0
          %2080 = vdwg.mxu0
          %v2081 = vadd.f32 %v2033, %v2065
          %v2082 = vadd.f32 %v2046, %v2078
          %2084 = vrot.lane.b32.xlu0 %v1945, 64
          %v2085 = vpop.permute.xlu0 %2084
          %v2087 = vsel %vm1431, %v2085, 0
          %2089 = vmatpush.bf16.msra.mxu0 0
          %2090 = vmatpush.bf16.msra.mxu0 0
          %2091 = vmatpush.bf16.msra.mxu0 0
          %2092 = vmatpush.bf16.msra.mxu0 0
          %2093 = vmatpush.bf16.msra.mxu0 %v1651
          %2094 = vmatpush.bf16.msra.mxu0 %v1649
          %2095 = vmatpush.bf16.msra.mxu0 %v1647
          %2096 = vmatpush.bf16.msra.mxu0 %v1645
          %2097 = vmatmul.bf16.gmra.mxu0 %v2087
          %v2098 = vpop.f32.mrf.mxu0
          %v2099 = vadd.f32 0.0, %v2098
          %v2100 = vpop.f32.mrf.mxu0
          %2101 = vdwg.mxu0
          %2102 = vmatpush.bf16.msra.mxu0 0
          %2103 = vmatpush.bf16.msra.mxu0 0
          %2104 = vmatpush.bf16.msra.mxu0 0
          %2105 = vmatpush.bf16.msra.mxu0 0
          %2106 = vmatpush.bf16.msra.mxu0 %v1652
          %2107 = vmatpush.bf16.msra.mxu0 %v1650
          %2108 = vmatpush.bf16.msra.mxu0 %v1648
          %2109 = vmatpush.bf16.msra.mxu0 %v1646
          %2110 = vmatmul.bf16.gmra.mxu0 %v2087
          %v2111 = vpop.f32.mrf.mxu0
          %v2112 = vadd.f32 0.0, %v2111
          %v2113 = vpop.f32.mrf.mxu0
          %2114 = vdwg.mxu0
          %v2115 = vadd.f32 %v2081, %v2099
          %v2116 = vadd.f32 %v2082, %v2112
          %v2117 = vmul.f32 %v2115, %v1697
          %v2118 = vmul.f32 %v2116, %v1698
          %v2119 = vadd.f32 %v2117, %v1705
          %v2120 = vadd.f32 %v2118, %v1706
          %v2121 = vmax.f32 %v2119, 0.0
          %v2122 = vmax.f32 %v2120, 0.0
          %v2123 = vadd.f32 %v1983, %v2121
          %v2124 = vadd.f32 %v1984, %v2122
          %v2125 = vmul.f32 %v2123, 0.25
          %v2126 = vmul.f32 %v2124, 0.25
          %v2127 = vld [vmem:[%s3] sm:$0xff]
          %v2128 = vld [vmem:[%s3 + $0x8] sm:$0xff]
          %v2129 = vld [vmem:[%s3 + $0x10] sm:$0xff]
          %v2130 = vld [vmem:[%s3 + $0x18] sm:$0xff]
          %v2131 = vld [vmem:[%s7] sm:$0x3]
          %v2132 = vpack.c.bf16 %v2128, %v2127
          %v2133 = vpack.c.bf16 %v2130, %v2129
          %v2134 = vld [vmem:[%s6] sm:$0x3]
          %vm2135 = vcmask 31744
          %v2137 = vsel %vm2135, %v2132, 0
          %v2140 = vsel %vm2135, %v2133, 0
          %vm2142 = vcmask 1041408
          %v2144 = vsel %vm2142, %v2134, 0
          %2146 = vmatpush.bf16.msra.mxu0 0
          %2147 = vmatpush.bf16.msra.mxu0 0
          %2148 = vmatpush.bf16.msra.mxu0 0
          %2149 = vmatpush.bf16.msra.mxu0 0
          %2150 = vmatpush.bf16.msra.mxu0 0
          %2151 = vmatpush.bf16.msra.mxu0 0
          %2152 = vmatpush.bf16.msra.mxu0 0
          %2153 = vmatpush.bf16.msra.mxu0 %v2144
          %2154 = vmatmul.bf16.gmra.mxu0 %v2137
          %v2155 = vpop.f32.mrf.mxu0
          %v2156 = vadd.f32 0.0, %v2155
          %v2157 = vpop.f32.mrf.mxu0
          %v2158 = vadd.f32 0.0, %v2157
          %2159 = vmatmul.bf16.gmra.mxu0 %v2140
          %v2160 = vpop.f32.mrf.mxu0
          %v2161 = vadd.f32 0.0, %v2160
          %v2162 = vpop.f32.mrf.mxu0
          %v2163 = vadd.f32 0.0, %v2162
          %2164 = vdwg.mxu0
          %v2165 = vperm.slane %v2131, 0
          %v2166 = vmul.f32 %v2156, %v2165
          %v2167 = vmul.f32 %v2158, %v2165
          %v2168 = vmul.f32 %v2161, %v2165
          %v2169 = vmul.f32 %v2163, %v2165
          %v2170 = vperm.slane %v2131, 1
          %v2171 = vadd.f32 %v2166, %v2170
          %v2172 = vadd.f32 %v2167, %v2170
          %v2173 = vadd.f32 %v2168, %v2170
          %v2174 = vadd.f32 %v2169, %v2170
          %v2175 = vmax.f32 %v2171, 0.0
          %v2176 = vmax.f32 %v2172, 0.0
          %v2177 = vmax.f32 %v2173, 0.0
          %v2178 = vmax.f32 %v2174, 0.0
          %v2179 = vld [vmem:[%s9] sm:$0x3]
          %v2180 = vpack.c.bf16 %v2176, %v2175
          %v2181 = vpack.c.bf16 %v2178, %v2177
          %v2182 = vld [vmem:[%s8] sm:$0xf]
          %v2183 = vld [vmem:[%s8 + $0x4] sm:$0xf]
          %v2184 = vld [vmem:[%s8 + $0x8] sm:$0xf]
          %v2185 = vld [vmem:[%s8 + $0xc] sm:$0xf]
          %v2190 = vunpack.c.l.b16 %v2182
          %v2191 = vunpack.c.l.b16 %v2183
          %v2192 = vunpack.c.l.b16 %v2184
          %v2193 = vunpack.c.l.b16 %v2185
          %v2194 = vpack.c.b16 %v2191, %v2190
          %v2195 = vpack.c.b16 %v2193, %v2192
          %vm2198 = vcmask 261120
          %v2200 = vsel %vm2198, %v2180, 0
          %v2203 = vsel %vm2198, %v2181, 0
          %2205 = vmatpush.bf16.msra.mxu0 0
          %2206 = vmatpush.bf16.msra.mxu0 0
          %2207 = vmatpush.bf16.msra.mxu0 0
          %2208 = vmatpush.bf16.msra.mxu0 0
          %2209 = vmatpush.bf16.msra.mxu0 0
          %2210 = vmatpush.bf16.msra.mxu0 0
          %2211 = vmatpush.bf16.msra.mxu0 %v2195
          %2212 = vmatpush.bf16.msra.mxu0 %v2194
          %2213 = vmatmul.bf16.gmra.mxu0 %v2200
          %v2214 = vpop.f32.mrf.mxu0
          %v2215 = vadd.f32 0.0, %v2214
          %v2216 = vpop.f32.mrf.mxu0
          %v2217 = vadd.f32 0.0, %v2216
          %2218 = vmatmul.bf16.gmra.mxu0 %v2203
          %v2219 = vpop.f32.mrf.mxu0
          %v2220 = vadd.f32 0.0, %v2219
          %v2221 = vpop.f32.mrf.mxu0
          %v2222 = vadd.f32 0.0, %v2221
          %2223 = vdwg.mxu0
          %v2224 = vperm.slane %v2179, 0
          %v2225 = vmul.f32 %v2215, %v2224
          %v2226 = vmul.f32 %v2217, %v2224
          %v2227 = vmul.f32 %v2220, %v2224
          %v2228 = vmul.f32 %v2222, %v2224
          %v2229 = vperm.slane %v2179, 1
          %v2230 = vadd.f32 %v2225, %v2229
          %v2231 = vadd.f32 %v2226, %v2229
          %v2232 = vadd.f32 %v2227, %v2229
          %v2233 = vadd.f32 %v2228, %v2229
          %v2234 = vmax.f32 %v2230, 0.0
          %v2235 = vmax.f32 %v2231, 0.0
          %v2236 = vmax.f32 %v2232, 0.0
          %v2237 = vmax.f32 %v2233, 0.0
          %v2238 = vld [vmem:[%s10] sm:$0xf]
          %v2239 = vld [vmem:[%s10 + $0x4] sm:$0xf]
          %v2240 = vld [vmem:[%s10 + $0x8] sm:$0xf]
          %v2241 = vld [vmem:[%s10 + $0xc] sm:$0xf]
          %v2242 = vpack.c.bf16 %v2235, %v2234
          %v2243 = vpack.c.bf16 %v2237, %v2236
          %v2248 = vunpack.c.l.b16 %v2238
          %v2249 = vunpack.c.l.b16 %v2239
          %v2250 = vunpack.c.l.b16 %v2240
          %v2251 = vunpack.c.l.b16 %v2241
          %v2252 = vpack.c.b16 %v2249, %v2248
          %v2253 = vpack.c.b16 %v2251, %v2250
          %v2255 = vsel %vm2198, %v2252, 0
          %v2258 = vsel %vm2198, %v2253, 0
          %2260 = vmatpush.bf16.msra.mxu0 0
          %2261 = vmatpush.bf16.msra.mxu0 0
          %2262 = vmatpush.bf16.msra.mxu0 0
          %2263 = vmatpush.bf16.msra.mxu0 0
          %2264 = vmatpush.bf16.msra.mxu0 0
          %2265 = vmatpush.bf16.msra.mxu0 0
          %2266 = vmatpush.bf16.msra.mxu0 %v2243
          %2267 = vmatpush.bf16.msra.mxu0 %v2242
          %2268 = vmatmul.bf16.gmra.mxu0 %v2255
          %v2269 = vpop.f32.mrf.mxu0
          %v2270 = vadd.f32 0.0, %v2269
          %v2271 = vpop.f32.mrf.mxu0
          %v2272 = vadd.f32 0.0, %v2271
          %2273 = vmatmul.bf16.gmra.mxu0 %v2258
          %v2274 = vpop.f32.mrf.mxu0
          %v2275 = vadd.f32 0.0, %v2274
          %v2276 = vpop.f32.mrf.mxu0
          %v2277 = vadd.f32 0.0, %v2276
          %2278 = vdwg.mxu0
          %v2279 = vmul.f32 %v2270, 0.33333334
          %v2280 = vmul.f32 %v2272, 0.33333334
          %v2281 = vmul.f32 %v2275, 0.33333334
          %v2282 = vmul.f32 %v2277, 0.33333334
          %2287 = vrot.lane.b32.xlu0 %v2279, 64
          %v2288 = vpop.permute.xlu0 %2287
          %2289 = vrot.lane.b32.xlu0 %v2280, 64
          %v2290 = vpop.permute.xlu0 %2289
          %2291 = vrot.lane.b32.xlu0 %v2281, 64
          %v2292 = vpop.permute.xlu0 %2291
          %2293 = vrot.lane.b32.xlu0 %v2282, 64
          %v2294 = vpop.permute.xlu0 %2293
          %v2299 = vsel %vm1431, %v2234, %v2288
          %v2300 = vsel %vm1431, %v2235, %v2290
          %v2301 = vsel %vm1431, %v2236, %v2292
          %v2302 = vsel %vm1431, %v2237, %v2294
          %v2303 = vld [vmem:[%s12] sm:$0x3]
          %v2304 = vpack.c.bf16 %v2300, %v2299
          %v2305 = vpack.c.bf16 %v2302, %v2301
          %v2306 = vld [vmem:[%s11] sm:$0xf]
          %v2307 = vld [vmem:[%s11 + $0x4] sm:$0xf]
          %v2308 = vld [vmem:[%s11 + $0x8] sm:$0xf]
          %v2309 = vld [vmem:[%s11 + $0xc] sm:$0xf]
          %v2310 = vld [vmem:[%s11 + $0x10] sm:$0xf]
          %v2311 = vld [vmem:[%s11 + $0x14] sm:$0xf]
          %v2312 = vld [vmem:[%s11 + $0x18] sm:$0xf]
          %v2313 = vld [vmem:[%s11 + $0x1c] sm:$0xf]
          %v2314 = vld [vmem:[%s11 + $0x20] sm:$0xf]
          %v2315 = vld [vmem:[%s11 + $0x24] sm:$0xf]
          %v2316 = vld [vmem:[%s11 + $0x28] sm:$0xf]
          %v2317 = vld [vmem:[%s11 + $0x2c] sm:$0xf]
          %v2318 = vld [vmem:[%s11 + $0x30] sm:$0xf]
          %v2319 = vld [vmem:[%s11 + $0x34] sm:$0xf]
          %v2320 = vld [vmem:[%s11 + $0x38] sm:$0xf]
          %v2321 = vld [vmem:[%s11 + $0x3c] sm:$0xf]
          %v2338 = vunpack.c.l.b16 %v2306
          %v2339 = vunpack.c.l.b16 %v2307
          %v2340 = vunpack.c.l.b16 %v2308
          %v2341 = vunpack.c.l.b16 %v2309
          %v2342 = vunpack.c.l.b16 %v2310
          %v2343 = vunpack.c.l.b16 %v2311
          %v2344 = vunpack.c.l.b16 %v2312
          %v2345 = vunpack.c.l.b16 %v2313
          %v2346 = vunpack.c.l.b16 %v2314
          %v2347 = vunpack.c.l.b16 %v2315
          %v2348 = vunpack.c.l.b16 %v2316
          %v2349 = vunpack.c.l.b16 %v2317
          %v2350 = vunpack.c.l.b16 %v2318
          %v2351 = vunpack.c.l.b16 %v2319
          %v2352 = vunpack.c.l.b16 %v2320
          %v2353 = vunpack.c.l.b16 %v2321
          %v2354 = vpack.c.b16 %v2339, %v2338
          %v2355 = vpack.c.b16 %v2341, %v2340
          %v2356 = vpack.c.b16 %v2343, %v2342
          %v2357 = vpack.c.b16 %v2345, %v2344
          %v2358 = vpack.c.b16 %v2347, %v2346
          %v2359 = vpack.c.b16 %v2349, %v2348
          %v2360 = vpack.c.b16 %v2351, %v2350
          %v2361 = vpack.c.b16 %v2353, %v2352
          %2370 = vmatpush.bf16.msra.mxu0 %v2361
          %2371 = vmatpush.bf16.msra.mxu0 %v2360
          %2372 = vmatpush.bf16.msra.mxu0 %v2359
          %2373 = vmatpush.bf16.msra.mxu0 %v2358
          %2374 = vmatpush.bf16.msra.mxu0 %v2357
          %2375 = vmatpush.bf16.msra.mxu0 %v2356
          %2376 = vmatpush.bf16.msra.mxu0 %v2355
          %2377 = vmatpush.bf16.msra.mxu0 %v2354
          %2378 = vmatmul.bf16.gmra.mxu0 %v2304
          %v2379 = vpop.f32.mrf.mxu0
          %v2380 = vadd.f32 0.0, %v2379
          %v2381 = vpop.f32.mrf.mxu0
          %v2382 = vadd.f32 0.0, %v2381
          %2383 = vmatmul.bf16.gmra.mxu0 %v2305
          %v2384 = vpop.f32.mrf.mxu0
          %v2385 = vadd.f32 0.0, %v2384
          %v2386 = vpop.f32.mrf.mxu0
          %v2387 = vadd.f32 0.0, %v2386
          %2388 = vdwg.mxu0
          %v2389 = vperm.slane %v2303, 0
          %v2390 = vmul.f32 %v2380, %v2389
          %v2391 = vmul.f32 %v2382, %v2389
          %v2392 = vmul.f32 %v2385, %v2389
          %v2393 = vmul.f32 %v2387, %v2389
          %v2394 = vperm.slane %v2303, 1
          %v2395 = vadd.f32 %v2390, %v2394
          %v2396 = vadd.f32 %v2391, %v2394
          %v2397 = vadd.f32 %v2392, %v2394
          %v2398 = vadd.f32 %v2393, %v2394
          %v2399 = vmax.f32 %v2395, 0.0
          %v2400 = vmax.f32 %v2396, 0.0
          %v2401 = vmax.f32 %v2397, 0.0
          %v2402 = vmax.f32 %v2398, 0.0
          %v2403 = vld [vmem:[%s14] sm:$0x3]
          %v2404 = vpack.c.bf16 %v2400, %v2399
          %v2405 = vpack.c.bf16 %v2402, %v2401
          %v2406 = vld [vmem:[%s13] sm:$0xf]
          %v2407 = vld [vmem:[%s13 + $0x4] sm:$0xf]
          %v2408 = vld [vmem:[%s13 + $0x8] sm:$0xf]
          %v2409 = vld [vmem:[%s13 + $0xc] sm:$0xf]
          %v2410 = vld [vmem:[%s13 + $0x10] sm:$0xf]
          %v2411 = vld [vmem:[%s13 + $0x14] sm:$0xf]
          %v2412 = vld [vmem:[%s13 + $0x18] sm:$0xf]
          %v2413 = vld [vmem:[%s13 + $0x1c] sm:$0xf]
          %v2422 = vunpack.c.l.b16 %v2406
          %v2423 = vunpack.c.l.b16 %v2407
          %v2424 = vunpack.c.l.b16 %v2408
          %v2425 = vunpack.c.l.b16 %v2409
          %v2426 = vunpack.c.l.b16 %v2410
          %v2427 = vunpack.c.l.b16 %v2411
          %v2428 = vunpack.c.l.b16 %v2412
          %v2429 = vunpack.c.l.b16 %v2413
          %v2430 = vpack.c.b16 %v2423, %v2422
          %v2431 = vpack.c.b16 %v2425, %v2424
          %v2432 = vpack.c.b16 %v2427, %v2426
          %v2433 = vpack.c.b16 %v2429, %v2428
          %v2439 = vsel %vm1431, %v2404, 0
          %v2442 = vsel %vm1431, %v2405, 0
          %2444 = vmatpush.bf16.msra.mxu0 0
          %2445 = vmatpush.bf16.msra.mxu0 0
          %2446 = vmatpush.bf16.msra.mxu0 0
          %2447 = vmatpush.bf16.msra.mxu0 0
          %2448 = vmatpush.bf16.msra.mxu0 %v2433
          %2449 = vmatpush.bf16.msra.mxu0 %v2432
          %2450 = vmatpush.bf16.msra.mxu0 %v2431
          %2451 = vmatpush.bf16.msra.mxu0 %v2430
          %2452 = vmatmul.bf16.gmra.mxu0 %v2439
          %v2453 = vpop.f32.mrf.mxu0
          %v2454 = vadd.f32 0.0, %v2453
          %v2455 = vpop.f32.mrf.mxu0
          %v2456 = vadd.f32 0.0, %v2455
          %2457 = vmatmul.bf16.gmra.mxu0 %v2442
          %v2458 = vpop.f32.mrf.mxu0
          %v2459 = vadd.f32 0.0, %v2458
          %v2460 = vpop.f32.mrf.mxu0
          %v2461 = vadd.f32 0.0, %v2460
          %2462 = vdwg.mxu0
          %v2463 = vperm.slane %v2403, 0
          %v2464 = vmul.f32 %v2454, %v2463
          %v2465 = vmul.f32 %v2456, %v2463
          %v2466 = vmul.f32 %v2459, %v2463
          %v2467 = vmul.f32 %v2461, %v2463
          %v2468 = vperm.slane %v2403, 1
          %v2469 = vadd.f32 %v2464, %v2468
          %v2470 = vadd.f32 %v2465, %v2468
          %v2471 = vadd.f32 %v2466, %v2468
          %v2472 = vadd.f32 %v2467, %v2468
          %v2473 = vmax.f32 %v2469, 0.0
          %v2474 = vmax.f32 %v2470, 0.0
          %v2475 = vmax.f32 %v2471, 0.0
          %v2476 = vmax.f32 %v2472, 0.0
          %v2477 = vpack.c.bf16 %v2474, %v2473
          %v2478 = vpack.c.bf16 %v2476, %v2475
          %v2479 = vld [vmem:[%s15] sm:$0xf]
          %v2481 = vsel %vm2198, %v2479, 0
          %2483 = vmatpush.bf16.msra.mxu0 0
          %2484 = vmatpush.bf16.msra.mxu0 0
          %2485 = vmatpush.bf16.msra.mxu0 0
          %2486 = vmatpush.bf16.msra.mxu0 0
          %2487 = vmatpush.bf16.msra.mxu0 0
          %2488 = vmatpush.bf16.msra.mxu0 0
          %2489 = vmatpush.bf16.msra.mxu0 %v2478
          %2490 = vmatpush.bf16.msra.mxu0 %v2477
          %2491 = vmatmul.bf16.gmra.mxu0 %v2481
          %v2492 = vpop.f32.mrf.mxu0
          %v2493 = vadd.f32 0.0, %v2492
          %v2494 = vpop.f32.mrf.mxu0
          %2495 = vdwg.mxu0
          %s2496 = scalar_lea.vmem %s15, 4
          %v2497 = vld [vmem:[%s2496] sm:$0xf]
          %v2499 = vsel %vm2198, %v2497, 0
          %2501 = vmatpush.bf16.msra.mxu0 0
          %2502 = vmatpush.bf16.msra.mxu0 0
          %2503 = vmatpush.bf16.msra.mxu0 0
          %2504 = vmatpush.bf16.msra.mxu0 0
          %2505 = vmatpush.bf16.msra.mxu0 0
          %2506 = vmatpush.bf16.msra.mxu0 0
          %2507 = vmatpush.bf16.msra.mxu0 %v2478
          %2508 = vmatpush.bf16.msra.mxu0 %v2477
          %2509 = vmatmul.bf16.gmra.mxu0 %v2499
          %v2510 = vpop.f32.mrf.mxu0
          %v2511 = vadd.f32 0.0, %v2510
          %v2512 = vpop.f32.mrf.mxu0
          %2513 = vdwg.mxu0
          %s2514 = scalar_lea.vmem %s15, 8
          %v2515 = vld [vmem:[%s2514] sm:$0xf]
          %v2517 = vsel %vm2198, %v2515, 0
          %2519 = vmatpush.bf16.msra.mxu0 0
          %2520 = vmatpush.bf16.msra.mxu0 0
          %2521 = vmatpush.bf16.msra.mxu0 0
          %2522 = vmatpush.bf16.msra.mxu0 0
          %2523 = vmatpush.bf16.msra.mxu0 0
          %2524 = vmatpush.bf16.msra.mxu0 0
          %2525 = vmatpush.bf16.msra.mxu0 %v2478
          %2526 = vmatpush.bf16.msra.mxu0 %v2477
          %2527 = vmatmul.bf16.gmra.mxu0 %v2517
          %v2528 = vpop.f32.mrf.mxu0
          %v2529 = vadd.f32 0.0, %v2528
          %v2530 = vpop.f32.mrf.mxu0
          %2531 = vdwg.mxu0
          %s2532 = scalar_lea.vmem %s15, 12
          %v2533 = vld [vmem:[%s2532] sm:$0xf]
          %v2535 = vsel %vm2198, %v2533, 0
          %2537 = vmatpush.bf16.msra.mxu0 0
          %2538 = vmatpush.bf16.msra.mxu0 0
          %2539 = vmatpush.bf16.msra.mxu0 0
          %2540 = vmatpush.bf16.msra.mxu0 0
          %2541 = vmatpush.bf16.msra.mxu0 0
          %2542 = vmatpush.bf16.msra.mxu0 0
          %2543 = vmatpush.bf16.msra.mxu0 %v2478
          %2544 = vmatpush.bf16.msra.mxu0 %v2477
          %2545 = vmatmul.bf16.gmra.mxu0 %v2535
          %v2546 = vpop.f32.mrf.mxu0
          %v2547 = vadd.f32 0.0, %v2546
          %v2548 = vpop.f32.mrf.mxu0
          %2549 = vdwg.mxu0
          %2551 = vrot.lane.b32.xlu0 %v2511, 64
          %v2552 = vpop.permute.xlu0 %2551
          %2555 = vrot.lane.b32.xlu0 %v2547, 64
          %v2556 = vpop.permute.xlu0 %2555
          %v2558 = vsel %vm1431, %v2493, %v2552
          %v2559 = vsel %vm1431, %v2529, %v2556
          %v2560 = vld [vmem:[%s17] sm:$0x3]
          %v2561 = vpack.c.bf16 %v2558, %v2558
          %v2562 = vpack.c.bf16 %v2559, %v2559
          %v2563 = vld [vmem:[%s16] sm:$0xf]
          %v2564 = vld [vmem:[%s16 + $0x4] sm:$0xf]
          %v2565 = vld [vmem:[%s16 + $0x8] sm:$0xf]
          %v2566 = vld [vmem:[%s16 + $0xc] sm:$0xf]
          %v2567 = vld [vmem:[%s16 + $0x10] sm:$0xf]
          %v2568 = vld [vmem:[%s16 + $0x14] sm:$0xf]
          %v2569 = vld [vmem:[%s16 + $0x18] sm:$0xf]
          %v2570 = vld [vmem:[%s16 + $0x1c] sm:$0xf]
          %v2571 = vld [vmem:[%s16 + $0x20] sm:$0xf]
          %v2572 = vld [vmem:[%s16 + $0x24] sm:$0xf]
          %v2573 = vld [vmem:[%s16 + $0x28] sm:$0xf]
          %v2574 = vld [vmem:[%s16 + $0x2c] sm:$0xf]
          %v2575 = vld [vmem:[%s16 + $0x30] sm:$0xf]
          %v2576 = vld [vmem:[%s16 + $0x34] sm:$0xf]
          %v2577 = vld [vmem:[%s16 + $0x38] sm:$0xf]
          %v2578 = vld [vmem:[%s16 + $0x3c] sm:$0xf]
          %v2579 = vld [vmem:[%s16 + $0x40] sm:$0xf]
          %v2580 = vld [vmem:[%s16 + $0x44] sm:$0xf]
          %v2581 = vld [vmem:[%s16 + $0x48] sm:$0xf]
          %v2582 = vld [vmem:[%s16 + $0x4c] sm:$0xf]
          %v2583 = vld [vmem:[%s16 + $0x50] sm:$0xf]
          %v2584 = vld [vmem:[%s16 + $0x54] sm:$0xf]
          %v2585 = vld [vmem:[%s16 + $0x58] sm:$0xf]
          %v2586 = vld [vmem:[%s16 + $0x5c] sm:$0xf]
          %v2587 = vld [vmem:[%s16 + $0x60] sm:$0xf]
          %v2588 = vld [vmem:[%s16 + $0x64] sm:$0xf]
          %v2589 = vld [vmem:[%s16 + $0x68] sm:$0xf]
          %v2590 = vld [vmem:[%s16 + $0x6c] sm:$0xf]
          %v2591 = vld [vmem:[%s16 + $0x70] sm:$0xf]
          %v2592 = vld [vmem:[%s16 + $0x74] sm:$0xf]
          %v2593 = vld [vmem:[%s16 + $0x78] sm:$0xf]
          %v2594 = vld [vmem:[%s16 + $0x7c] sm:$0xf]
          %v2627 = vunpack.c.l.b16 %v2563
          %v2628 = vunpack.c.l.b16 %v2564
          %v2629 = vunpack.c.l.b16 %v2565
          %v2630 = vunpack.c.l.b16 %v2566
          %v2631 = vunpack.c.l.b16 %v2567
          %v2632 = vunpack.c.l.b16 %v2568
          %v2633 = vunpack.c.l.b16 %v2569
          %v2634 = vunpack.c.l.b16 %v2570
          %v2635 = vunpack.c.l.b16 %v2571
          %v2636 = vunpack.c.l.b16 %v2572
          %v2637 = vunpack.c.l.b16 %v2573
          %v2638 = vunpack.c.l.b16 %v2574
          %v2639 = vunpack.c.l.b16 %v2575
          %v2640 = vunpack.c.l.b16 %v2576
          %v2641 = vunpack.c.l.b16 %v2577
          %v2642 = vunpack.c.l.b16 %v2578
          %v2643 = vunpack.c.l.b16 %v2579
          %v2644 = vunpack.c.l.b16 %v2580
          %v2645 = vunpack.c.l.b16 %v2581
          %v2646 = vunpack.c.l.b16 %v2582
          %v2647 = vunpack.c.l.b16 %v2583
          %v2648 = vunpack.c.l.b16 %v2584
          %v2649 = vunpack.c.l.b16 %v2585
          %v2650 = vunpack.c.l.b16 %v2586
          %v2651 = vunpack.c.l.b16 %v2587
          %v2652 = vunpack.c.l.b16 %v2588
          %v2653 = vunpack.c.l.b16 %v2589
          %v2654 = vunpack.c.l.b16 %v2590
          %v2655 = vunpack.c.l.b16 %v2591
          %v2656 = vunpack.c.l.b16 %v2592
          %v2657 = vunpack.c.l.b16 %v2593
          %v2658 = vunpack.c.l.b16 %v2594
          %v2659 = vpack.c.b16 %v2628, %v2627
          %v2660 = vpack.c.b16 %v2630, %v2629
          %v2661 = vpack.c.b16 %v2632, %v2631
          %v2662 = vpack.c.b16 %v2634, %v2633
          %v2663 = vpack.c.b16 %v2636, %v2635
          %v2664 = vpack.c.b16 %v2638, %v2637
          %v2665 = vpack.c.b16 %v2640, %v2639
          %v2666 = vpack.c.b16 %v2642, %v2641
          %v2667 = vpack.c.b16 %v2644, %v2643
          %v2668 = vpack.c.b16 %v2646, %v2645
          %v2669 = vpack.c.b16 %v2648, %v2647
          %v2670 = vpack.c.b16 %v2650, %v2649
          %v2671 = vpack.c.b16 %v2652, %v2651
          %v2672 = vpack.c.b16 %v2654, %v2653
          %v2673 = vpack.c.b16 %v2656, %v2655
          %v2674 = vpack.c.b16 %v2658, %v2657
          %2691 = vmatpush.bf16.msra.mxu0 %v2666
          %2692 = vmatpush.bf16.msra.mxu0 %v2665
          %2693 = vmatpush.bf16.msra.mxu0 %v2664
          %2694 = vmatpush.bf16.msra.mxu0 %v2663
          %2695 = vmatpush.bf16.msra.mxu0 %v2662
          %2696 = vmatpush.bf16.msra.mxu0 %v2661
          %2697 = vmatpush.bf16.msra.mxu0 %v2660
          %2698 = vmatpush.bf16.msra.mxu0 %v2659
          %2699 = vmatmul.bf16.gmra.mxu0 %v2561
          %v2700 = vpop.f32.mrf.mxu0
          %v2701 = vadd.f32 0.0, %v2700
          %v2702 = vpop.f32.mrf.mxu0
          %2703 = vdwg.mxu0
          %2704 = vmatpush.bf16.msra.mxu0 %v2674
          %2705 = vmatpush.bf16.msra.mxu0 %v2673
          %2706 = vmatpush.bf16.msra.mxu0 %v2672
          %2707 = vmatpush.bf16.msra.mxu0 %v2671
          %2708 = vmatpush.bf16.msra.mxu0 %v2670
          %2709 = vmatpush.bf16.msra.mxu0 %v2669
          %2710 = vmatpush.bf16.msra.mxu0 %v2668
          %2711 = vmatpush.bf16.msra.mxu0 %v2667
          %2712 = vmatmul.bf16.gmra.mxu0 %v2562
          %v2713 = vpop.f32.mrf.mxu0
          %v2714 = vadd.f32 %v2701, %v2713
          %v2715 = vpop.f32.mrf.mxu0
          %2716 = vdwg.mxu0
          %v2717 = vperm.slane %v2560, 0
          %v2718 = vmul.f32 %v2714, %v2717
          %v2719 = vperm.slane %v2560, 1
          %v2720 = vadd.f32 %v2718, %v2719
          %v2721 = vmax.f32 %v2720, 0.0
          %v2722 = vld [vmem:[%s19] sm:$0x3]
          %v2723 = vpack.c.bf16 %v2721, %v2721
          %v2724 = vld [vmem:[%s18] sm:$0xf]
          %v2725 = vld [vmem:[%s18 + $0x4] sm:$0xf]
          %v2726 = vld [vmem:[%s18 + $0x8] sm:$0xf]
          %v2727 = vld [vmem:[%s18 + $0xc] sm:$0xf]
          %v2728 = vld [vmem:[%s18 + $0x10] sm:$0xf]
          %v2729 = vld [vmem:[%s18 + $0x14] sm:$0xf]
          %v2730 = vld [vmem:[%s18 + $0x18] sm:$0xf]
          %v2731 = vld [vmem:[%s18 + $0x1c] sm:$0xf]
          %v2740 = vunpack.c.l.b16 %v2724
          %v2741 = vunpack.c.l.b16 %v2725
          %v2742 = vunpack.c.l.b16 %v2726
          %v2743 = vunpack.c.l.b16 %v2727
          %v2744 = vunpack.c.l.b16 %v2728
          %v2745 = vunpack.c.l.b16 %v2729
          %v2746 = vunpack.c.l.b16 %v2730
          %v2747 = vunpack.c.l.b16 %v2731
          %v2748 = vpack.c.b16 %v2741, %v2740
          %v2749 = vpack.c.b16 %v2743, %v2742
          %v2750 = vpack.c.b16 %v2745, %v2744
          %v2751 = vpack.c.b16 %v2747, %v2746
          %v2757 = vsel %vm1431, %v2723, 0
          %2759 = vmatpush.bf16.msra.mxu0 0
          %2760 = vmatpush.bf16.msra.mxu0 0
          %2761 = vmatpush.bf16.msra.mxu0 0
          %2762 = vmatpush.bf16.msra.mxu0 0
          %2763 = vmatpush.bf16.msra.mxu0 %v2751
          %2764 = vmatpush.bf16.msra.mxu0 %v2750
          %2765 = vmatpush.bf16.msra.mxu0 %v2749
          %2766 = vmatpush.bf16.msra.mxu0 %v2748
          %2767 = vmatmul.bf16.gmra.mxu0 %v2757
          %v2768 = vpop.f32.mrf.mxu0
          %v2769 = vadd.f32 0.0, %v2768
          %v2770 = vpop.f32.mrf.mxu0
          %2771 = vdwg.mxu0
          %v2772 = vperm.slane %v2722, 0
          %v2773 = vmul.f32 %v2769, %v2772
          %v2774 = vperm.slane %v2722, 1
          %v2775 = vadd.f32 %v2773, %v2774
          %v2776 = vmax.f32 %v2775, 0.0
          %vm2777 = vcmask 519168
          %v2778 = vsel %vm2777, %v2776, 0.0
          %v2779 = vrot.slane %v2778, 4
          %v2780 = vadd.f32 %v2778, %v2779
          %v2781 = vrot.slane %v2780, 2
          %v2782 = vadd.f32 %v2780, %v2781
          %v2783 = vrot.slane %v2782, 1
          %v2784 = vadd.f32 %v2782, %v2783
          %v2785 = vrcp.pop 4.0
          %v2786 = vmul.f32 4.0, %v2785
          %v2787 = vsub.f32 1.0, %v2786
          %v2788 = vmul.f32 %v2785, %v2787
          %v2789 = vadd.f32 %v2785, %v2788
          %vm2790 = vweird.f32 %v2785
          %v2791 = vsel %vm2790, %v2785, %v2789
          %v2792 = vmul.f32 %v2784, %v2791
          %v2794 = vrot.slane %v2776, 4
          %v2796 = vsel %vm2777, %v2794, 0.0
          %v2797 = vrot.slane %v2796, 4
          %v2798 = vadd.f32 %v2796, %v2797
          %v2799 = vrot.slane %v2798, 2
          %v2800 = vadd.f32 %v2798, %v2799
          %v2801 = vrot.slane %v2800, 1
          %v2802 = vadd.f32 %v2800, %v2801
          %v2803 = vmul.f32 %v2802, %v2791
          %v2804 = vsel %vm1342, %v2792, %v2803
          %v2805 = vpack.c.bf16 %v2125, %v2125
          %v2806 = vpack.c.bf16 %v2126, %v2126
          %v2807 = vpack.c.bf16 %v2804, %v2804
          %v2808 = vld [vmem:[%s20] sm:$0xf]
          %v2809 = vld [vmem:[%s20 + $0x4] sm:$0xf]
          %v2810 = vld [vmem:[%s20 + $0x8] sm:$0xf]
          %v2811 = vld [vmem:[%s20 + $0xc] sm:$0xf]
          %v2812 = vld [vmem:[%s20 + $0x10] sm:$0xf]
          %v2813 = vld [vmem:[%s20 + $0x14] sm:$0xf]
          %v2814 = vld [vmem:[%s20 + $0x18] sm:$0xf]
          %v2815 = vld [vmem:[%s20 + $0x1c] sm:$0xf]
          %v2816 = vld [vmem:[%s20 + $0x20] sm:$0xf]
          %v2817 = vld [vmem:[%s20 + $0x24] sm:$0xf]
          %v2818 = vld [vmem:[%s20 + $0x28] sm:$0xf]
          %v2819 = vld [vmem:[%s20 + $0x2c] sm:$0xf]
          %v2820 = vld [vmem:[%s20 + $0x30] sm:$0xf]
          %v2821 = vld [vmem:[%s20 + $0x34] sm:$0xf]
          %v2822 = vld [vmem:[%s20 + $0x38] sm:$0xf]
          %v2823 = vld [vmem:[%s20 + $0x3c] sm:$0xf]
          %v2824 = vld [vmem:[%s20 + $0x40] sm:$0xf]
          %v2825 = vld [vmem:[%s20 + $0x44] sm:$0xf]
          %v2826 = vld [vmem:[%s20 + $0x48] sm:$0xf]
          %v2827 = vld [vmem:[%s20 + $0x4c] sm:$0xf]
          %v2828 = vld [vmem:[%s20 + $0x50] sm:$0xf]
          %v2829 = vld [vmem:[%s20 + $0x54] sm:$0xf]
          %v2830 = vld [vmem:[%s20 + $0x58] sm:$0xf]
          %v2831 = vld [vmem:[%s20 + $0x5c] sm:$0xf]
          %v2832 = vld [vmem:[%s20 + $0x60] sm:$0xf]
          %v2833 = vld [vmem:[%s20 + $0x64] sm:$0xf]
          %v2834 = vld [vmem:[%s20 + $0x68] sm:$0xf]
          %v2835 = vld [vmem:[%s20 + $0x6c] sm:$0xf]
          %v2836 = vld [vmem:[%s20 + $0x70] sm:$0xf]
          %v2837 = vld [vmem:[%s20 + $0x74] sm:$0xf]
          %v2838 = vld [vmem:[%s20 + $0x78] sm:$0xf]
          %v2839 = vld [vmem:[%s20 + $0x7c] sm:$0xf]
          %v2840 = vld [vmem:[%s20 + $0x80] sm:$0xf]
          %v2841 = vld [vmem:[%s20 + $0x84] sm:$0xf]
          %v2842 = vld [vmem:[%s20 + $0x88] sm:$0xf]
          %v2843 = vld [vmem:[%s20 + $0x8c] sm:$0xf]
          %v2844 = vld [vmem:[%s20 + $0x90] sm:$0xf]
          %v2845 = vld [vmem:[%s20 + $0x94] sm:$0xf]
          %v2846 = vld [vmem:[%s20 + $0x98] sm:$0xf]
          %v2847 = vld [vmem:[%s20 + $0x9c] sm:$0xf]
          %v2848 = vld [vmem:[%s21] sm:$0x1]
          %v2850 = vperm.slane %v2848, 0
          %v2892 = vunpack.c.l.b16 %v2808
          %v2893 = vunpack.c.l.b16 %v2809
          %v2894 = vunpack.c.l.b16 %v2810
          %v2895 = vunpack.c.l.b16 %v2811
          %v2896 = vunpack.c.l.b16 %v2812
          %v2897 = vunpack.c.l.b16 %v2813
          %v2898 = vunpack.c.l.b16 %v2814
          %v2899 = vunpack.c.l.b16 %v2815
          %v2900 = vunpack.c.l.b16 %v2816
          %v2901 = vunpack.c.l.b16 %v2817
          %v2902 = vunpack.c.l.b16 %v2818
          %v2903 = vunpack.c.l.b16 %v2819
          %v2904 = vunpack.c.l.b16 %v2820
          %v2905 = vunpack.c.l.b16 %v2821
          %v2906 = vunpack.c.l.b16 %v2822
          %v2907 = vunpack.c.l.b16 %v2823
          %v2908 = vunpack.c.l.b16 %v2824
          %v2909 = vunpack.c.l.b16 %v2825
          %v2910 = vunpack.c.l.b16 %v2826
          %v2911 = vunpack.c.l.b16 %v2827
          %v2912 = vunpack.c.l.b16 %v2828
          %v2913 = vunpack.c.l.b16 %v2829
          %v2914 = vunpack.c.l.b16 %v2830
          %v2915 = vunpack.c.l.b16 %v2831
          %v2916 = vunpack.c.l.b16 %v2832
          %v2917 = vunpack.c.l.b16 %v2833
          %v2918 = vunpack.c.l.b16 %v2834
          %v2919 = vunpack.c.l.b16 %v2835
          %v2920 = vunpack.c.l.b16 %v2836
          %v2921 = vunpack.c.l.b16 %v2837
          %v2922 = vunpack.c.l.b16 %v2838
          %v2923 = vunpack.c.l.b16 %v2839
          %v2924 = vunpack.c.l.b16 %v2840
          %v2925 = vunpack.c.l.b16 %v2841
          %v2926 = vunpack.c.l.b16 %v2842
          %v2927 = vunpack.c.l.b16 %v2843
          %v2928 = vunpack.c.l.b16 %v2844
          %v2929 = vunpack.c.l.b16 %v2845
          %v2930 = vunpack.c.l.b16 %v2846
          %v2931 = vunpack.c.l.b16 %v2847
          %v2932 = vpack.c.b16 %v2893, %v2892
          %v2933 = vpack.c.b16 %v2895, %v2894
          %v2934 = vpack.c.b16 %v2897, %v2896
          %v2935 = vpack.c.b16 %v2899, %v2898
          %v2936 = vpack.c.b16 %v2901, %v2900
          %v2937 = vpack.c.b16 %v2903, %v2902
          %v2938 = vpack.c.b16 %v2905, %v2904
          %v2939 = vpack.c.b16 %v2907, %v2906
          %v2940 = vpack.c.b16 %v2909, %v2908
          %v2941 = vpack.c.b16 %v2911, %v2910
          %v2942 = vpack.c.b16 %v2913, %v2912
          %v2943 = vpack.c.b16 %v2915, %v2914
          %v2944 = vpack.c.b16 %v2917, %v2916
          %v2945 = vpack.c.b16 %v2919, %v2918
          %v2946 = vpack.c.b16 %v2921, %v2920
          %v2947 = vpack.c.b16 %v2923, %v2922
          %v2948 = vpack.c.b16 %v2925, %v2924
          %v2949 = vpack.c.b16 %v2927, %v2926
          %v2950 = vpack.c.b16 %v2929, %v2928
          %v2951 = vpack.c.b16 %v2931, %v2930
          %v2973 = vsel %vm1431, %v2807, 0
          %2975 = vmatpush.bf16.msra.mxu0 %v2939
          %2976 = vmatpush.bf16.msra.mxu0 %v2938
          %2977 = vmatpush.bf16.msra.mxu0 %v2937
          %2978 = vmatpush.bf16.msra.mxu0 %v2936
          %2979 = vmatpush.bf16.msra.mxu0 %v2935
          %2980 = vmatpush.bf16.msra.mxu0 %v2934
          %2981 = vmatpush.bf16.msra.mxu0 %v2933
          %2982 = vmatpush.bf16.msra.mxu0 %v2932
          %2983 = vmatmul.bf16.gmra.mxu0 %v2805
          %v2984 = vpop.f32.mrf.mxu0
          %v2985 = vadd.f32 %v2850, %v2984
          %v2986 = vpop.f32.mrf.mxu0
          %2987 = vdwg.mxu0
          %2988 = vmatpush.bf16.msra.mxu0 %v2947
          %2989 = vmatpush.bf16.msra.mxu0 %v2946
          %2990 = vmatpush.bf16.msra.mxu0 %v2945
          %2991 = vmatpush.bf16.msra.mxu0 %v2944
          %2992 = vmatpush.bf16.msra.mxu0 %v2943
          %2993 = vmatpush.bf16.msra.mxu0 %v2942
          %2994 = vmatpush.bf16.msra.mxu0 %v2941
          %2995 = vmatpush.bf16.msra.mxu0 %v2940
          %2996 = vmatmul.bf16.gmra.mxu0 %v2806
          %v2997 = vpop.f32.mrf.mxu0
          %v2998 = vadd.f32 %v2985, %v2997
          %v2999 = vpop.f32.mrf.mxu0
          %3000 = vdwg.mxu0
          %3001 = vmatpush.bf16.msra.mxu0 0
          %3002 = vmatpush.bf16.msra.mxu0 0
          %3003 = vmatpush.bf16.msra.mxu0 0
          %3004 = vmatpush.bf16.msra.mxu0 0
          %3005 = vmatpush.bf16.msra.mxu0 %v2951
          %3006 = vmatpush.bf16.msra.mxu0 %v2950
          %3007 = vmatpush.bf16.msra.mxu0 %v2949
          %3008 = vmatpush.bf16.msra.mxu0 %v2948
          %3009 = vmatmul.bf16.gmra.mxu0 %v2973
          %v3010 = vpop.f32.mrf.mxu0
          %v3011 = vadd.f32 %v2998, %v3010
          %v3012 = vpop.f32.mrf.mxu0
          %3013 = vdwg.mxu0
          %v3014 = vmax.f32 %v3011, 0.0
          %v3015 = vpack.c.bf16 %v3014, %v3014
          %v3016 = vld [vmem:[%s22] sm:$0xff]
          %v3017 = vld [vmem:[%s22 + $0x8] sm:$0xff]
          %v3018 = vld [vmem:[%s22 + $0x10] sm:$0xff]
          %v3019 = vld [vmem:[%s22 + $0x18] sm:$0xff]
          %v3020 = vld [vmem:[%s22 + $0x20] sm:$0xff]
          %v3021 = vld [vmem:[%s22 + $0x28] sm:$0xff]
          %v3022 = vld [vmem:[%s22 + $0x30] sm:$0xff]
          %v3023 = vld [vmem:[%s22 + $0x38] sm:$0xff]
          %v3024 = vld [vmem:[%s22 + $0x40] sm:$0xff]
          %v3025 = vld [vmem:[%s22 + $0x48] sm:$0xff]
          %v3026 = vld [vmem:[%s22 + $0x50] sm:$0xff]
          %v3027 = vld [vmem:[%s22 + $0x58] sm:$0xff]
          %v3028 = vld [vmem:[%s22 + $0x60] sm:$0xff]
          %v3029 = vld [vmem:[%s22 + $0x68] sm:$0xff]
          %v3030 = vld [vmem:[%s22 + $0x70] sm:$0xff]
          %v3031 = vld [vmem:[%s22 + $0x78] sm:$0xff]
          %v3032 = vld [vmem:[%s23] sm:$0xf]
          %v3034 = vperm.slane %v3032, 0
          %v3035 = vperm.slane %v3032, 1
          %v3036 = vperm.slane %v3032, 2
          %v3037 = vperm.slane %v3032, 3
          %v3058 = vunpack.c.l.b16 %v3016
          %v3059 = vunpack.c.h.b16 %v3016
          %v3060 = vunpack.c.l.b16 %v3017
          %v3061 = vunpack.c.h.b16 %v3017
          %v3062 = vunpack.c.l.b16 %v3018
          %v3063 = vunpack.c.h.b16 %v3018
          %v3064 = vunpack.c.l.b16 %v3019
          %v3065 = vunpack.c.h.b16 %v3019
          %v3066 = vunpack.c.l.b16 %v3020
          %v3067 = vunpack.c.h.b16 %v3020
          %v3068 = vunpack.c.l.b16 %v3021
          %v3069 = vunpack.c.h.b16 %v3021
          %v3070 = vunpack.c.l.b16 %v3022
          %v3071 = vunpack.c.h.b16 %v3022
          %v3072 = vunpack.c.l.b16 %v3023
          %v3073 = vunpack.c.h.b16 %v3023
          %v3074 = vunpack.c.l.b16 %v3024
          %v3075 = vunpack.c.h.b16 %v3024
          %v3076 = vunpack.c.l.b16 %v3025
          %v3077 = vunpack.c.h.b16 %v3025
          %v3078 = vunpack.c.l.b16 %v3026
          %v3079 = vunpack.c.h.b16 %v3026
          %v3080 = vunpack.c.l.b16 %v3027
          %v3081 = vunpack.c.h.b16 %v3027
          %v3082 = vunpack.c.l.b16 %v3028
          %v3083 = vunpack.c.h.b16 %v3028
          %v3084 = vunpack.c.l.b16 %v3029
          %v3085 = vunpack.c.h.b16 %v3029
          %v3086 = vunpack.c.l.b16 %v3030
          %v3087 = vunpack.c.h.b16 %v3030
          %v3088 = vunpack.c.l.b16 %v3031
          %v3089 = vunpack.c.h.b16 %v3031
          %v3090 = vpack.c.b16 %v3062, %v3058
          %v3091 = vpack.c.b16 %v3063, %v3059
          %v3092 = vpack.c.b16 %v3064, %v3060
          %v3093 = vpack.c.b16 %v3065, %v3061
          %v3094 = vpack.c.b16 %v3070, %v3066
          %v3095 = vpack.c.b16 %v3071, %v3067
          %v3096 = vpack.c.b16 %v3072, %v3068
          %v3097 = vpack.c.b16 %v3073, %v3069
          %v3098 = vpack.c.b16 %v3078, %v3074
          %v3099 = vpack.c.b16 %v3079, %v3075
          %v3100 = vpack.c.b16 %v3080, %v3076
          %v3101 = vpack.c.b16 %v3081, %v3077
          %v3102 = vpack.c.b16 %v3086, %v3082
          %v3103 = vpack.c.b16 %v3087, %v3083
          %v3104 = vpack.c.b16 %v3088, %v3084
          %v3105 = vpack.c.b16 %v3089, %v3085
          %v3123 = vsel %vm1431, %v3015, 0
          %3125 = vmatpush.bf16.msra.mxu0 0
          %3126 = vmatpush.bf16.msra.mxu0 0
          %3127 = vmatpush.bf16.msra.mxu0 0
          %3128 = vmatpush.bf16.msra.mxu0 0
          %3129 = vmatpush.bf16.msra.mxu0 %v3102
          %3130 = vmatpush.bf16.msra.mxu0 %v3098
          %3131 = vmatpush.bf16.msra.mxu0 %v3094
          %3132 = vmatpush.bf16.msra.mxu0 %v3090
          %3133 = vmatmul.bf16.gmra.mxu0 %v3123
          %v3134 = vpop.f32.mrf.mxu0
          %v3135 = vadd.f32 %v3034, %v3134
          %v3136 = vpop.f32.mrf.mxu0
          %3137 = vdwg.mxu0
          %3138 = vmatpush.bf16.msra.mxu0 0
          %3139 = vmatpush.bf16.msra.mxu0 0
          %3140 = vmatpush.bf16.msra.mxu0 0
          %3141 = vmatpush.bf16.msra.mxu0 0
          %3142 = vmatpush.bf16.msra.mxu0 %v3103
          %3143 = vmatpush.bf16.msra.mxu0 %v3099
          %3144 = vmatpush.bf16.msra.mxu0 %v3095
          %3145 = vmatpush.bf16.msra.mxu0 %v3091
          %3146 = vmatmul.bf16.gmra.mxu0 %v3123
          %v3147 = vpop.f32.mrf.mxu0
          %v3148 = vadd.f32 %v3035, %v3147
          %v3149 = vpop.f32.mrf.mxu0
          %3150 = vdwg.mxu0
          %3151 = vmatpush.bf16.msra.mxu0 0
          %3152 = vmatpush.bf16.msra.mxu0 0
          %3153 = vmatpush.bf16.msra.mxu0 0
          %3154 = vmatpush.bf16.msra.mxu0 0
          %3155 = vmatpush.bf16.msra.mxu0 %v3104
          %3156 = vmatpush.bf16.msra.mxu0 %v3100
          %3157 = vmatpush.bf16.msra.mxu0 %v3096
          %3158 = vmatpush.bf16.msra.mxu0 %v3092
          %3159 = vmatmul.bf16.gmra.mxu0 %v3123
          %v3160 = vpop.f32.mrf.mxu0
          %v3161 = vadd.f32 %v3036, %v3160
          %v3162 = vpop.f32.mrf.mxu0
          %3163 = vdwg.mxu0
          %3164 = vmatpush.bf16.msra.mxu0 0
          %3165 = vmatpush.bf16.msra.mxu0 0
          %3166 = vmatpush.bf16.msra.mxu0 0
          %3167 = vmatpush.bf16.msra.mxu0 0
          %3168 = vmatpush.bf16.msra.mxu0 %v3105
          %3169 = vmatpush.bf16.msra.mxu0 %v3101
          %3170 = vmatpush.bf16.msra.mxu0 %v3097
          %3171 = vmatpush.bf16.msra.mxu0 %v3093
          %3172 = vmatmul.bf16.gmra.mxu0 %v3123
          %v3173 = vpop.f32.mrf.mxu0
          %v3174 = vadd.f32 %v3037, %v3173
          %v3175 = vpop.f32.mrf.mxu0
          %3176 = vdwg.mxu0
          %v3177 = vmax.f32 %v3135, 0.0
          %v3178 = vmax.f32 %v3148, 0.0
          %v3179 = vmax.f32 %v3161, 0.0
          %v3180 = vmax.f32 %v3174, 0.0
          %v3181 = vpack.c.bf16 %v3177, %v3177
          %v3182 = vpack.c.bf16 %v3178, %v3178
          %v3183 = vpack.c.bf16 %v3179, %v3179
          %v3184 = vpack.c.bf16 %v3180, %v3180
          %v3185 = vld [vmem:[%s24] sm:$0xf]
          %v3186 = vld [vmem:[%s24 + $0x4] sm:$0xf]
          %v3187 = vld [vmem:[%s24 + $0x8] sm:$0xf]
          %v3188 = vld [vmem:[%s24 + $0xc] sm:$0xf]
          %v3189 = vld [vmem:[%s24 + $0x10] sm:$0xf]
          %v3190 = vld [vmem:[%s24 + $0x14] sm:$0xf]
          %v3191 = vld [vmem:[%s24 + $0x18] sm:$0xf]
          %v3192 = vld [vmem:[%s24 + $0x1c] sm:$0xf]
          %v3193 = vld [vmem:[%s24 + $0x20] sm:$0xf]
          %v3194 = vld [vmem:[%s24 + $0x24] sm:$0xf]
          %v3195 = vld [vmem:[%s24 + $0x28] sm:$0xf]
          %v3196 = vld [vmem:[%s24 + $0x2c] sm:$0xf]
          %v3197 = vld [vmem:[%s24 + $0x30] sm:$0xf]
          %v3198 = vld [vmem:[%s24 + $0x34] sm:$0xf]
          %v3199 = vld [vmem:[%s24 + $0x38] sm:$0xf]
          %v3200 = vld [vmem:[%s24 + $0x3c] sm:$0xf]
          %v3201 = vld [vmem:[%s24 + $0x40] sm:$0xf]
          %v3202 = vld [vmem:[%s24 + $0x44] sm:$0xf]
          %v3203 = vld [vmem:[%s24 + $0x48] sm:$0xf]
          %v3204 = vld [vmem:[%s24 + $0x4c] sm:$0xf]
          %v3205 = vld [vmem:[%s24 + $0x50] sm:$0xf]
          %v3206 = vld [vmem:[%s24 + $0x54] sm:$0xf]
          %v3207 = vld [vmem:[%s24 + $0x58] sm:$0xf]
          %v3208 = vld [vmem:[%s24 + $0x5c] sm:$0xf]
          %v3209 = vld [vmem:[%s24 + $0x60] sm:$0xf]
          %v3210 = vld [vmem:[%s24 + $0x64] sm:$0xf]
          %v3211 = vld [vmem:[%s24 + $0x68] sm:$0xf]
          %v3212 = vld [vmem:[%s24 + $0x6c] sm:$0xf]
          %v3213 = vld [vmem:[%s24 + $0x70] sm:$0xf]
          %v3214 = vld [vmem:[%s24 + $0x74] sm:$0xf]
          %v3215 = vld [vmem:[%s24 + $0x78] sm:$0xf]
          %v3216 = vld [vmem:[%s24 + $0x7c] sm:$0xf]
          %v3217 = vld [vmem:[%s24 + $0x80] sm:$0xf]
          %v3218 = vld [vmem:[%s24 + $0x84] sm:$0xf]
          %v3219 = vld [vmem:[%s24 + $0x88] sm:$0xf]
          %v3220 = vld [vmem:[%s24 + $0x8c] sm:$0xf]
          %v3221 = vld [vmem:[%s24 + $0x90] sm:$0xf]
          %v3222 = vld [vmem:[%s24 + $0x94] sm:$0xf]
          %v3223 = vld [vmem:[%s24 + $0x98] sm:$0xf]
          %v3224 = vld [vmem:[%s24 + $0x9c] sm:$0xf]
          %v3225 = vld [vmem:[%s24 + $0xa0] sm:$0xf]
          %v3226 = vld [vmem:[%s24 + $0xa4] sm:$0xf]
          %v3227 = vld [vmem:[%s24 + $0xa8] sm:$0xf]
          %v3228 = vld [vmem:[%s24 + $0xac] sm:$0xf]
          %v3229 = vld [vmem:[%s24 + $0xb0] sm:$0xf]
          %v3230 = vld [vmem:[%s24 + $0xb4] sm:$0xf]
          %v3231 = vld [vmem:[%s24 + $0xb8] sm:$0xf]
          %v3232 = vld [vmem:[%s24 + $0xbc] sm:$0xf]
          %v3233 = vld [vmem:[%s24 + $0xc0] sm:$0xf]
          %v3234 = vld [vmem:[%s24 + $0xc4] sm:$0xf]
          %v3235 = vld [vmem:[%s24 + $0xc8] sm:$0xf]
          %v3236 = vld [vmem:[%s24 + $0xcc] sm:$0xf]
          %v3237 = vld [vmem:[%s24 + $0xd0] sm:$0xf]
          %v3238 = vld [vmem:[%s24 + $0xd4] sm:$0xf]
          %v3239 = vld [vmem:[%s24 + $0xd8] sm:$0xf]
          %v3240 = vld [vmem:[%s24 + $0xdc] sm:$0xf]
          %v3241 = vld [vmem:[%s24 + $0xe0] sm:$0xf]
          %v3242 = vld [vmem:[%s24 + $0xe4] sm:$0xf]
          %v3243 = vld [vmem:[%s24 + $0xe8] sm:$0xf]
          %v3244 = vld [vmem:[%s24 + $0xec] sm:$0xf]
          %v3245 = vld [vmem:[%s24 + $0xf0] sm:$0xf]
          %v3246 = vld [vmem:[%s24 + $0xf4] sm:$0xf]
          %v3247 = vld [vmem:[%s24 + $0xf8] sm:$0xf]
          %v3248 = vld [vmem:[%s24 + $0xfc] sm:$0xf]
          %v3249 = vld [vmem:[%s25] sm:$0x1]
          %v3251 = vperm.slane %v3249, 0
          %v3317 = vunpack.c.l.b16 %v3185
          %v3318 = vunpack.c.l.b16 %v3186
          %v3319 = vunpack.c.l.b16 %v3187
          %v3320 = vunpack.c.l.b16 %v3188
          %v3321 = vunpack.c.l.b16 %v3189
          %v3322 = vunpack.c.l.b16 %v3190
          %v3323 = vunpack.c.l.b16 %v3191
          %v3324 = vunpack.c.l.b16 %v3192
          %v3325 = vunpack.c.l.b16 %v3193
          %v3326 = vunpack.c.l.b16 %v3194
          %v3327 = vunpack.c.l.b16 %v3195
          %v3328 = vunpack.c.l.b16 %v3196
          %v3329 = vunpack.c.l.b16 %v3197
          %v3330 = vunpack.c.l.b16 %v3198
          %v3331 = vunpack.c.l.b16 %v3199
          %v3332 = vunpack.c.l.b16 %v3200
          %v3333 = vunpack.c.l.b16 %v3201
          %v3334 = vunpack.c.l.b16 %v3202
          %v3335 = vunpack.c.l.b16 %v3203
          %v3336 = vunpack.c.l.b16 %v3204
          %v3337 = vunpack.c.l.b16 %v3205
          %v3338 = vunpack.c.l.b16 %v3206
          %v3339 = vunpack.c.l.b16 %v3207
          %v3340 = vunpack.c.l.b16 %v3208
          %v3341 = vunpack.c.l.b16 %v3209
          %v3342 = vunpack.c.l.b16 %v3210
          %v3343 = vunpack.c.l.b16 %v3211
          %v3344 = vunpack.c.l.b16 %v3212
          %v3345 = vunpack.c.l.b16 %v3213
          %v3346 = vunpack.c.l.b16 %v3214
          %v3347 = vunpack.c.l.b16 %v3215
          %v3348 = vunpack.c.l.b16 %v3216
          %v3349 = vunpack.c.l.b16 %v3217
          %v3350 = vunpack.c.l.b16 %v3218
          %v3351 = vunpack.c.l.b16 %v3219
          %v3352 = vunpack.c.l.b16 %v3220
          %v3353 = vunpack.c.l.b16 %v3221
          %v3354 = vunpack.c.l.b16 %v3222
          %v3355 = vunpack.c.l.b16 %v3223
          %v3356 = vunpack.c.l.b16 %v3224
          %v3357 = vunpack.c.l.b16 %v3225
          %v3358 = vunpack.c.l.b16 %v3226
          %v3359 = vunpack.c.l.b16 %v3227
          %v3360 = vunpack.c.l.b16 %v3228
          %v3361 = vunpack.c.l.b16 %v3229
          %v3362 = vunpack.c.l.b16 %v3230
          %v3363 = vunpack.c.l.b16 %v3231
          %v3364 = vunpack.c.l.b16 %v3232
          %v3365 = vunpack.c.l.b16 %v3233
          %v3366 = vunpack.c.l.b16 %v3234
          %v3367 = vunpack.c.l.b16 %v3235
          %v3368 = vunpack.c.l.b16 %v3236
          %v3369 = vunpack.c.l.b16 %v3237
          %v3370 = vunpack.c.l.b16 %v3238
          %v3371 = vunpack.c.l.b16 %v3239
          %v3372 = vunpack.c.l.b16 %v3240
          %v3373 = vunpack.c.l.b16 %v3241
          %v3374 = vunpack.c.l.b16 %v3242
          %v3375 = vunpack.c.l.b16 %v3243
          %v3376 = vunpack.c.l.b16 %v3244
          %v3377 = vunpack.c.l.b16 %v3245
          %v3378 = vunpack.c.l.b16 %v3246
          %v3379 = vunpack.c.l.b16 %v3247
          %v3380 = vunpack.c.l.b16 %v3248
          %v3381 = vpack.c.b16 %v3318, %v3317
          %v3382 = vpack.c.b16 %v3320, %v3319
          %v3383 = vpack.c.b16 %v3322, %v3321
          %v3384 = vpack.c.b16 %v3324, %v3323
          %v3385 = vpack.c.b16 %v3326, %v3325
          %v3386 = vpack.c.b16 %v3328, %v3327
          %v3387 = vpack.c.b16 %v3330, %v3329
          %v3388 = vpack.c.b16 %v3332, %v3331
          %v3389 = vpack.c.b16 %v3334, %v3333
          %v3390 = vpack.c.b16 %v3336, %v3335
          %v3391 = vpack.c.b16 %v3338, %v3337
          %v3392 = vpack.c.b16 %v3340, %v3339
          %v3393 = vpack.c.b16 %v3342, %v3341
          %v3394 = vpack.c.b16 %v3344, %v3343
          %v3395 = vpack.c.b16 %v3346, %v3345
          %v3396 = vpack.c.b16 %v3348, %v3347
          %v3397 = vpack.c.b16 %v3350, %v3349
          %v3398 = vpack.c.b16 %v3352, %v3351
          %v3399 = vpack.c.b16 %v3354, %v3353
          %v3400 = vpack.c.b16 %v3356, %v3355
          %v3401 = vpack.c.b16 %v3358, %v3357
          %v3402 = vpack.c.b16 %v3360, %v3359
          %v3403 = vpack.c.b16 %v3362, %v3361
          %v3404 = vpack.c.b16 %v3364, %v3363
          %v3405 = vpack.c.b16 %v3366, %v3365
          %v3406 = vpack.c.b16 %v3368, %v3367
          %v3407 = vpack.c.b16 %v3370, %v3369
          %v3408 = vpack.c.b16 %v3372, %v3371
          %v3409 = vpack.c.b16 %v3374, %v3373
          %v3410 = vpack.c.b16 %v3376, %v3375
          %v3411 = vpack.c.b16 %v3378, %v3377
          %v3412 = vpack.c.b16 %v3380, %v3379
          %3445 = vmatpush.bf16.msra.mxu0 %v3388
          %3446 = vmatpush.bf16.msra.mxu0 %v3387
          %3447 = vmatpush.bf16.msra.mxu0 %v3386
          %3448 = vmatpush.bf16.msra.mxu0 %v3385
          %3449 = vmatpush.bf16.msra.mxu0 %v3384
          %3450 = vmatpush.bf16.msra.mxu0 %v3383
          %3451 = vmatpush.bf16.msra.mxu0 %v3382
          %3452 = vmatpush.bf16.msra.mxu0 %v3381
          %3453 = vmatmul.bf16.gmra.mxu0 %v3181
          %v3454 = vpop.f32.mrf.mxu0
          %v3455 = vadd.f32 %v3251, %v3454
          %v3456 = vpop.f32.mrf.mxu0
          %3457 = vdwg.mxu0
          %3458 = vmatpush.bf16.msra.mxu0 %v3396
          %3459 = vmatpush.bf16.msra.mxu0 %v3395
          %3460 = vmatpush.bf16.msra.mxu0 %v3394
          %3461 = vmatpush.bf16.msra.mxu0 %v3393
          %3462 = vmatpush.bf16.msra.mxu0 %v3392
          %3463 = vmatpush.bf16.msra.mxu0 %v3391
          %3464 = vmatpush.bf16.msra.mxu0 %v3390
          %3465 = vmatpush.bf16.msra.mxu0 %v3389
          %3466 = vmatmul.bf16.gmra.mxu0 %v3182
          %v3467 = vpop.f32.mrf.mxu0
          %v3468 = vadd.f32 %v3455, %v3467
          %v3469 = vpop.f32.mrf.mxu0
          %3470 = vdwg.mxu0
          %3471 = vmatpush.bf16.msra.mxu0 %v3404
          %3472 = vmatpush.bf16.msra.mxu0 %v3403
          %3473 = vmatpush.bf16.msra.mxu0 %v3402
          %3474 = vmatpush.bf16.msra.mxu0 %v3401
          %3475 = vmatpush.bf16.msra.mxu0 %v3400
          %3476 = vmatpush.bf16.msra.mxu0 %v3399
          %3477 = vmatpush.bf16.msra.mxu0 %v3398
          %3478 = vmatpush.bf16.msra.mxu0 %v3397
          %3479 = vmatmul.bf16.gmra.mxu0 %v3183
          %v3480 = vpop.f32.mrf.mxu0
          %v3481 = vadd.f32 %v3468, %v3480
          %v3482 = vpop.f32.mrf.mxu0
          %3483 = vdwg.mxu0
          %3484 = vmatpush.bf16.msra.mxu0 %v3412
          %3485 = vmatpush.bf16.msra.mxu0 %v3411
          %3486 = vmatpush.bf16.msra.mxu0 %v3410
          %3487 = vmatpush.bf16.msra.mxu0 %v3409
          %3488 = vmatpush.bf16.msra.mxu0 %v3408
          %3489 = vmatpush.bf16.msra.mxu0 %v3407
          %3490 = vmatpush.bf16.msra.mxu0 %v3406
          %3491 = vmatpush.bf16.msra.mxu0 %v3405
          %3492 = vmatmul.bf16.gmra.mxu0 %v3184
          %v3493 = vpop.f32.mrf.mxu0
          %v3494 = vadd.f32 %v3481, %v3493
          %v3495 = vpop.f32.mrf.mxu0
          %3496 = vdwg.mxu0
          %vm3497 = vcmask 74752
          %3498 = vst.msk [vmem:[#allocation3] sm:$0x3] %vm3497, %v3494
        $region132: #{forward.1} parent=123 // pred_fallthru
          _
        // Predicated region
        $region133: #{forward.1} parent=123 // pred_check
          %p3499 = pneg %p607
        $region134: #{forward.1} parent=123 // pred_check_branch
          %3501 = sbr.rel (%p3499) target = $region136
        $region135: #{forward.1} parent=123 // pred_region
          %3503 = vsyncadd [#allocation4], 0
          %s3505 = sshll.u32 [#allocation3], 4
          %s3506 = int_to_ptr.vmem [resolvable:$true] %s3505
          %s3507 = sshll.u32 %s26, 4
          %s3508 = int_to_ptr.hbm [resolvable:$true] %s3507
          %3510 = dma.vmem_to_hbm [thread:$0]  %s3506, 32, %s3508, [#allocation4]
        $region136: #{forward.1} parent=123 // pred_fallthru
          _
        // Predicated region
        $region137: #{forward.1} parent=123 // pred_check
          %p3511 = pneg %p607
        $region138: #{forward.1} parent=123 // pred_check_branch
          %3513 = sbr.rel (%p3511) target = $region140
        $region139: #{forward.1} parent=123 // pred_region
          %3515 = dma.done [#allocation4], 32
        $region140: #{forward.1} parent=123 // pred_fallthru
          _
      $region124: #{forward.1} parent=5 // pred_fallthru
        _
      %p3516 = scmp.le.s32.totalorder 2, %s33
      // Predicated region
      $region141: #{forward.1} parent=5 // pred_check
        %p3517 = pneg %p3516
      $region142: #{forward.1} parent=5 // pred_check_branch
        %3519 = sbr.rel (%p3517) target = $region144
      $region143: #{forward.1} parent=5 // pred_region
        %s3520 = ssub.s32 %s33, 2
      $region144: #{forward.1} parent=5 // pred_fallthru
        _
    $region6: #{forward.1} parent=1 // loop_footer
      %s37 = sadd.s32 1, %s33
    $region7: #{forward.1} parent=1 // loop_footer_branch
      %32 = sbr.rel target = $region3
    $region8: #{forward.1} parent=1 // loop_exit
      _
    %3521 = vsyncpa [#allocation4], 1
    %s3522 = scalar_lea.sflag [#allocation4], 1
    %3523 = vsyncpa %s3522, 1

</llo_original>
